<compile_context>
chip_gen: v6e
topology: v6e:2x2x1
jax: 0.10.0
libtpu: 0.0.40
codegen_flags: <defaults>
</compile_context>

<pallas_src>
import numpy as np
import jax
import jax.numpy as jnp
from jax.experimental import pallas as pl
from jax.experimental.pallas import tpu as pltpu


def _round8(x):
    return (x + 7) // 8 * 8


# ----------------------------------------------------------------------------
# Fused kernel: conv1 -> relu -> conv2 -> relu -> conv3 -> relu -> fc -> softmax
# ----------------------------------------------------------------------------
def _make_kernel(*, W0, IMG, Bt, S1, S2, C3, fc_rows, RC=192):
    n_hw = len(fc_rows)
    M3 = n_hw * Bt

    def _tree_sum(vals):
        vals = list(vals)
        while len(vals) > 1:
            nxt = [vals[i] + vals[i + 1] for i in range(0, len(vals) - 1, 2)]
            if len(vals) % 2:
                nxt.append(vals[-1])
            vals = nxt
        return vals[0]

    def kernel(x_ref, w1_ref, b1_ref, w2_ref, b2_ref, w3_ref, b3_ref,
               wfc_ref, bfc_ref, out_ref, f1_ref, f2_ref, g_ref):
        # ---- conv1 (kw packed into K=3*Cin) + bias + ReLU -------------------
        # Register accumulation per row chunk; exactly one store per chunk.
        for r0 in range(0, S1, RC):
            rc = min(RC, S1 - r0)
            acc = None
            for kh in range(3):
                s = r0 + kh * W0                      # multiple of 8 -> aligned
                t = jnp.dot(x_ref[s:s + rc, :], w1_ref[kh],
                            preferred_element_type=jnp.float32)
                acc = t if acc is None else acc + t
            f1_ref[r0:r0 + rc, :] = jnp.maximum(acc + b1_ref[...], 0.0)

        # ---- conv2 (dense on the conv1 grid) + bias + ReLU ------------------
        # Stride-2 handled purely by row arithmetic downstream.
        for r0 in range(0, S2, RC):
            rc = min(RC, S2 - r0)
            acc = None
            for k in range(9):
                kh, kw = divmod(k, 3)
                s = r0 + kh * W0 + kw
                t = jnp.dot(f1_ref[s:s + rc, :], w2_ref[k],
                            preferred_element_type=jnp.float32)
                acc = t if acc is None else acc + t
            f2_ref[r0:r0 + rc, :] = jnp.maximum(acc + b2_ref[...], 0.0)

        # ---- gather the f2 rows conv3 actually consumes ---------------------
        # Staging layout: row = (k*n_hw + hw)*Bt + img, so each conv3 tap reads
        # one dense [n_hw*Bt, C2] tile (no strided loads, no dense conv3).
        for k in range(9):
            kh, kw = divmod(k, 3)
            for hw in range(n_hw):
                src = fc_rows[hw] + 2 * W0 * kh + 2 * kw
                for i in range(Bt):
                    dst = (k * n_hw + hw) * Bt + i
                    g_ref[dst:dst + 1, :] = f2_ref[i * IMG + src:i * IMG + src + 1, :]

        # ---- conv3 at the needed positions only: 9 dots of M = n_hw*Bt ------
        acc = None
        for k in range(9):
            t = jnp.dot(g_ref[k * M3:(k + 1) * M3, :], w3_ref[k],
                        preferred_element_type=jnp.float32)
            acc = t if acc is None else acc + t
        f3 = jnp.maximum(acc + b3_ref[...], 0.0)          # [n_hw*Bt, C3]

        # ---- flatten (pre-permuted fc weight) + fc: add-tree of dots --------
        parts = [jnp.dot(f3[hw * Bt:(hw + 1) * Bt, :],
                         wfc_ref[hw * C3:(hw + 1) * C3, :],
                         preferred_element_type=jnp.float32)
                 for hw in range(n_hw)]
        logits = bfc_ref[...] + _tree_sum(parts)          # [Bt, NC]

        # ---- softmax ---------------------------------------------------------
        m = jnp.max(logits, axis=-1, keepdims=True)
        e = jnp.exp(logits - m)
        out_ref[...] = e * pl.reciprocal(jnp.sum(e, axis=-1, keepdims=True),
                                         approx=False)

    return kernel


# ----------------------------------------------------------------------------
# One-time weight repack (hoisted out of the forward pass)
# ----------------------------------------------------------------------------
def prepare_params(p):
    def conv_w(w):  # PyTorch [Cout, Cin, 3, 3] -> [9, Cin, Cout], k = kh*3+kw
        co, ci, kh, kw = w.shape
        return jnp.transpose(w, (2, 3, 1, 0)).reshape(kh * kw, ci, co)

    w1_9 = conv_w(p["w1"])                              # (9, C0, C1)
    c0, c1 = w1_9.shape[1], w1_9.shape[2]
    # fold kw into the contraction dim: w1p[kh, kw*C0+ci, co]
    w1p = w1_9.reshape(3, 3, c0, c1).reshape(3, 3 * c0, c1)

    c3 = p["w3"].shape[0]
    nc, flat = p["wfc"].shape
    hw = flat // c3
    # wfc_p[hw*C3 + c, n] = wfc[n, c*(H3*W3) + hw]  (PyTorch NCHW flatten order)
    wfc_p = jnp.transpose(p["wfc"].reshape(nc, c3, hw), (2, 1, 0)).reshape(hw * c3, nc)
    return dict(
        w1p=w1p, b1=p["b1"].reshape(1, -1),
        w2=conv_w(p["w2"]), b2=p["b2"].reshape(1, -1),
        w3=conv_w(p["w3"]), b3=p["b3"].reshape(1, -1),
        wfc=wfc_p, bfc=p["bfc"].reshape(1, -1))


# ----------------------------------------------------------------------------
# Forward pass (single fused pallas_call, jitted)
# ----------------------------------------------------------------------------
@jax.jit
def model1_forward(x_nchw, prepared):
    B, C0, H0, W0 = x_nchw.shape
    C1 = prepared["w1p"].shape[2]
    C2 = prepared["w2"].shape[2]
    C3 = prepared["w3"].shape[2]
    NC = prepared["wfc"].shape[1]
    IMG = H0 * W0

    H1, W1 = H0 - 2, W0 - 2                        # conv1 (stride 1)
    H2, W2 = (H1 - 3) // 2 + 1, (W1 - 3) // 2 + 1  # conv2 (stride 2)
    H3, W3 = (H2 - 3) // 2 + 1, (W2 - 3) // 2 + 1  # conv3 (stride 2)
    assert H1 >= 3 and W1 >= 3 and H3 >= 1 and W3 >= 1
    assert IMG % 8 == 0
    assert prepared["wfc"].shape[0] == H3 * W3 * C3

    # conv3 output (i,j) lives at dense conv1-grid row 4*W0*i + 4*j of f2;
    # its taps add 2*W0*kh + 2*kw.
    fc_rows = tuple(4 * W0 * i + 4 * j for i in range(H3) for j in range(W3))
    R3 = fc_rows[-1] + (2 * W0 * 2 + 2 * 2) + 1   # dense conv2 rows needed / image
    R2 = R3 + 2 * W0 + 2                          # conv1 rows needed / image
    assert R2 + 2 * W0 <= IMG                     # conv1 tap reads stay in the slab

    # images per grid step: amortize fixed per-step costs but keep >= 2 steps
    # so both TensorCores on v7x get work.
    Bt = max(1, min(8, B // 2))
    steps = pl.cdiv(B, Bt)
    B_pad = steps * Bt

    S1 = (Bt - 1) * IMG + R2                      # conv1 rows computed / step
    S2 = (Bt - 1) * IMG + R3                      # conv2 rows computed / step

    # glue: NCHW -> flat [rows, C] with kw-shifted copies packed along channels
    x = x_nchw
    if B_pad != B:
        x = jnp.concatenate(
            [x, jnp.zeros((B_pad - B,) + x.shape[1:], x.dtype)], axis=0)
    x2d = jnp.transpose(x, (0, 2, 3, 1)).reshape(B_pad, IMG, C0)
    xs1 = jnp.pad(x2d[:, 1:, :], ((0, 0), (0, 1), (0, 0)))
    xs2 = jnp.pad(x2d[:, 2:, :], ((0, 0), (0, 2), (0, 0)))
    x_cat = jnp.concatenate([x2d, xs1, xs2], axis=-1)
    x_cat = x_cat.reshape(B_pad * IMG, 3 * C0).astype(jnp.float32)

    kernel = _make_kernel(W0=W0, IMG=IMG, Bt=Bt, S1=S1, S2=S2,
                          C3=C3, fc_rows=fc_rows)

    grid_spec = pltpu.PrefetchScalarGridSpec(
        num_scalar_prefetch=0,
        grid=(steps,),
        in_specs=[
            pl.BlockSpec((Bt * IMG, 3 * C0), lambda s: (s, 0)),    # x (Bt images)
            pl.BlockSpec((3, 3 * C0, C1), lambda s: (0, 0, 0)),    # w1 (kw packed)
            pl.BlockSpec((1, C1), lambda s: (0, 0)),               # b1
            pl.BlockSpec((9, C1, C2), lambda s: (0, 0, 0)),        # w2
            pl.BlockSpec((1, C2), lambda s: (0, 0)),               # b2
            pl.BlockSpec((9, C2, C3), lambda s: (0, 0, 0)),        # w3
            pl.BlockSpec((1, C3), lambda s: (0, 0)),               # b3
            pl.BlockSpec((H3 * W3 * C3, NC), lambda s: (0, 0)),    # wfc (permuted)
            pl.BlockSpec((1, NC), lambda s: (0, 0)),               # bfc
        ],
        out_specs=pl.BlockSpec((None, Bt, NC), lambda s: (s, 0, 0)),
        scratch_shapes=[
            pltpu.VMEM((_round8(S1), C1), jnp.float32),            # conv1 acts
            pltpu.VMEM((_round8(S2), C2), jnp.float32),            # conv2 acts
            pltpu.VMEM((_round8(9 * H3 * W3 * Bt), C2), jnp.float32),  # conv3 gather
        ],
    )

    out = pl.pallas_call(
        kernel,
        out_shape=jax.ShapeDtypeStruct((steps, Bt, NC), jnp.float32),
        grid_spec=grid_spec,
        compiler_params=pltpu.CompilerParams(
            dimension_semantics=("parallel",)),    # steps split across TCs (v7x)
    )(x_cat, prepared["w1p"], prepared["b1"], prepared["w2"], prepared["b2"],
      prepared["w3"], prepared["b3"], prepared["wfc"], prepared["bfc"])

    return out.reshape(B_pad, NC)[:B]


# ----------------------------------------------------------------------------
# Parameter init (mirrors the PyTorch module's shapes)
# ----------------------------------------------------------------------------
def init_params(key, input_shape, num_classes):
    Cin, H, W = input_shape
    ks = jax.random.split(key, 8)
    scale = 0.05
    w1 = scale * jax.random.normal(ks[0], (32, Cin, 3, 3), jnp.float32)
    b1 = scale * jax.random.normal(ks[1], (32,), jnp.float32)
    w2 = scale * jax.random.normal(ks[2], (64, 32, 3, 3), jnp.float32)
    b2 = scale * jax.random.normal(ks[3], (64,), jnp.float32)
    w3 = scale * jax.random.normal(ks[4], (128, 64, 3, 3), jnp.float32)
    b3 = scale * jax.random.normal(ks[5], (128,), jnp.float32)
    h1, w1s = H - 2, W - 2
    h2, w2s = (h1 - 3) // 2 + 1, (w1s - 3) // 2 + 1
    h3, w3s = (h2 - 3) // 2 + 1, (w2s - 3) // 2 + 1
    flat = 128 * h3 * w3s
    wfc = scale * jax.random.normal(ks[6], (num_classes, flat), jnp.float32)
    bfc = scale * jax.random.normal(ks[7], (num_classes,), jnp.float32)
    return dict(w1=w1, b1=b1, w2=w2, b2=b2, w3=w3, b3=b3, wfc=wfc, bfc=bfc)


# ----------------------------------------------------------------------------
# Pure-JAX reference (silent correctness check)
# ----------------------------------------------------------------------------
def reference_forward(x, p):
    def conv(x, w, s):
        return jax.lax.conv_general_dilated(
            x, w, (s, s), "VALID", dimension_numbers=("NCHW", "OIHW", "NCHW"))
    x = jax.nn.relu(conv(x, p["w1"], 1) + p["b1"][None, :, None, None])
    x = jax.nn.relu(conv(x, p["w2"], 2) + p["b2"][None, :, None, None])
    x = jax.nn.relu(conv(x, p["w3"], 2) + p["b3"][None, :, None, None])
    flat = x.reshape(x.shape[0], -1)
    logits = flat @ p["wfc"].T + p["bfc"]
    return jax.nn.softmax(logits, axis=1)


if __name__ == "__main__":
    input_shape = (4, 16, 16)   # (C, H, W)
    num_classes = 10

    key = jax.random.PRNGKey(0)
    k_x, k_p = jax.random.split(key)
    params = init_params(k_p, input_shape, num_classes)
    prepared = prepare_params(params)          # one-time weight repack

    # primary check: batch=2 -> Bt=1 per step, 2 grid steps (both TCs on v7x)
    x = jax.random.normal(k_x, (2,) + input_shape, jnp.float32)
    out = jax.block_until_ready(model1_forward(x, prepared))
    ref = jax.block_until_ready(reference_forward(x, params))
    np.testing.assert_allclose(np.asarray(out), np.asarray(ref),
                               rtol=5e-4, atol=5e-5)
    assert out.shape == (2, num_classes)

    # secondary check: batch=8 exercises the multi-image-per-step (Bt=4) path
    x8 = jax.random.normal(jax.random.PRNGKey(1), (8,) + input_shape, jnp.float32)
    out8 = jax.block_until_ready(model1_forward(x8, prepared))
    ref8 = jax.block_until_ready(reference_forward(x8, params))
    np.testing.assert_allclose(np.asarray(out8), np.asarray(ref8),
                               rtol=5e-4, atol=5e-5)

    print("KERNEL_OK")
</pallas_src>

<mosaic_0001>
module attributes {stable_mosaic.version = 11 : i64} {
  func.func @kernel(%arg0: i32, %arg1: memref<256x12xf32, #tpu.memory_space<vmem>>, %arg2: memref<3x12x32xf32, #tpu.memory_space<vmem>>, %arg3: memref<1x32xf32, #tpu.memory_space<vmem>>, %arg4: memref<9x32x64xf32, #tpu.memory_space<vmem>>, %arg5: memref<1x64xf32, #tpu.memory_space<vmem>>, %arg6: memref<9x64x128xf32, #tpu.memory_space<vmem>>, %arg7: memref<1x128xf32, #tpu.memory_space<vmem>>, %arg8: memref<512x10xf32, #tpu.memory_space<vmem>>, %arg9: memref<1x10xf32, #tpu.memory_space<vmem>>, %arg10: memref<1x1x10xf32, #tpu.memory_space<vmem>>, %arg11: memref<176x32xf32, #tpu.memory_space<vmem>>, %arg12: memref<144x64xf32, #tpu.memory_space<vmem>>, %arg13: memref<40x64xf32, #tpu.memory_space<vmem>>) attributes {dimension_semantics = [#tpu.dimension_semantics<parallel>], iteration_bounds = array<i64: 2>, scalar_prefetch = 0 : i64, scratch_operands = 3 : i64, tpu.core_type = #tpu.core_type<tc>, window_params = [{transform_indices = @transform_0, window_bounds = array<i64: 256, 12>}, {pipeline_mode = #tpu.pipeline_mode<synchronous>, transform_indices = @transform_1, window_bounds = array<i64: 3, 12, 32>}, {pipeline_mode = #tpu.pipeline_mode<synchronous>, transform_indices = @transform_2, window_bounds = array<i64: 1, 32>}, {pipeline_mode = #tpu.pipeline_mode<synchronous>, transform_indices = @transform_3, window_bounds = array<i64: 9, 32, 64>}, {pipeline_mode = #tpu.pipeline_mode<synchronous>, transform_indices = @transform_4, window_bounds = array<i64: 1, 64>}, {pipeline_mode = #tpu.pipeline_mode<synchronous>, transform_indices = @transform_5, window_bounds = array<i64: 9, 64, 128>}, {pipeline_mode = #tpu.pipeline_mode<synchronous>, transform_indices = @transform_6, window_bounds = array<i64: 1, 128>}, {pipeline_mode = #tpu.pipeline_mode<synchronous>, transform_indices = @transform_7, window_bounds = array<i64: 512, 10>}, {pipeline_mode = #tpu.pipeline_mode<synchronous>, transform_indices = @transform_8, window_bounds = array<i64: 1, 10>}, {transform_indices = @transform_9, window_bounds = array<i64: 1, 1, 10>}]} {
    %c0 = arith.constant 0 : index
    %c0_0 = arith.constant 0 : index
    %0 = vector.load %arg1[%c0, %c0_0] : memref<256x12xf32, #tpu.memory_space<vmem>>, vector<171x12xf32>
    %c0_1 = arith.constant 0 : index
    %c0_2 = arith.constant 0 : index
    %c0_3 = arith.constant 0 : index
    %1 = vector.load %arg2[%c0_1, %c0_2, %c0_3] : memref<3x12x32xf32, #tpu.memory_space<vmem>>, vector<1x12x32xf32>
    %2 = vector.shape_cast %1 : vector<1x12x32xf32> to vector<12x32xf32>
    %cst = arith.constant dense<0.000000e+00> : vector<171x32xf32>
    %3 = tpu.matmul %0, %2, %cst {dimension_numbers = #tpu.dot_dimension_numbers<[1], [0], [0], [1], [0, 0, 1, 1], [], []>} : vector<171x12xf32>, vector<12x32xf32>, vector<171x32xf32> -> vector<171x32xf32>
    %c16 = arith.constant 16 : index
    %c0_4 = arith.constant 0 : index
    %4 = vector.load %arg1[%c16, %c0_4] : memref<256x12xf32, #tpu.memory_space<vmem>>, vector<171x12xf32>
    %c1 = arith.constant 1 : index
    %c0_5 = arith.constant 0 : index
    %c0_6 = arith.constant 0 : index
    %5 = vector.load %arg2[%c1, %c0_5, %c0_6] : memref<3x12x32xf32, #tpu.memory_space<vmem>>, vector<1x12x32xf32>
    %6 = vector.shape_cast %5 : vector<1x12x32xf32> to vector<12x32xf32>
    %cst_7 = arith.constant dense<0.000000e+00> : vector<171x32xf32>
    %7 = tpu.matmul %4, %6, %cst_7 {dimension_numbers = #tpu.dot_dimension_numbers<[1], [0], [0], [1], [0, 0, 1, 1], [], []>} : vector<171x12xf32>, vector<12x32xf32>, vector<171x32xf32> -> vector<171x32xf32>
    %8 = arith.addf %3, %7 : vector<171x32xf32>
    %c32 = arith.constant 32 : index
    %c0_8 = arith.constant 0 : index
    %9 = vector.load %arg1[%c32, %c0_8] : memref<256x12xf32, #tpu.memory_space<vmem>>, vector<171x12xf32>
    %c2 = arith.constant 2 : index
    %c0_9 = arith.constant 0 : index
    %c0_10 = arith.constant 0 : index
    %10 = vector.load %arg2[%c2, %c0_9, %c0_10] : memref<3x12x32xf32, #tpu.memory_space<vmem>>, vector<1x12x32xf32>
    %11 = vector.shape_cast %10 : vector<1x12x32xf32> to vector<12x32xf32>
    %cst_11 = arith.constant dense<0.000000e+00> : vector<171x32xf32>
    %12 = tpu.matmul %9, %11, %cst_11 {dimension_numbers = #tpu.dot_dimension_numbers<[1], [0], [0], [1], [0, 0, 1, 1], [], []>} : vector<171x12xf32>, vector<12x32xf32>, vector<171x32xf32> -> vector<171x32xf32>
    %13 = arith.addf %8, %12 : vector<171x32xf32>
    %c0_12 = arith.constant 0 : index
    %c0_13 = arith.constant 0 : index
    %14 = vector.load %arg3[%c0_12, %c0_13] : memref<1x32xf32, #tpu.memory_space<vmem>>, vector<1x32xf32>
    %15 = vector.broadcast %14 : vector<1x32xf32> to vector<171x32xf32>
    %16 = arith.addf %13, %15 : vector<171x32xf32>
    %cst_14 = arith.constant 0.000000e+00 : f32
    %17 = vector.broadcast %cst_14 : f32 to vector<171x32xf32>
    %18 = arith.maximumf %16, %17 : vector<171x32xf32>
    %c0_15 = arith.constant 0 : index
    %c0_16 = arith.constant 0 : index
    %19 = vector.load %arg11[%c0_15, %c0_16] : memref<176x32xf32, #tpu.memory_space<vmem>>, vector<171x32xf32>
    tpu.vector_store %arg11[%c0_15, %c0_16], %18 {strides = array<i32>} : memref<176x32xf32, #tpu.memory_space<vmem>>, vector<171x32xf32>,
    %c0_17 = arith.constant 0 : index
    %c0_18 = arith.constant 0 : index
    %20 = vector.load %arg11[%c0_17, %c0_18] : memref<176x32xf32, #tpu.memory_space<vmem>>, vector<137x32xf32>
    %c0_19 = arith.constant 0 : index
    %c0_20 = arith.constant 0 : index
    %c0_21 = arith.constant 0 : index
    %21 = vector.load %arg4[%c0_19, %c0_20, %c0_21] : memref<9x32x64xf32, #tpu.memory_space<vmem>>, vector<1x32x64xf32>
    %22 = vector.shape_cast %21 : vector<1x32x64xf32> to vector<32x64xf32>
    %cst_22 = arith.constant dense<0.000000e+00> : vector<137x64xf32>
    %23 = tpu.matmul %20, %22, %cst_22 {dimension_numbers = #tpu.dot_dimension_numbers<[1], [0], [0], [1], [0, 0, 1, 1], [], []>} : vector<137x32xf32>, vector<32x64xf32>, vector<137x64xf32> -> vector<137x64xf32>
    %c1_23 = arith.constant 1 : index
    %c0_24 = arith.constant 0 : index
    %24 = vector.load %arg11[%c1_23, %c0_24] : memref<176x32xf32, #tpu.memory_space<vmem>>, vector<137x32xf32>
    %c1_25 = arith.constant 1 : index
    %c0_26 = arith.constant 0 : index
    %c0_27 = arith.constant 0 : index
    %25 = vector.load %arg4[%c1_25, %c0_26, %c0_27] : memref<9x32x64xf32, #tpu.memory_space<vmem>>, vector<1x32x64xf32>
    %26 = vector.shape_cast %25 : vector<1x32x64xf32> to vector<32x64xf32>
    %cst_28 = arith.constant dense<0.000000e+00> : vector<137x64xf32>
    %27 = tpu.matmul %24, %26, %cst_28 {dimension_numbers = #tpu.dot_dimension_numbers<[1], [0], [0], [1], [0, 0, 1, 1], [], []>} : vector<137x32xf32>, vector<32x64xf32>, vector<137x64xf32> -> vector<137x64xf32>
    %28 = arith.addf %23, %27 : vector<137x64xf32>
    %c2_29 = arith.constant 2 : index
    %c0_30 = arith.constant 0 : index
    %29 = vector.load %arg11[%c2_29, %c0_30] : memref<176x32xf32, #tpu.memory_space<vmem>>, vector<137x32xf32>
    %c2_31 = arith.constant 2 : index
    %c0_32 = arith.constant 0 : index
    %c0_33 = arith.constant 0 : index
    %30 = vector.load %arg4[%c2_31, %c0_32, %c0_33] : memref<9x32x64xf32, #tpu.memory_space<vmem>>, vector<1x32x64xf32>
    %31 = vector.shape_cast %30 : vector<1x32x64xf32> to vector<32x64xf32>
    %cst_34 = arith.constant dense<0.000000e+00> : vector<137x64xf32>
    %32 = tpu.matmul %29, %31, %cst_34 {dimension_numbers = #tpu.dot_dimension_numbers<[1], [0], [0], [1], [0, 0, 1, 1], [], []>} : vector<137x32xf32>, vector<32x64xf32>, vector<137x64xf32> -> vector<137x64xf32>
    %33 = arith.addf %28, %32 : vector<137x64xf32>
    %c16_35 = arith.constant 16 : index
    %c0_36 = arith.constant 0 : index
    %34 = vector.load %arg11[%c16_35, %c0_36] : memref<176x32xf32, #tpu.memory_space<vmem>>, vector<137x32xf32>
    %c3 = arith.constant 3 : index
    %c0_37 = arith.constant 0 : index
    %c0_38 = arith.constant 0 : index
    %35 = vector.load %arg4[%c3, %c0_37, %c0_38] : memref<9x32x64xf32, #tpu.memory_space<vmem>>, vector<1x32x64xf32>
    %36 = vector.shape_cast %35 : vector<1x32x64xf32> to vector<32x64xf32>
    %cst_39 = arith.constant dense<0.000000e+00> : vector<137x64xf32>
    %37 = tpu.matmul %34, %36, %cst_39 {dimension_numbers = #tpu.dot_dimension_numbers<[1], [0], [0], [1], [0, 0, 1, 1], [], []>} : vector<137x32xf32>, vector<32x64xf32>, vector<137x64xf32> -> vector<137x64xf32>
    %38 = arith.addf %33, %37 : vector<137x64xf32>
    %c17 = arith.constant 17 : index
    %c0_40 = arith.constant 0 : index
    %39 = vector.load %arg11[%c17, %c0_40] : memref<176x32xf32, #tpu.memory_space<vmem>>, vector<137x32xf32>
    %c4 = arith.constant 4 : index
    %c0_41 = arith.constant 0 : index
    %c0_42 = arith.constant 0 : index
    %40 = vector.load %arg4[%c4, %c0_41, %c0_42] : memref<9x32x64xf32, #tpu.memory_space<vmem>>, vector<1x32x64xf32>
    %41 = vector.shape_cast %40 : vector<1x32x64xf32> to vector<32x64xf32>
    %cst_43 = arith.constant dense<0.000000e+00> : vector<137x64xf32>
    %42 = tpu.matmul %39, %41, %cst_43 {dimension_numbers = #tpu.dot_dimension_numbers<[1], [0], [0], [1], [0, 0, 1, 1], [], []>} : vector<137x32xf32>, vector<32x64xf32>, vector<137x64xf32> -> vector<137x64xf32>
    %43 = arith.addf %38, %42 : vector<137x64xf32>
    %c18 = arith.constant 18 : index
    %c0_44 = arith.constant 0 : index
    %44 = vector.load %arg11[%c18, %c0_44] : memref<176x32xf32, #tpu.memory_space<vmem>>, vector<137x32xf32>
    %c5 = arith.constant 5 : index
    %c0_45 = arith.constant 0 : index
    %c0_46 = arith.constant 0 : index
    %45 = vector.load %arg4[%c5, %c0_45, %c0_46] : memref<9x32x64xf32, #tpu.memory_space<vmem>>, vector<1x32x64xf32>
    %46 = vector.shape_cast %45 : vector<1x32x64xf32> to vector<32x64xf32>
    %cst_47 = arith.constant dense<0.000000e+00> : vector<137x64xf32>
    %47 = tpu.matmul %44, %46, %cst_47 {dimension_numbers = #tpu.dot_dimension_numbers<[1], [0], [0], [1], [0, 0, 1, 1], [], []>} : vector<137x32xf32>, vector<32x64xf32>, vector<137x64xf32> -> vector<137x64xf32>
    %48 = arith.addf %43, %47 : vector<137x64xf32>
    %c32_48 = arith.constant 32 : index
    %c0_49 = arith.constant 0 : index
    %49 = vector.load %arg11[%c32_48, %c0_49] : memref<176x32xf32, #tpu.memory_space<vmem>>, vector<137x32xf32>
    %c6 = arith.constant 6 : index
    %c0_50 = arith.constant 0 : index
    %c0_51 = arith.constant 0 : index
    %50 = vector.load %arg4[%c6, %c0_50, %c0_51] : memref<9x32x64xf32, #tpu.memory_space<vmem>>, vector<1x32x64xf32>
    %51 = vector.shape_cast %50 : vector<1x32x64xf32> to vector<32x64xf32>
    %cst_52 = arith.constant dense<0.000000e+00> : vector<137x64xf32>
    %52 = tpu.matmul %49, %51, %cst_52 {dimension_numbers = #tpu.dot_dimension_numbers<[1], [0], [0], [1], [0, 0, 1, 1], [], []>} : vector<137x32xf32>, vector<32x64xf32>, vector<137x64xf32> -> vector<137x64xf32>
    %53 = arith.addf %48, %52 : vector<137x64xf32>
    %c33 = arith.constant 33 : index
    %c0_53 = arith.constant 0 : index
    %54 = vector.load %arg11[%c33, %c0_53] : memref<176x32xf32, #tpu.memory_space<vmem>>, vector<137x32xf32>
    %c7 = arith.constant 7 : index
    %c0_54 = arith.constant 0 : index
    %c0_55 = arith.constant 0 : index
    %55 = vector.load %arg4[%c7, %c0_54, %c0_55] : memref<9x32x64xf32, #tpu.memory_space<vmem>>, vector<1x32x64xf32>
    %56 = vector.shape_cast %55 : vector<1x32x64xf32> to vector<32x64xf32>
    %cst_56 = arith.constant dense<0.000000e+00> : vector<137x64xf32>
    %57 = tpu.matmul %54, %56, %cst_56 {dimension_numbers = #tpu.dot_dimension_numbers<[1], [0], [0], [1], [0, 0, 1, 1], [], []>} : vector<137x32xf32>, vector<32x64xf32>, vector<137x64xf32> -> vector<137x64xf32>
    %58 = arith.addf %53, %57 : vector<137x64xf32>
    %c34 = arith.constant 34 : index
    %c0_57 = arith.constant 0 : index
    %59 = vector.load %arg11[%c34, %c0_57] : memref<176x32xf32, #tpu.memory_space<vmem>>, vector<137x32xf32>
    %c8 = arith.constant 8 : index
    %c0_58 = arith.constant 0 : index
    %c0_59 = arith.constant 0 : index
    %60 = vector.load %arg4[%c8, %c0_58, %c0_59] : memref<9x32x64xf32, #tpu.memory_space<vmem>>, vector<1x32x64xf32>
    %61 = vector.shape_cast %60 : vector<1x32x64xf32> to vector<32x64xf32>
    %cst_60 = arith.constant dense<0.000000e+00> : vector<137x64xf32>
    %62 = tpu.matmul %59, %61, %cst_60 {dimension_numbers = #tpu.dot_dimension_numbers<[1], [0], [0], [1], [0, 0, 1, 1], [], []>} : vector<137x32xf32>, vector<32x64xf32>, vector<137x64xf32> -> vector<137x64xf32>
    %63 = arith.addf %58, %62 : vector<137x64xf32>
    %c0_61 = arith.constant 0 : index
    %c0_62 = arith.constant 0 : index
    %64 = vector.load %arg5[%c0_61, %c0_62] : memref<1x64xf32, #tpu.memory_space<vmem>>, vector<1x64xf32>
    %65 = vector.broadcast %64 : vector<1x64xf32> to vector<137x64xf32>
    %66 = arith.addf %63, %65 : vector<137x64xf32>
    %cst_63 = arith.constant 0.000000e+00 : f32
    %67 = vector.broadcast %cst_63 : f32 to vector<137x64xf32>
    %68 = arith.maximumf %66, %67 : vector<137x64xf32>
    %c0_64 = arith.constant 0 : index
    %c0_65 = arith.constant 0 : index
    %69 = vector.load %arg12[%c0_64, %c0_65] : memref<144x64xf32, #tpu.memory_space<vmem>>, vector<137x64xf32>
    tpu.vector_store %arg12[%c0_64, %c0_65], %68 {strides = array<i32>} : memref<144x64xf32, #tpu.memory_space<vmem>>, vector<137x64xf32>,
    %c0_66 = arith.constant 0 : index
    %c0_67 = arith.constant 0 : index
    %70 = vector.load %arg12[%c0_66, %c0_67] : memref<144x64xf32, #tpu.memory_space<vmem>>, vector<1x64xf32>
    %c0_68 = arith.constant 0 : index
    %c0_69 = arith.constant 0 : index
    %71 = vector.load %arg13[%c0_68, %c0_69] : memref<40x64xf32, #tpu.memory_space<vmem>>, vector<1x64xf32>
    tpu.vector_store %arg13[%c0_68, %c0_69], %70 {strides = array<i32>} : memref<40x64xf32, #tpu.memory_space<vmem>>, vector<1x64xf32>,
    %c4_70 = arith.constant 4 : index
    %c0_71 = arith.constant 0 : index
    %72 = vector.load %arg12[%c4_70, %c0_71] : memref<144x64xf32, #tpu.memory_space<vmem>>, vector<1x64xf32>
    %c1_72 = arith.constant 1 : index
    %c0_73 = arith.constant 0 : index
    %73 = vector.load %arg13[%c1_72, %c0_73] : memref<40x64xf32, #tpu.memory_space<vmem>>, vector<1x64xf32>
    tpu.vector_store %arg13[%c1_72, %c0_73], %72 {strides = array<i32>} : memref<40x64xf32, #tpu.memory_space<vmem>>, vector<1x64xf32>,
    %c64 = arith.constant 64 : index
    %c0_74 = arith.constant 0 : index
    %74 = vector.load %arg12[%c64, %c0_74] : memref<144x64xf32, #tpu.memory_space<vmem>>, vector<1x64xf32>
    %c2_75 = arith.constant 2 : index
    %c0_76 = arith.constant 0 : index
    %75 = vector.load %arg13[%c2_75, %c0_76] : memref<40x64xf32, #tpu.memory_space<vmem>>, vector<1x64xf32>
    tpu.vector_store %arg13[%c2_75, %c0_76], %74 {strides = array<i32>} : memref<40x64xf32, #tpu.memory_space<vmem>>, vector<1x64xf32>,
    %c68 = arith.constant 68 : index
    %c0_77 = arith.constant 0 : index
    %76 = vector.load %arg12[%c68, %c0_77] : memref<144x64xf32, #tpu.memory_space<vmem>>, vector<1x64xf32>
    %c3_78 = arith.constant 3 : index
    %c0_79 = arith.constant 0 : index
    %77 = vector.load %arg13[%c3_78, %c0_79] : memref<40x64xf32, #tpu.memory_space<vmem>>, vector<1x64xf32>
    tpu.vector_store %arg13[%c3_78, %c0_79], %76 {strides = array<i32>} : memref<40x64xf32, #tpu.memory_space<vmem>>, vector<1x64xf32>,
    %c2_80 = arith.constant 2 : index
    %c0_81 = arith.constant 0 : index
    %78 = vector.load %arg12[%c2_80, %c0_81] : memref<144x64xf32, #tpu.memory_space<vmem>>, vector<1x64xf32>
    %c4_82 = arith.constant 4 : index
    %c0_83 = arith.constant 0 : index
    %79 = vector.load %arg13[%c4_82, %c0_83] : memref<40x64xf32, #tpu.memory_space<vmem>>, vector<1x64xf32>
    tpu.vector_store %arg13[%c4_82, %c0_83], %78 {strides = array<i32>} : memref<40x64xf32, #tpu.memory_space<vmem>>, vector<1x64xf32>,
    %c6_84 = arith.constant 6 : index
    %c0_85 = arith.constant 0 : index
    %80 = vector.load %arg12[%c6_84, %c0_85] : memref<144x64xf32, #tpu.memory_space<vmem>>, vector<1x64xf32>
    %c5_86 = arith.constant 5 : index
    %c0_87 = arith.constant 0 : index
    %81 = vector.load %arg13[%c5_86, %c0_87] : memref<40x64xf32, #tpu.memory_space<vmem>>, vector<1x64xf32>
    tpu.vector_store %arg13[%c5_86, %c0_87], %80 {strides = array<i32>} : memref<40x64xf32, #tpu.memory_space<vmem>>, vector<1x64xf32>,
    %c66 = arith.constant 66 : index
    %c0_88 = arith.constant 0 : index
    %82 = vector.load %arg12[%c66, %c0_88] : memref<144x64xf32, #tpu.memory_space<vmem>>, vector<1x64xf32>
    %c6_89 = arith.constant 6 : index
    %c0_90 = arith.constant 0 : index
    %83 = vector.load %arg13[%c6_89, %c0_90] : memref<40x64xf32, #tpu.memory_space<vmem>>, vector<1x64xf32>
    tpu.vector_store %arg13[%c6_89, %c0_90], %82 {strides = array<i32>} : memref<40x64xf32, #tpu.memory_space<vmem>>, vector<1x64xf32>,
    %c70 = arith.constant 70 : index
    %c0_91 = arith.constant 0 : index
    %84 = vector.load %arg12[%c70, %c0_91] : memref<144x64xf32, #tpu.memory_space<vmem>>, vector<1x64xf32>
    %c7_92 = arith.constant 7 : index
    %c0_93 = arith.constant 0 : index
    %85 = vector.load %arg13[%c7_92, %c0_93] : memref<40x64xf32, #tpu.memory_space<vmem>>, vector<1x64xf32>
    tpu.vector_store %arg13[%c7_92, %c0_93], %84 {strides = array<i32>} : memref<40x64xf32, #tpu.memory_space<vmem>>, vector<1x64xf32>,
    %c4_94 = arith.constant 4 : index
    %c0_95 = arith.constant 0 : index
    %86 = vector.load %arg12[%c4_94, %c0_95] : memref<144x64xf32, #tpu.memory_space<vmem>>, vector<1x64xf32>
    %c8_96 = arith.constant 8 : index
    %c0_97 = arith.constant 0 : index
    %87 = vector.load %arg13[%c8_96, %c0_97] : memref<40x64xf32, #tpu.memory_space<vmem>>, vector<1x64xf32>
    tpu.vector_store %arg13[%c8_96, %c0_97], %86 {strides = array<i32>} : memref<40x64xf32, #tpu.memory_space<vmem>>, vector<1x64xf32>,
    %c8_98 = arith.constant 8 : index
    %c0_99 = arith.constant 0 : index
    %88 = vector.load %arg12[%c8_98, %c0_99] : memref<144x64xf32, #tpu.memory_space<vmem>>, vector<1x64xf32>
    %c9 = arith.constant 9 : index
    %c0_100 = arith.constant 0 : index
    %89 = vector.load %arg13[%c9, %c0_100] : memref<40x64xf32, #tpu.memory_space<vmem>>, vector<1x64xf32>
    tpu.vector_store %arg13[%c9, %c0_100], %88 {strides = array<i32>} : memref<40x64xf32, #tpu.memory_space<vmem>>, vector<1x64xf32>,
    %c68_101 = arith.constant 68 : index
    %c0_102 = arith.constant 0 : index
    %90 = vector.load %arg12[%c68_101, %c0_102] : memref<144x64xf32, #tpu.memory_space<vmem>>, vector<1x64xf32>
    %c10 = arith.constant 10 : index
    %c0_103 = arith.constant 0 : index
    %91 = vector.load %arg13[%c10, %c0_103] : memref<40x64xf32, #tpu.memory_space<vmem>>, vector<1x64xf32>
    tpu.vector_store %arg13[%c10, %c0_103], %90 {strides = array<i32>} : memref<40x64xf32, #tpu.memory_space<vmem>>, vector<1x64xf32>,
    %c72 = arith.constant 72 : index
    %c0_104 = arith.constant 0 : index
    %92 = vector.load %arg12[%c72, %c0_104] : memref<144x64xf32, #tpu.memory_space<vmem>>, vector<1x64xf32>
    %c11 = arith.constant 11 : index
    %c0_105 = arith.constant 0 : index
    %93 = vector.load %arg13[%c11, %c0_105] : memref<40x64xf32, #tpu.memory_space<vmem>>, vector<1x64xf32>
    tpu.vector_store %arg13[%c11, %c0_105], %92 {strides = array<i32>} : memref<40x64xf32, #tpu.memory_space<vmem>>, vector<1x64xf32>,
    %c32_106 = arith.constant 32 : index
    %c0_107 = arith.constant 0 : index
    %94 = vector.load %arg12[%c32_106, %c0_107] : memref<144x64xf32, #tpu.memory_space<vmem>>, vector<1x64xf32>
    %c12 = arith.constant 12 : index
    %c0_108 = arith.constant 0 : index
    %95 = vector.load %arg13[%c12, %c0_108] : memref<40x64xf32, #tpu.memory_space<vmem>>, vector<1x64xf32>
    tpu.vector_store %arg13[%c12, %c0_108], %94 {strides = array<i32>} : memref<40x64xf32, #tpu.memory_space<vmem>>, vector<1x64xf32>,
    %c36 = arith.constant 36 : index
    %c0_109 = arith.constant 0 : index
    %96 = vector.load %arg12[%c36, %c0_109] : memref<144x64xf32, #tpu.memory_space<vmem>>, vector<1x64xf32>
    %c13 = arith.constant 13 : index
    %c0_110 = arith.constant 0 : index
    %97 = vector.load %arg13[%c13, %c0_110] : memref<40x64xf32, #tpu.memory_space<vmem>>, vector<1x64xf32>
    tpu.vector_store %arg13[%c13, %c0_110], %96 {strides = array<i32>} : memref<40x64xf32, #tpu.memory_space<vmem>>, vector<1x64xf32>,
    %c96 = arith.constant 96 : index
    %c0_111 = arith.constant 0 : index
    %98 = vector.load %arg12[%c96, %c0_111] : memref<144x64xf32, #tpu.memory_space<vmem>>, vector<1x64xf32>
    %c14 = arith.constant 14 : index
    %c0_112 = arith.constant 0 : index
    %99 = vector.load %arg13[%c14, %c0_112] : memref<40x64xf32, #tpu.memory_space<vmem>>, vector<1x64xf32>
    tpu.vector_store %arg13[%c14, %c0_112], %98 {strides = array<i32>} : memref<40x64xf32, #tpu.memory_space<vmem>>, vector<1x64xf32>,
    %c100 = arith.constant 100 : index
    %c0_113 = arith.constant 0 : index
    %100 = vector.load %arg12[%c100, %c0_113] : memref<144x64xf32, #tpu.memory_space<vmem>>, vector<1x64xf32>
    %c15 = arith.constant 15 : index
    %c0_114 = arith.constant 0 : index
    %101 = vector.load %arg13[%c15, %c0_114] : memref<40x64xf32, #tpu.memory_space<vmem>>, vector<1x64xf32>
    tpu.vector_store %arg13[%c15, %c0_114], %100 {strides = array<i32>} : memref<40x64xf32, #tpu.memory_space<vmem>>, vector<1x64xf32>,
    %c34_115 = arith.constant 34 : index
    %c0_116 = arith.constant 0 : index
    %102 = vector.load %arg12[%c34_115, %c0_116] : memref<144x64xf32, #tpu.memory_space<vmem>>, vector<1x64xf32>
    %c16_117 = arith.constant 16 : index
    %c0_118 = arith.constant 0 : index
    %103 = vector.load %arg13[%c16_117, %c0_118] : memref<40x64xf32, #tpu.memory_space<vmem>>, vector<1x64xf32>
    tpu.vector_store %arg13[%c16_117, %c0_118], %102 {strides = array<i32>} : memref<40x64xf32, #tpu.memory_space<vmem>>, vector<1x64xf32>,
    %c38 = arith.constant 38 : index
    %c0_119 = arith.constant 0 : index
    %104 = vector.load %arg12[%c38, %c0_119] : memref<144x64xf32, #tpu.memory_space<vmem>>, vector<1x64xf32>
    %c17_120 = arith.constant 17 : index
    %c0_121 = arith.constant 0 : index
    %105 = vector.load %arg13[%c17_120, %c0_121] : memref<40x64xf32, #tpu.memory_space<vmem>>, vector<1x64xf32>
    tpu.vector_store %arg13[%c17_120, %c0_121], %104 {strides = array<i32>} : memref<40x64xf32, #tpu.memory_space<vmem>>, vector<1x64xf32>,
    %c98 = arith.constant 98 : index
    %c0_122 = arith.constant 0 : index
    %106 = vector.load %arg12[%c98, %c0_122] : memref<144x64xf32, #tpu.memory_space<vmem>>, vector<1x64xf32>
    %c18_123 = arith.constant 18 : index
    %c0_124 = arith.constant 0 : index
    %107 = vector.load %arg13[%c18_123, %c0_124] : memref<40x64xf32, #tpu.memory_space<vmem>>, vector<1x64xf32>
    tpu.vector_store %arg13[%c18_123, %c0_124], %106 {strides = array<i32>} : memref<40x64xf32, #tpu.memory_space<vmem>>, vector<1x64xf32>,
    %c102 = arith.constant 102 : index
    %c0_125 = arith.constant 0 : index
    %108 = vector.load %arg12[%c102, %c0_125] : memref<144x64xf32, #tpu.memory_space<vmem>>, vector<1x64xf32>
    %c19 = arith.constant 19 : index
    %c0_126 = arith.constant 0 : index
    %109 = vector.load %arg13[%c19, %c0_126] : memref<40x64xf32, #tpu.memory_space<vmem>>, vector<1x64xf32>
    tpu.vector_store %arg13[%c19, %c0_126], %108 {strides = array<i32>} : memref<40x64xf32, #tpu.memory_space<vmem>>, vector<1x64xf32>,
    %c36_127 = arith.constant 36 : index
    %c0_128 = arith.constant 0 : index
    %110 = vector.load %arg12[%c36_127, %c0_128] : memref<144x64xf32, #tpu.memory_space<vmem>>, vector<1x64xf32>
    %c20 = arith.constant 20 : index
    %c0_129 = arith.constant 0 : index
    %111 = vector.load %arg13[%c20, %c0_129] : memref<40x64xf32, #tpu.memory_space<vmem>>, vector<1x64xf32>
    tpu.vector_store %arg13[%c20, %c0_129], %110 {strides = array<i32>} : memref<40x64xf32, #tpu.memory_space<vmem>>, vector<1x64xf32>,
    %c40 = arith.constant 40 : index
    %c0_130 = arith.constant 0 : index
    %112 = vector.load %arg12[%c40, %c0_130] : memref<144x64xf32, #tpu.memory_space<vmem>>, vector<1x64xf32>
    %c21 = arith.constant 21 : index
    %c0_131 = arith.constant 0 : index
    %113 = vector.load %arg13[%c21, %c0_131] : memref<40x64xf32, #tpu.memory_space<vmem>>, vector<1x64xf32>
    tpu.vector_store %arg13[%c21, %c0_131], %112 {strides = array<i32>} : memref<40x64xf32, #tpu.memory_space<vmem>>, vector<1x64xf32>,
    %c100_132 = arith.constant 100 : index
    %c0_133 = arith.constant 0 : index
    %114 = vector.load %arg12[%c100_132, %c0_133] : memref<144x64xf32, #tpu.memory_space<vmem>>, vector<1x64xf32>
    %c22 = arith.constant 22 : index
    %c0_134 = arith.constant 0 : index
    %115 = vector.load %arg13[%c22, %c0_134] : memref<40x64xf32, #tpu.memory_space<vmem>>, vector<1x64xf32>
    tpu.vector_store %arg13[%c22, %c0_134], %114 {strides = array<i32>} : memref<40x64xf32, #tpu.memory_space<vmem>>, vector<1x64xf32>,
    %c104 = arith.constant 104 : index
    %c0_135 = arith.constant 0 : index
    %116 = vector.load %arg12[%c104, %c0_135] : memref<144x64xf32, #tpu.memory_space<vmem>>, vector<1x64xf32>
    %c23 = arith.constant 23 : index
    %c0_136 = arith.constant 0 : index
    %117 = vector.load %arg13[%c23, %c0_136] : memref<40x64xf32, #tpu.memory_space<vmem>>, vector<1x64xf32>
    tpu.vector_store %arg13[%c23, %c0_136], %116 {strides = array<i32>} : memref<40x64xf32, #tpu.memory_space<vmem>>, vector<1x64xf32>,
    %c64_137 = arith.constant 64 : index
    %c0_138 = arith.constant 0 : index
    %118 = vector.load %arg12[%c64_137, %c0_138] : memref<144x64xf32, #tpu.memory_space<vmem>>, vector<1x64xf32>
    %c24 = arith.constant 24 : index
    %c0_139 = arith.constant 0 : index
    %119 = vector.load %arg13[%c24, %c0_139] : memref<40x64xf32, #tpu.memory_space<vmem>>, vector<1x64xf32>
    tpu.vector_store %arg13[%c24, %c0_139], %118 {strides = array<i32>} : memref<40x64xf32, #tpu.memory_space<vmem>>, vector<1x64xf32>,
    %c68_140 = arith.constant 68 : index
    %c0_141 = arith.constant 0 : index
    %120 = vector.load %arg12[%c68_140, %c0_141] : memref<144x64xf32, #tpu.memory_space<vmem>>, vector<1x64xf32>
    %c25 = arith.constant 25 : index
    %c0_142 = arith.constant 0 : index
    %121 = vector.load %arg13[%c25, %c0_142] : memref<40x64xf32, #tpu.memory_space<vmem>>, vector<1x64xf32>
    tpu.vector_store %arg13[%c25, %c0_142], %120 {strides = array<i32>} : memref<40x64xf32, #tpu.memory_space<vmem>>, vector<1x64xf32>,
    %c128 = arith.constant 128 : index
    %c0_143 = arith.constant 0 : index
    %122 = vector.load %arg12[%c128, %c0_143] : memref<144x64xf32, #tpu.memory_space<vmem>>, vector<1x64xf32>
    %c26 = arith.constant 26 : index
    %c0_144 = arith.constant 0 : index
    %123 = vector.load %arg13[%c26, %c0_144] : memref<40x64xf32, #tpu.memory_space<vmem>>, vector<1x64xf32>
    tpu.vector_store %arg13[%c26, %c0_144], %122 {strides = array<i32>} : memref<40x64xf32, #tpu.memory_space<vmem>>, vector<1x64xf32>,
    %c132 = arith.constant 132 : index
    %c0_145 = arith.constant 0 : index
    %124 = vector.load %arg12[%c132, %c0_145] : memref<144x64xf32, #tpu.memory_space<vmem>>, vector<1x64xf32>
    %c27 = arith.constant 27 : index
    %c0_146 = arith.constant 0 : index
    %125 = vector.load %arg13[%c27, %c0_146] : memref<40x64xf32, #tpu.memory_space<vmem>>, vector<1x64xf32>
    tpu.vector_store %arg13[%c27, %c0_146], %124 {strides = array<i32>} : memref<40x64xf32, #tpu.memory_space<vmem>>, vector<1x64xf32>,
    %c66_147 = arith.constant 66 : index
    %c0_148 = arith.constant 0 : index
    %126 = vector.load %arg12[%c66_147, %c0_148] : memref<144x64xf32, #tpu.memory_space<vmem>>, vector<1x64xf32>
    %c28 = arith.constant 28 : index
    %c0_149 = arith.constant 0 : index
    %127 = vector.load %arg13[%c28, %c0_149] : memref<40x64xf32, #tpu.memory_space<vmem>>, vector<1x64xf32>
    tpu.vector_store %arg13[%c28, %c0_149], %126 {strides = array<i32>} : memref<40x64xf32, #tpu.memory_space<vmem>>, vector<1x64xf32>,
    %c70_150 = arith.constant 70 : index
    %c0_151 = arith.constant 0 : index
    %128 = vector.load %arg12[%c70_150, %c0_151] : memref<144x64xf32, #tpu.memory_space<vmem>>, vector<1x64xf32>
    %c29 = arith.constant 29 : index
    %c0_152 = arith.constant 0 : index
    %129 = vector.load %arg13[%c29, %c0_152] : memref<40x64xf32, #tpu.memory_space<vmem>>, vector<1x64xf32>
    tpu.vector_store %arg13[%c29, %c0_152], %128 {strides = array<i32>} : memref<40x64xf32, #tpu.memory_space<vmem>>, vector<1x64xf32>,
    %c130 = arith.constant 130 : index
    %c0_153 = arith.constant 0 : index
    %130 = vector.load %arg12[%c130, %c0_153] : memref<144x64xf32, #tpu.memory_space<vmem>>, vector<1x64xf32>
    %c30 = arith.constant 30 : index
    %c0_154 = arith.constant 0 : index
    %131 = vector.load %arg13[%c30, %c0_154] : memref<40x64xf32, #tpu.memory_space<vmem>>, vector<1x64xf32>
    tpu.vector_store %arg13[%c30, %c0_154], %130 {strides = array<i32>} : memref<40x64xf32, #tpu.memory_space<vmem>>, vector<1x64xf32>,
    %c134 = arith.constant 134 : index
    %c0_155 = arith.constant 0 : index
    %132 = vector.load %arg12[%c134, %c0_155] : memref<144x64xf32, #tpu.memory_space<vmem>>, vector<1x64xf32>
    %c31 = arith.constant 31 : index
    %c0_156 = arith.constant 0 : index
    %133 = vector.load %arg13[%c31, %c0_156] : memref<40x64xf32, #tpu.memory_space<vmem>>, vector<1x64xf32>
    tpu.vector_store %arg13[%c31, %c0_156], %132 {strides = array<i32>} : memref<40x64xf32, #tpu.memory_space<vmem>>, vector<1x64xf32>,
    %c68_157 = arith.constant 68 : index
    %c0_158 = arith.constant 0 : index
    %134 = vector.load %arg12[%c68_157, %c0_158] : memref<144x64xf32, #tpu.memory_space<vmem>>, vector<1x64xf32>
    %c32_159 = arith.constant 32 : index
    %c0_160 = arith.constant 0 : index
    %135 = vector.load %arg13[%c32_159, %c0_160] : memref<40x64xf32, #tpu.memory_space<vmem>>, vector<1x64xf32>
    tpu.vector_store %arg13[%c32_159, %c0_160], %134 {strides = array<i32>} : memref<40x64xf32, #tpu.memory_space<vmem>>, vector<1x64xf32>,
    %c72_161 = arith.constant 72 : index
    %c0_162 = arith.constant 0 : index
    %136 = vector.load %arg12[%c72_161, %c0_162] : memref<144x64xf32, #tpu.memory_space<vmem>>, vector<1x64xf32>
    %c33_163 = arith.constant 33 : index
    %c0_164 = arith.constant 0 : index
    %137 = vector.load %arg13[%c33_163, %c0_164] : memref<40x64xf32, #tpu.memory_space<vmem>>, vector<1x64xf32>
    tpu.vector_store %arg13[%c33_163, %c0_164], %136 {strides = array<i32>} : memref<40x64xf32, #tpu.memory_space<vmem>>, vector<1x64xf32>,
    %c132_165 = arith.constant 132 : index
    %c0_166 = arith.constant 0 : index
    %138 = vector.load %arg12[%c132_165, %c0_166] : memref<144x64xf32, #tpu.memory_space<vmem>>, vector<1x64xf32>
    %c34_167 = arith.constant 34 : index
    %c0_168 = arith.constant 0 : index
    %139 = vector.load %arg13[%c34_167, %c0_168] : memref<40x64xf32, #tpu.memory_space<vmem>>, vector<1x64xf32>
    tpu.vector_store %arg13[%c34_167, %c0_168], %138 {strides = array<i32>} : memref<40x64xf32, #tpu.memory_space<vmem>>, vector<1x64xf32>,
    %c136 = arith.constant 136 : index
    %c0_169 = arith.constant 0 : index
    %140 = vector.load %arg12[%c136, %c0_169] : memref<144x64xf32, #tpu.memory_space<vmem>>, vector<1x64xf32>
    %c35 = arith.constant 35 : index
    %c0_170 = arith.constant 0 : index
    %141 = vector.load %arg13[%c35, %c0_170] : memref<40x64xf32, #tpu.memory_space<vmem>>, vector<1x64xf32>
    tpu.vector_store %arg13[%c35, %c0_170], %140 {strides = array<i32>} : memref<40x64xf32, #tpu.memory_space<vmem>>, vector<1x64xf32>,
    %c0_171 = arith.constant 0 : index
    %c0_172 = arith.constant 0 : index
    %142 = vector.load %arg13[%c0_171, %c0_172] : memref<40x64xf32, #tpu.memory_space<vmem>>, vector<4x64xf32>
    %c0_173 = arith.constant 0 : index
    %c0_174 = arith.constant 0 : index
    %c0_175 = arith.constant 0 : index
    %143 = vector.load %arg6[%c0_173, %c0_174, %c0_175] : memref<9x64x128xf32, #tpu.memory_space<vmem>>, vector<1x64x128xf32>
    %144 = vector.shape_cast %143 : vector<1x64x128xf32> to vector<64x128xf32>
    %cst_176 = arith.constant dense<0.000000e+00> : vector<4x128xf32>
    %145 = tpu.matmul %142, %144, %cst_176 {dimension_numbers = #tpu.dot_dimension_numbers<[1], [0], [0], [1], [0, 0, 1, 1], [], []>} : vector<4x64xf32>, vector<64x128xf32>, vector<4x128xf32> -> vector<4x128xf32>
    %c4_177 = arith.constant 4 : index
    %c0_178 = arith.constant 0 : index
    %146 = vector.load %arg13[%c4_177, %c0_178] : memref<40x64xf32, #tpu.memory_space<vmem>>, vector<4x64xf32>
    %c1_179 = arith.constant 1 : index
    %c0_180 = arith.constant 0 : index
    %c0_181 = arith.constant 0 : index
    %147 = vector.load %arg6[%c1_179, %c0_180, %c0_181] : memref<9x64x128xf32, #tpu.memory_space<vmem>>, vector<1x64x128xf32>
    %148 = vector.shape_cast %147 : vector<1x64x128xf32> to vector<64x128xf32>
    %cst_182 = arith.constant dense<0.000000e+00> : vector<4x128xf32>
    %149 = tpu.matmul %146, %148, %cst_182 {dimension_numbers = #tpu.dot_dimension_numbers<[1], [0], [0], [1], [0, 0, 1, 1], [], []>} : vector<4x64xf32>, vector<64x128xf32>, vector<4x128xf32> -> vector<4x128xf32>
    %150 = arith.addf %145, %149 : vector<4x128xf32>
    %c8_183 = arith.constant 8 : index
    %c0_184 = arith.constant 0 : index
    %151 = vector.load %arg13[%c8_183, %c0_184] : memref<40x64xf32, #tpu.memory_space<vmem>>, vector<4x64xf32>
    %c2_185 = arith.constant 2 : index
    %c0_186 = arith.constant 0 : index
    %c0_187 = arith.constant 0 : index
    %152 = vector.load %arg6[%c2_185, %c0_186, %c0_187] : memref<9x64x128xf32, #tpu.memory_space<vmem>>, vector<1x64x128xf32>
    %153 = vector.shape_cast %152 : vector<1x64x128xf32> to vector<64x128xf32>
    %cst_188 = arith.constant dense<0.000000e+00> : vector<4x128xf32>
    %154 = tpu.matmul %151, %153, %cst_188 {dimension_numbers = #tpu.dot_dimension_numbers<[1], [0], [0], [1], [0, 0, 1, 1], [], []>} : vector<4x64xf32>, vector<64x128xf32>, vector<4x128xf32> -> vector<4x128xf32>
    %155 = arith.addf %150, %154 : vector<4x128xf32>
    %c12_189 = arith.constant 12 : index
    %c0_190 = arith.constant 0 : index
    %156 = vector.load %arg13[%c12_189, %c0_190] : memref<40x64xf32, #tpu.memory_space<vmem>>, vector<4x64xf32>
    %c3_191 = arith.constant 3 : index
    %c0_192 = arith.constant 0 : index
    %c0_193 = arith.constant 0 : index
    %157 = vector.load %arg6[%c3_191, %c0_192, %c0_193] : memref<9x64x128xf32, #tpu.memory_space<vmem>>, vector<1x64x128xf32>
    %158 = vector.shape_cast %157 : vector<1x64x128xf32> to vector<64x128xf32>
    %cst_194 = arith.constant dense<0.000000e+00> : vector<4x128xf32>
    %159 = tpu.matmul %156, %158, %cst_194 {dimension_numbers = #tpu.dot_dimension_numbers<[1], [0], [0], [1], [0, 0, 1, 1], [], []>} : vector<4x64xf32>, vector<64x128xf32>, vector<4x128xf32> -> vector<4x128xf32>
    %160 = arith.addf %155, %159 : vector<4x128xf32>
    %c16_195 = arith.constant 16 : index
    %c0_196 = arith.constant 0 : index
    %161 = vector.load %arg13[%c16_195, %c0_196] : memref<40x64xf32, #tpu.memory_space<vmem>>, vector<4x64xf32>
    %c4_197 = arith.constant 4 : index
    %c0_198 = arith.constant 0 : index
    %c0_199 = arith.constant 0 : index
    %162 = vector.load %arg6[%c4_197, %c0_198, %c0_199] : memref<9x64x128xf32, #tpu.memory_space<vmem>>, vector<1x64x128xf32>
    %163 = vector.shape_cast %162 : vector<1x64x128xf32> to vector<64x128xf32>
    %cst_200 = arith.constant dense<0.000000e+00> : vector<4x128xf32>
    %164 = tpu.matmul %161, %163, %cst_200 {dimension_numbers = #tpu.dot_dimension_numbers<[1], [0], [0], [1], [0, 0, 1, 1], [], []>} : vector<4x64xf32>, vector<64x128xf32>, vector<4x128xf32> -> vector<4x128xf32>
    %165 = arith.addf %160, %164 : vector<4x128xf32>
    %c20_201 = arith.constant 20 : index
    %c0_202 = arith.constant 0 : index
    %166 = vector.load %arg13[%c20_201, %c0_202] : memref<40x64xf32, #tpu.memory_space<vmem>>, vector<4x64xf32>
    %c5_203 = arith.constant 5 : index
    %c0_204 = arith.constant 0 : index
    %c0_205 = arith.constant 0 : index
    %167 = vector.load %arg6[%c5_203, %c0_204, %c0_205] : memref<9x64x128xf32, #tpu.memory_space<vmem>>, vector<1x64x128xf32>
    %168 = vector.shape_cast %167 : vector<1x64x128xf32> to vector<64x128xf32>
    %cst_206 = arith.constant dense<0.000000e+00> : vector<4x128xf32>
    %169 = tpu.matmul %166, %168, %cst_206 {dimension_numbers = #tpu.dot_dimension_numbers<[1], [0], [0], [1], [0, 0, 1, 1], [], []>} : vector<4x64xf32>, vector<64x128xf32>, vector<4x128xf32> -> vector<4x128xf32>
    %170 = arith.addf %165, %169 : vector<4x128xf32>
    %c24_207 = arith.constant 24 : index
    %c0_208 = arith.constant 0 : index
    %171 = vector.load %arg13[%c24_207, %c0_208] : memref<40x64xf32, #tpu.memory_space<vmem>>, vector<4x64xf32>
    %c6_209 = arith.constant 6 : index
    %c0_210 = arith.constant 0 : index
    %c0_211 = arith.constant 0 : index
    %172 = vector.load %arg6[%c6_209, %c0_210, %c0_211] : memref<9x64x128xf32, #tpu.memory_space<vmem>>, vector<1x64x128xf32>
    %173 = vector.shape_cast %172 : vector<1x64x128xf32> to vector<64x128xf32>
    %cst_212 = arith.constant dense<0.000000e+00> : vector<4x128xf32>
    %174 = tpu.matmul %171, %173, %cst_212 {dimension_numbers = #tpu.dot_dimension_numbers<[1], [0], [0], [1], [0, 0, 1, 1], [], []>} : vector<4x64xf32>, vector<64x128xf32>, vector<4x128xf32> -> vector<4x128xf32>
    %175 = arith.addf %170, %174 : vector<4x128xf32>
    %c28_213 = arith.constant 28 : index
    %c0_214 = arith.constant 0 : index
    %176 = vector.load %arg13[%c28_213, %c0_214] : memref<40x64xf32, #tpu.memory_space<vmem>>, vector<4x64xf32>
    %c7_215 = arith.constant 7 : index
    %c0_216 = arith.constant 0 : index
    %c0_217 = arith.constant 0 : index
    %177 = vector.load %arg6[%c7_215, %c0_216, %c0_217] : memref<9x64x128xf32, #tpu.memory_space<vmem>>, vector<1x64x128xf32>
    %178 = vector.shape_cast %177 : vector<1x64x128xf32> to vector<64x128xf32>
    %cst_218 = arith.constant dense<0.000000e+00> : vector<4x128xf32>
    %179 = tpu.matmul %176, %178, %cst_218 {dimension_numbers = #tpu.dot_dimension_numbers<[1], [0], [0], [1], [0, 0, 1, 1], [], []>} : vector<4x64xf32>, vector<64x128xf32>, vector<4x128xf32> -> vector<4x128xf32>
    %180 = arith.addf %175, %179 : vector<4x128xf32>
    %c32_219 = arith.constant 32 : index
    %c0_220 = arith.constant 0 : index
    %181 = vector.load %arg13[%c32_219, %c0_220] : memref<40x64xf32, #tpu.memory_space<vmem>>, vector<4x64xf32>
    %c8_221 = arith.constant 8 : index
    %c0_222 = arith.constant 0 : index
    %c0_223 = arith.constant 0 : index
    %182 = vector.load %arg6[%c8_221, %c0_222, %c0_223] : memref<9x64x128xf32, #tpu.memory_space<vmem>>, vector<1x64x128xf32>
    %183 = vector.shape_cast %182 : vector<1x64x128xf32> to vector<64x128xf32>
    %cst_224 = arith.constant dense<0.000000e+00> : vector<4x128xf32>
    %184 = tpu.matmul %181, %183, %cst_224 {dimension_numbers = #tpu.dot_dimension_numbers<[1], [0], [0], [1], [0, 0, 1, 1], [], []>} : vector<4x64xf32>, vector<64x128xf32>, vector<4x128xf32> -> vector<4x128xf32>
    %185 = arith.addf %180, %184 : vector<4x128xf32>
    %c0_225 = arith.constant 0 : index
    %c0_226 = arith.constant 0 : index
    %186 = vector.load %arg7[%c0_225, %c0_226] : memref<1x128xf32, #tpu.memory_space<vmem>>, vector<1x128xf32>
    %187 = vector.broadcast %186 : vector<1x128xf32> to vector<4x128xf32>
    %188 = arith.addf %185, %187 : vector<4x128xf32>
    %cst_227 = arith.constant 0.000000e+00 : f32
    %189 = vector.broadcast %cst_227 : f32 to vector<4x128xf32>
    %190 = arith.maximumf %188, %189 : vector<4x128xf32>
    %191 = vector.extract_strided_slice %190 {offsets = [0, 0], sizes = [1, 128], strides = [1, 1]} : vector<4x128xf32> to vector<1x128xf32>
    %c0_228 = arith.constant 0 : index
    %c0_229 = arith.constant 0 : index
    %192 = vector.load %arg8[%c0_228, %c0_229] : memref<512x10xf32, #tpu.memory_space<vmem>>, vector<128x10xf32>
    %cst_230 = arith.constant dense<0.000000e+00> : vector<1x10xf32>
    %193 = tpu.matmul %191, %192, %cst_230 {dimension_numbers = #tpu.dot_dimension_numbers<[1], [0], [0], [1], [0, 0, 1, 1], [], []>} : vector<1x128xf32>, vector<128x10xf32>, vector<1x10xf32> -> vector<1x10xf32>
    %194 = vector.extract_strided_slice %190 {offsets = [1, 0], sizes = [1, 128], strides = [1, 1]} : vector<4x128xf32> to vector<1x128xf32>
    %c128_231 = arith.constant 128 : index
    %c0_232 = arith.constant 0 : index
    %195 = vector.load %arg8[%c128_231, %c0_232] : memref<512x10xf32, #tpu.memory_space<vmem>>, vector<128x10xf32>
    %cst_233 = arith.constant dense<0.000000e+00> : vector<1x10xf32>
    %196 = tpu.matmul %194, %195, %cst_233 {dimension_numbers = #tpu.dot_dimension_numbers<[1], [0], [0], [1], [0, 0, 1, 1], [], []>} : vector<1x128xf32>, vector<128x10xf32>, vector<1x10xf32> -> vector<1x10xf32>
    %197 = vector.extract_strided_slice %190 {offsets = [2, 0], sizes = [1, 128], strides = [1, 1]} : vector<4x128xf32> to vector<1x128xf32>
    %c256 = arith.constant 256 : index
    %c0_234 = arith.constant 0 : index
    %198 = vector.load %arg8[%c256, %c0_234] : memref<512x10xf32, #tpu.memory_space<vmem>>, vector<128x10xf32>
    %cst_235 = arith.constant dense<0.000000e+00> : vector<1x10xf32>
    %199 = tpu.matmul %197, %198, %cst_235 {dimension_numbers = #tpu.dot_dimension_numbers<[1], [0], [0], [1], [0, 0, 1, 1], [], []>} : vector<1x128xf32>, vector<128x10xf32>, vector<1x10xf32> -> vector<1x10xf32>
    %200 = vector.extract_strided_slice %190 {offsets = [3, 0], sizes = [1, 128], strides = [1, 1]} : vector<4x128xf32> to vector<1x128xf32>
    %c384 = arith.constant 384 : index
    %c0_236 = arith.constant 0 : index
    %201 = vector.load %arg8[%c384, %c0_236] : memref<512x10xf32, #tpu.memory_space<vmem>>, vector<128x10xf32>
    %cst_237 = arith.constant dense<0.000000e+00> : vector<1x10xf32>
    %202 = tpu.matmul %200, %201, %cst_237 {dimension_numbers = #tpu.dot_dimension_numbers<[1], [0], [0], [1], [0, 0, 1, 1], [], []>} : vector<1x128xf32>, vector<128x10xf32>, vector<1x10xf32> -> vector<1x10xf32>
    %c0_238 = arith.constant 0 : index
    %c0_239 = arith.constant 0 : index
    %203 = vector.load %arg9[%c0_238, %c0_239] : memref<1x10xf32, #tpu.memory_space<vmem>>, vector<1x10xf32>
    %204 = arith.addf %193, %196 : vector<1x10xf32>
    %205 = arith.addf %199, %202 : vector<1x10xf32>
    %206 = arith.addf %204, %205 : vector<1x10xf32>
    %207 = arith.addf %203, %206 : vector<1x10xf32>
    %cst_240 = arith.constant dense<0xFF800000> : vector<1xf32>
    %208 = vector.multi_reduction <maximumf>, %207, %cst_240 [1] : vector<1x10xf32> to vector<1xf32>
    %209 = vector.shape_cast %208 : vector<1xf32> to vector<1x1xf32>
    %210 = vector.broadcast %209 : vector<1x1xf32> to vector<1x10xf32>
    %211 = arith.subf %207, %210 : vector<1x10xf32>
    %212 = math.exp %211 : vector<1x10xf32>
    %cst_241 = arith.constant dense<0.000000e+00> : vector<1xf32>
    %213 = vector.multi_reduction <add>, %212, %cst_241 [1] : vector<1x10xf32> to vector<1xf32>
    %214 = vector.shape_cast %213 : vector<1xf32> to vector<1x1xf32>
    %215 = tpu.reciprocal %214 : vector<1x1xf32> -> vector<1x1xf32>
    %216 = vector.broadcast %215 : vector<1x1xf32> to vector<1x10xf32>
    %217 = arith.mulf %212, %216 : vector<1x10xf32>
    %c0_242 = arith.constant 0 : index
    %c0_243 = arith.constant 0 : index
    %c0_244 = arith.constant 0 : index
    %218 = vector.load %arg10[%c0_242, %c0_243, %c0_244] : memref<1x1x10xf32, #tpu.memory_space<vmem>>, vector<1x1x10xf32>
    %219 = vector.shape_cast %218 : vector<1x1x10xf32> to vector<1x10xf32>
    %220 = vector.shape_cast %217 : vector<1x10xf32> to vector<1x1x10xf32>
    tpu.vector_store %arg10[%c0_242, %c0_243, %c0_244], %220 {strides = array<i32>} : memref<1x1x10xf32, #tpu.memory_space<vmem>>, vector<1x1x10xf32>,
    return
  }
  func.func @transform_0(%arg0: i32) -> (i32, i32) {
    %c0_i32 = arith.constant 0 : i32
    %c0_i32_0 = arith.constant 0 : i32
    return %arg0, %c0_i32 : i32, i32
  }
  func.func @transform_1(%arg0: i32) -> (i32, i32, i32) {
    %c0_i32 = arith.constant 0 : i32
    %c0_i32_0 = arith.constant 0 : i32
    %c0_i32_1 = arith.constant 0 : i32
    %c0_i32_2 = arith.constant 0 : i32
    return %c0_i32, %c0_i32_0, %c0_i32_1 : i32, i32, i32
  }
  func.func @transform_2(%arg0: i32) -> (i32, i32) {
    %c0_i32 = arith.constant 0 : i32
    %c0_i32_0 = arith.constant 0 : i32
    %c0_i32_1 = arith.constant 0 : i32
    return %c0_i32, %c0_i32_0 : i32, i32
  }
  func.func @transform_3(%arg0: i32) -> (i32, i32, i32) {
    %c0_i32 = arith.constant 0 : i32
    %c0_i32_0 = arith.constant 0 : i32
    %c0_i32_1 = arith.constant 0 : i32
    %c0_i32_2 = arith.constant 0 : i32
    return %c0_i32, %c0_i32_0, %c0_i32_1 : i32, i32, i32
  }
  func.func @transform_4(%arg0: i32) -> (i32, i32) {
    %c0_i32 = arith.constant 0 : i32
    %c0_i32_0 = arith.constant 0 : i32
    %c0_i32_1 = arith.constant 0 : i32
    return %c0_i32, %c0_i32_0 : i32, i32
  }
  func.func @transform_5(%arg0: i32) -> (i32, i32, i32) {
    %c0_i32 = arith.constant 0 : i32
    %c0_i32_0 = arith.constant 0 : i32
    %c0_i32_1 = arith.constant 0 : i32
    %c0_i32_2 = arith.constant 0 : i32
    return %c0_i32, %c0_i32_0, %c0_i32_1 : i32, i32, i32
  }
  func.func @transform_6(%arg0: i32) -> (i32, i32) {
    %c0_i32 = arith.constant 0 : i32
    %c0_i32_0 = arith.constant 0 : i32
    %c0_i32_1 = arith.constant 0 : i32
    return %c0_i32, %c0_i32_0 : i32, i32
  }
  func.func @transform_7(%arg0: i32) -> (i32, i32) {
    %c0_i32 = arith.constant 0 : i32
    %c0_i32_0 = arith.constant 0 : i32
    %c0_i32_1 = arith.constant 0 : i32
    return %c0_i32, %c0_i32_0 : i32, i32
  }
  func.func @transform_8(%arg0: i32) -> (i32, i32) {
    %c0_i32 = arith.constant 0 : i32
    %c0_i32_0 = arith.constant 0 : i32
    %c0_i32_1 = arith.constant 0 : i32
    return %c0_i32, %c0_i32_0 : i32, i32
  }
  func.func @transform_9(%arg0: i32) -> (i32, i32, i32) {
    %c0_i32 = arith.constant 0 : i32
    %c0_i32_0 = arith.constant 0 : i32
    %c0_i32_1 = arith.constant 0 : i32
    return %arg0, %c0_i32, %c0_i32_0 : i32, i32, i32
  }
}

</mosaic_0001>

<llo_original>
// kernel: model1_forward.1
$region0: #{model1_forward.1}
  #allocation0 [shape = 'u32[]', space=smem, size = 0x4, offset = 0x4, fixed_abs, tag = 'smem constant byte address 0x4 - core index']
  #allocation1 [shape = 'u32[144,128]{1,0:T(1,128)}', space=vmem, size = 0x12000, scoped, tag = 'internal scratch']
  #allocation2 [shape = 'f32[176,32]{1,0:T(8,128)}', space=vmem, size = 0x16000, scoped, tag = 'scratch operand']
  #allocation3 [shape = 'f32[144,64]{1,0:T(8,128)}', space=vmem, size = 0x12000, scoped, tag = 'scratch operand']
  #allocation4 [shape = 'f32[40,64]{1,0:T(8,128)}', space=vmem, size = 0x5000, scoped, tag = 'scratch operand']
  %s0 = inlined_call_operand.vmem [shape: f32[512,12], index: 0, kind: input, shape index: {}]
  %s1 = inlined_call_operand.vmem [shape: f32[3,12,32], index: 1, kind: input, shape index: {}]
  %s2 = inlined_call_operand.vmem [shape: f32[1,32], index: 2, kind: input, shape index: {}]
  %s3 = inlined_call_operand.vmem [shape: f32[9,32,64], index: 3, kind: input, shape index: {}]
  %s4 = inlined_call_operand.vmem [shape: f32[1,64], index: 4, kind: input, shape index: {}]
  %s5 = inlined_call_operand.vmem [shape: f32[9,64,128], index: 5, kind: input, shape index: {}]
  %s6 = inlined_call_operand.vmem [shape: f32[1,128], index: 6, kind: input, shape index: {}]
  %s7 = inlined_call_operand.vmem [shape: f32[512,10], index: 7, kind: input, shape index: {}]
  %s8 = inlined_call_operand.vmem [shape: f32[1,10], index: 8, kind: input, shape index: {}]
  %s9 = inlined_call_operand.hbm [shape: f32[2,1,10], index: 9, kind: output, shape index: {}]
  %s10 = sld [smem:[#allocation0]]
  $region69: #{model1_forward.1} parent=0
    _
  %s12 = ssub.s32 1, %s10
  %s13 = scalar_select 0, %s12, %s10
  $region1: #{model1_forward.1} parent=0
    #allocation5 [shape = 'u8[1024]{0}', space=vmem, size = 0x400, scoped, tag = 'output window, operand 0']
    #allocation6 [shape = 's32[2]{0}', space=sflag, size = 0x8, scoped, tag = 'scoped memory for model1_forward.1']
    %14 = vsyncpa [#allocation6], 0
    %s15 = scalar_lea.sflag [#allocation6], 1
    %16 = vsyncpa %s15, 0
    loop: start=0, step=1, limit=4
    $region2: #{model1_forward.1} parent=1 // loop_pre_header
      _
    $region3: #{model1_forward.1} parent=1 // loop_header
      %s18 = sphi 0, %s22
      %p19 = scmp.ge.s32.totalorder %s18, 4
      %s28 = sphi 0, %s30
      %s31 = sphi 0, %s28
      %s32 = sphi 0, %s31
      %s48 = sphi 0, %s32
      %s52 = sphi 0, %s52
      %s54 = sphi 0, %s52
      %s55 = sphi 0, %s54
      %s69 = sphi 0, %s55
      %s73 = sphi 0, %s73
      %s75 = sphi 0, %s73
      %s76 = sphi 0, %s75
      %s90 = sphi 0, %s76
      %s94 = sphi 0, %s94
      %s96 = sphi 0, %s94
      %s97 = sphi 0, %s96
      %s111 = sphi 0, %s97
      %s115 = sphi 0, %s115
      %s117 = sphi 0, %s115
      %s118 = sphi 0, %s117
      %s132 = sphi 0, %s118
      %s136 = sphi 0, %s136
      %s138 = sphi 0, %s136
      %s139 = sphi 0, %s138
      %s153 = sphi 0, %s139
      %s157 = sphi 0, %s157
      %s159 = sphi 0, %s157
      %s160 = sphi 0, %s159
      %s174 = sphi 0, %s160
      %s178 = sphi 0, %s178
      %s180 = sphi 0, %s178
      %s181 = sphi 0, %s180
      %s195 = sphi 0, %s181
      %s199 = sphi 0, %s199
      %s201 = sphi 0, %s199
      %s202 = sphi 0, %s201
      %s216 = sphi 0, %s202
      %s222 = sphi 0, %s224
      %s225 = sphi 0, %s222
      %s226 = sphi 0, %s225
      %s242 = sphi 0, %s226
    $region4: #{model1_forward.1} parent=1 // loop_header_branch
      %21 = sbr.rel (%p19) target = $region8
    $region5: #{model1_forward.1} parent=1 // loop_body
      %s23 = ssub.s32 %s18, 1
      %s24 = ssub.s32 %s18, 2
      %s25 = sadd.s32 %s18, 1
      %s26 = ssub.s32 %s18, %s25
      %p27 = scmp.eq.s32.totalorder %s26, 0
      %s29 = sadd.s32 %s28, 1
      %s30 = scalar_select %p27, %s28, %s29
      %p33 = pneg %p27
      %p34 = scmp.eq.s32.totalorder %s18, 1
      %p35 = por %p33, %p34
      %p36 = scmp.ne.s32.totalorder %s28, %s31
      %p37 = scmp.eq.s32.totalorder %s18, 0
      %p38 = por %p36, %p37
      %p39 = scmp.ne.s32.totalorder %s28, %s31
      %p40 = scmp.eq.s32.totalorder %s23, 1
      %p41 = por %p39, %p40
      %p42 = scmp.ne.s32.totalorder %s31, %s32
      %p43 = scmp.eq.s32.totalorder %s23, 0
      %p44 = por %p42, %p43
      %p45 = scmp.ne.s32.totalorder %s31, %s32
      %p46 = scmp.eq.s32.totalorder %s24, 1
      %p47 = por %p45, %p46
      %p49 = scmp.ne.s32.totalorder %s32, %s48
      %p50 = scmp.eq.s32.totalorder %s24, 0
      %p51 = por %p49, %p50
      %s53 = sadd.s32 %s52, 1
      %p56 = scmp.eq.s32.totalorder %s18, 1
      %p57 = scmp.ne.s32.totalorder %s52, %s54
      %p58 = scmp.eq.s32.totalorder %s18, 0
      %p59 = por %p57, %p58
      %p60 = scmp.ne.s32.totalorder %s52, %s54
      %p61 = scmp.eq.s32.totalorder %s23, 1
      %p62 = por %p60, %p61
      %p63 = scmp.ne.s32.totalorder %s54, %s55
      %p64 = scmp.eq.s32.totalorder %s23, 0
      %p65 = por %p63, %p64
      %p66 = scmp.ne.s32.totalorder %s54, %s55
      %p67 = scmp.eq.s32.totalorder %s24, 1
      %p68 = por %p66, %p67
      %p70 = scmp.ne.s32.totalorder %s55, %s69
      %p71 = scmp.eq.s32.totalorder %s24, 0
      %p72 = por %p70, %p71
      %s74 = sadd.s32 %s73, 1
      %p77 = scmp.eq.s32.totalorder %s18, 1
      %p78 = scmp.ne.s32.totalorder %s73, %s75
      %p79 = scmp.eq.s32.totalorder %s18, 0
      %p80 = por %p78, %p79
      %p81 = scmp.ne.s32.totalorder %s73, %s75
      %p82 = scmp.eq.s32.totalorder %s23, 1
      %p83 = por %p81, %p82
      %p84 = scmp.ne.s32.totalorder %s75, %s76
      %p85 = scmp.eq.s32.totalorder %s23, 0
      %p86 = por %p84, %p85
      %p87 = scmp.ne.s32.totalorder %s75, %s76
      %p88 = scmp.eq.s32.totalorder %s24, 1
      %p89 = por %p87, %p88
      %p91 = scmp.ne.s32.totalorder %s76, %s90
      %p92 = scmp.eq.s32.totalorder %s24, 0
      %p93 = por %p91, %p92
      %s95 = sadd.s32 %s94, 1
      %p98 = scmp.eq.s32.totalorder %s18, 1
      %p99 = scmp.ne.s32.totalorder %s94, %s96
      %p100 = scmp.eq.s32.totalorder %s18, 0
      %p101 = por %p99, %p100
      %p102 = scmp.ne.s32.totalorder %s94, %s96
      %p103 = scmp.eq.s32.totalorder %s23, 1
      %p104 = por %p102, %p103
      %p105 = scmp.ne.s32.totalorder %s96, %s97
      %p106 = scmp.eq.s32.totalorder %s23, 0
      %p107 = por %p105, %p106
      %p108 = scmp.ne.s32.totalorder %s96, %s97
      %p109 = scmp.eq.s32.totalorder %s24, 1
      %p110 = por %p108, %p109
      %p112 = scmp.ne.s32.totalorder %s97, %s111
      %p113 = scmp.eq.s32.totalorder %s24, 0
      %p114 = por %p112, %p113
      %s116 = sadd.s32 %s115, 1
      %p119 = scmp.eq.s32.totalorder %s18, 1
      %p120 = scmp.ne.s32.totalorder %s115, %s117
      %p121 = scmp.eq.s32.totalorder %s18, 0
      %p122 = por %p120, %p121
      %p123 = scmp.ne.s32.totalorder %s115, %s117
      %p124 = scmp.eq.s32.totalorder %s23, 1
      %p125 = por %p123, %p124
      %p126 = scmp.ne.s32.totalorder %s117, %s118
      %p127 = scmp.eq.s32.totalorder %s23, 0
      %p128 = por %p126, %p127
      %p129 = scmp.ne.s32.totalorder %s117, %s118
      %p130 = scmp.eq.s32.totalorder %s24, 1
      %p131 = por %p129, %p130
      %p133 = scmp.ne.s32.totalorder %s118, %s132
      %p134 = scmp.eq.s32.totalorder %s24, 0
      %p135 = por %p133, %p134
      %s137 = sadd.s32 %s136, 1
      %p140 = scmp.eq.s32.totalorder %s18, 1
      %p141 = scmp.ne.s32.totalorder %s136, %s138
      %p142 = scmp.eq.s32.totalorder %s18, 0
      %p143 = por %p141, %p142
      %p144 = scmp.ne.s32.totalorder %s136, %s138
      %p145 = scmp.eq.s32.totalorder %s23, 1
      %p146 = por %p144, %p145
      %p147 = scmp.ne.s32.totalorder %s138, %s139
      %p148 = scmp.eq.s32.totalorder %s23, 0
      %p149 = por %p147, %p148
      %p150 = scmp.ne.s32.totalorder %s138, %s139
      %p151 = scmp.eq.s32.totalorder %s24, 1
      %p152 = por %p150, %p151
      %p154 = scmp.ne.s32.totalorder %s139, %s153
      %p155 = scmp.eq.s32.totalorder %s24, 0
      %p156 = por %p154, %p155
      %s158 = sadd.s32 %s157, 1
      %p161 = scmp.eq.s32.totalorder %s18, 1
      %p162 = scmp.ne.s32.totalorder %s157, %s159
      %p163 = scmp.eq.s32.totalorder %s18, 0
      %p164 = por %p162, %p163
      %p165 = scmp.ne.s32.totalorder %s157, %s159
      %p166 = scmp.eq.s32.totalorder %s23, 1
      %p167 = por %p165, %p166
      %p168 = scmp.ne.s32.totalorder %s159, %s160
      %p169 = scmp.eq.s32.totalorder %s23, 0
      %p170 = por %p168, %p169
      %p171 = scmp.ne.s32.totalorder %s159, %s160
      %p172 = scmp.eq.s32.totalorder %s24, 1
      %p173 = por %p171, %p172
      %p175 = scmp.ne.s32.totalorder %s160, %s174
      %p176 = scmp.eq.s32.totalorder %s24, 0
      %p177 = por %p175, %p176
      %s179 = sadd.s32 %s178, 1
      %p182 = scmp.eq.s32.totalorder %s18, 1
      %p183 = scmp.ne.s32.totalorder %s178, %s180
      %p184 = scmp.eq.s32.totalorder %s18, 0
      %p185 = por %p183, %p184
      %p186 = scmp.ne.s32.totalorder %s178, %s180
      %p187 = scmp.eq.s32.totalorder %s23, 1
      %p188 = por %p186, %p187
      %p189 = scmp.ne.s32.totalorder %s180, %s181
      %p190 = scmp.eq.s32.totalorder %s23, 0
      %p191 = por %p189, %p190
      %p192 = scmp.ne.s32.totalorder %s180, %s181
      %p193 = scmp.eq.s32.totalorder %s24, 1
      %p194 = por %p192, %p193
      %p196 = scmp.ne.s32.totalorder %s181, %s195
      %p197 = scmp.eq.s32.totalorder %s24, 0
      %p198 = por %p196, %p197
      %s200 = sadd.s32 %s199, 1
      %p203 = scmp.eq.s32.totalorder %s18, 1
      %p204 = scmp.ne.s32.totalorder %s199, %s201
      %p205 = scmp.eq.s32.totalorder %s18, 0
      %p206 = por %p204, %p205
      %p207 = scmp.ne.s32.totalorder %s199, %s201
      %p208 = scmp.eq.s32.totalorder %s23, 1
      %p209 = por %p207, %p208
      %p210 = scmp.ne.s32.totalorder %s201, %s202
      %p211 = scmp.eq.s32.totalorder %s23, 0
      %p212 = por %p210, %p211
      %p213 = scmp.ne.s32.totalorder %s201, %s202
      %p214 = scmp.eq.s32.totalorder %s24, 1
      %p215 = por %p213, %p214
      %p217 = scmp.ne.s32.totalorder %s202, %s216
      %p218 = scmp.eq.s32.totalorder %s24, 0
      %p219 = por %p217, %p218
      %s220 = ssub.s32 %s18, %s25
      %p221 = scmp.eq.s32.totalorder %s220, 0
      %s223 = sadd.s32 %s222, 1
      %s224 = scalar_select %p221, %s222, %s223
      %p227 = pneg %p221
      %p228 = scmp.eq.s32.totalorder %s18, 1
      %p229 = por %p227, %p228
      %p230 = scmp.ne.s32.totalorder %s222, %s225
      %p231 = scmp.eq.s32.totalorder %s18, 0
      %p232 = por %p230, %p231
      %p233 = scmp.ne.s32.totalorder %s222, %s225
      %p234 = scmp.eq.s32.totalorder %s23, 1
      %p235 = por %p233, %p234
      %p236 = scmp.ne.s32.totalorder %s225, %s226
      %p237 = scmp.eq.s32.totalorder %s23, 0
      %p238 = por %p236, %p237
      %p239 = scmp.ne.s32.totalorder %s225, %s226
      %p240 = scmp.eq.s32.totalorder %s24, 1
      %p241 = por %p239, %p240
      %p243 = scmp.ne.s32.totalorder %s226, %s242
      %p244 = scmp.eq.s32.totalorder %s24, 0
      %p245 = por %p243, %p244
      %p246 = scmp.le.s32.totalorder 1, %s18
      %p247 = scmp.lt.s32.totalorder %s18, 3
      %p248 = pnand %p246, %p247
      %p249 = pneg %p248
      // Predicated region
      $region9: #{model1_forward.1} parent=5 // pred_check
        _
      $region10: #{model1_forward.1} parent=5 // pred_check_branch
        %251 = sbr.rel (%p248) target = $region12
      $region11: #{model1_forward.1} parent=5 // pred_region
        %s252 = ssub.s32 %s18, 1
        // Predicated region
        $region13: #{model1_forward.1} parent=11 // pred_check
          %p253 = pneg %p65
        $region14: #{model1_forward.1} parent=11 // pred_check_branch
          %255 = sbr.rel (%p253) target = $region16
        $region15: #{model1_forward.1} parent=11 // pred_region
          _
        $region16: #{model1_forward.1} parent=11 // pred_fallthru
          _
        // Predicated region
        $region17: #{model1_forward.1} parent=11 // pred_check
          %p256 = pneg %p86
        $region18: #{model1_forward.1} parent=11 // pred_check_branch
          %258 = sbr.rel (%p256) target = $region20
        $region19: #{model1_forward.1} parent=11 // pred_region
          _
        $region20: #{model1_forward.1} parent=11 // pred_fallthru
          _
        // Predicated region
        $region21: #{model1_forward.1} parent=11 // pred_check
          %p259 = pneg %p107
        $region22: #{model1_forward.1} parent=11 // pred_check_branch
          %261 = sbr.rel (%p259) target = $region24
        $region23: #{model1_forward.1} parent=11 // pred_region
          _
        $region24: #{model1_forward.1} parent=11 // pred_fallthru
          _
        // Predicated region
        $region25: #{model1_forward.1} parent=11 // pred_check
          %p262 = pneg %p128
        $region26: #{model1_forward.1} parent=11 // pred_check_branch
          %264 = sbr.rel (%p262) target = $region28
        $region27: #{model1_forward.1} parent=11 // pred_region
          _
        $region28: #{model1_forward.1} parent=11 // pred_fallthru
          _
        // Predicated region
        $region29: #{model1_forward.1} parent=11 // pred_check
          %p265 = pneg %p149
        $region30: #{model1_forward.1} parent=11 // pred_check_branch
          %267 = sbr.rel (%p265) target = $region32
        $region31: #{model1_forward.1} parent=11 // pred_region
          _
        $region32: #{model1_forward.1} parent=11 // pred_fallthru
          _
        // Predicated region
        $region33: #{model1_forward.1} parent=11 // pred_check
          %p268 = pneg %p170
        $region34: #{model1_forward.1} parent=11 // pred_check_branch
          %270 = sbr.rel (%p268) target = $region36
        $region35: #{model1_forward.1} parent=11 // pred_region
          _
        $region36: #{model1_forward.1} parent=11 // pred_fallthru
          _
        // Predicated region
        $region37: #{model1_forward.1} parent=11 // pred_check
          %p271 = pneg %p191
        $region38: #{model1_forward.1} parent=11 // pred_check_branch
          %273 = sbr.rel (%p271) target = $region40
        $region39: #{model1_forward.1} parent=11 // pred_region
          _
        $region40: #{model1_forward.1} parent=11 // pred_fallthru
          _
        // Predicated region
        $region41: #{model1_forward.1} parent=11 // pred_check
          %p274 = pneg %p212
        $region42: #{model1_forward.1} parent=11 // pred_check_branch
          %276 = sbr.rel (%p274) target = $region44
        $region43: #{model1_forward.1} parent=11 // pred_region
          _
        $region44: #{model1_forward.1} parent=11 // pred_fallthru
          _
      $region12: #{model1_forward.1} parent=5 // pred_fallthru
        _
      %p277 = scmp.lt.s32.totalorder %s18, 2
      // Predicated region
      $region45: #{model1_forward.1} parent=5 // pred_check
        %p278 = pneg %p277
      $region46: #{model1_forward.1} parent=5 // pred_check_branch
        %280 = sbr.rel (%p278) target = $region48
      $region47: #{model1_forward.1} parent=5 // pred_region
        // Predicated region
        $region49: #{model1_forward.1} parent=47 // pred_check
          %p281 = pneg %p38
        $region50: #{model1_forward.1} parent=47 // pred_check_branch
          %283 = sbr.rel (%p281) target = $region52
        $region51: #{model1_forward.1} parent=47 // pred_region
          %s284 = smul.u32 32, %s18
          %p285 = scmp.lt.s32.totalorder %s284, 63
          %s286 = scalar_select %p285, %s284, 63
          %s287 = smul.addr %s286, 8
          %s288 = scalar_lea.vmem %s0, %s287
          %s289 = smul.u32 32, %s18
        $region52: #{model1_forward.1} parent=47 // pred_fallthru
          _
      $region48: #{model1_forward.1} parent=5 // pred_fallthru
        _
      %p290 = scmp.le.s32.totalorder 1, %s18
      %p291 = scmp.lt.s32.totalorder %s18, 3
      %p292 = pnand %p290, %p291
      %p293 = pneg %p292
      // Predicated region
      $region53: #{model1_forward.1} parent=5 // pred_check
        _
      $region54: #{model1_forward.1} parent=5 // pred_check_branch
        %295 = sbr.rel (%p292) target = $region56
      $region55: #{model1_forward.1} parent=5 // pred_region
        %s296 = ssub.s32 %s18, 1
        %s297 = smul.u32 32, %s23
        %p298 = scmp.lt.s32.totalorder %s297, 63
        %s299 = scalar_select %p298, %s297, 63
        %s300 = smul.addr %s299, 8
        %s301 = scalar_lea.vmem %s0, %s300
        %p302 = pneg %p44
        %p303 = pneg %p41
        %p304 = pneg %p65
        %p305 = pneg %p62
        %p306 = pneg %p86
        %p307 = pneg %p83
        %p308 = pneg %p107
        %p309 = pneg %p104
        %p310 = pneg %p128
        %p311 = pneg %p125
        %p312 = pneg %p149
        %p313 = pneg %p146
        %p314 = pneg %p170
        %p315 = pneg %p167
        %p316 = pneg %p191
        %p317 = pneg %p188
        %p318 = pneg %p212
        %p319 = pneg %p209
        %p320 = pneg %p238
        %p321 = pneg %p235
        %s322 = sand.u32 %s225, 1
        %s323 = scalar_lea.sflag [#allocation6], %s322
        %s324 = sand.u32 %s225, 1
        %s325 = scalar_lea.vmem [#allocation5], %s324
        %s326 = smul.u32 32, %s23
        %p327 = scmp.lt.s32.totalorder %s326, 63
        %s328 = scalar_select %p327, %s326, 63
        %s329 = smul.addr %s328, 8
        %s330 = scalar_lea.vmem %s0, %s329
        %s331 = smul.u32 32, %s23
        %v332 = vld [vmem:[%s330] sm:$0xff]
        %v333 = vld [vmem:[%s330 + $0x8] sm:$0xff]
        %v334 = vld [vmem:[%s330 + $0x10] sm:$0xff]
        %v335 = vld [vmem:[%s330 + $0x18] sm:$0xff]
        %v336 = vld [vmem:[%s330 + $0x20] sm:$0xff]
        %v337 = vld [vmem:[%s330 + $0x28] sm:$0xff]
        %v338 = vld [vmem:[%s330 + $0x30] sm:$0xff]
        %v339 = vld [vmem:[%s330 + $0x38] sm:$0xff]
        %v340 = vld [vmem:[%s330 + $0x40] sm:$0xff]
        %v341 = vld [vmem:[%s330 + $0x48] sm:$0xff]
        %v342 = vld [vmem:[%s330 + $0x50] sm:$0xff]
        %v343 = vld [vmem:[%s330 + $0x58] sm:$0xff]
        %v344 = vld [vmem:[%s330 + $0x60] sm:$0xff]
        %v345 = vld [vmem:[%s330 + $0x68] sm:$0xff]
        %v346 = vld [vmem:[%s330 + $0x70] sm:$0xff]
        %v347 = vld [vmem:[%s330 + $0x78] sm:$0xff]
        %v348 = vld [vmem:[%s330 + $0x80] sm:$0xff]
        %v349 = vld [vmem:[%s330 + $0x88] sm:$0xff]
        %v350 = vld [vmem:[%s330 + $0x90] sm:$0xff]
        %v351 = vld [vmem:[%s330 + $0x98] sm:$0xff]
        %v352 = vld [vmem:[%s330 + $0xa0] sm:$0xff]
        %v353 = vld [vmem:[%s330 + $0xa8] sm:$0x7]
        %v354 = vld [vmem:[%s1] sm:$0xff]
        %v355 = vld [vmem:[%s1 + $0x8] sm:$0xf]
        %v356 = vld [vmem:[%s330 + $0xa8] sm:$0xff]
        %v357 = vld [vmem:[%s330 + $0xb0] sm:$0xff]
        %v358 = vld [vmem:[%s330 + $0xb8] sm:$0x7]
        %s359 = scalar_lea.vmem %s1, 16
        %v360 = vld [vmem:[%s359] sm:$0xff]
        %v361 = vld [vmem:[%s359 + $0x8] sm:$0xf]
        %vm362 = vcmask 97280
        %v364 = vsel %vm362, %v334, 0
        %v367 = vsel %vm362, %v335, 0
        %v370 = vsel %vm362, %v336, 0
        %v373 = vsel %vm362, %v337, 0
        %v376 = vsel %vm362, %v338, 0
        %v379 = vsel %vm362, %v339, 0
        %v382 = vsel %vm362, %v340, 0
        %v385 = vsel %vm362, %v341, 0
        %v388 = vsel %vm362, %v342, 0
        %v391 = vsel %vm362, %v343, 0
        %v394 = vsel %vm362, %v344, 0
        %v397 = vsel %vm362, %v345, 0
        %v400 = vsel %vm362, %v346, 0
        %v403 = vsel %vm362, %v347, 0
        %v406 = vsel %vm362, %v348, 0
        %v409 = vsel %vm362, %v349, 0
        %v412 = vsel %vm362, %v350, 0
        %v415 = vsel %vm362, %v351, 0
        %v418 = vsel %vm362, %v352, 0
        %v421 = vsel %vm362, %v356, 0
        %v424 = vsel %vm362, %v357, 0
        %v427 = vsel %vm362, %v358, 0
        %vm429 = vcmask 1043456
        %v431 = vsel %vm429, %v361, 0
        %433 = vmatprep.subr.mxu0 0.0
        %434 = vmatpush1.msra.mxu0 0.0
        %435 = vmatprep.subr.mxu0 0.0
        %436 = vmatpush1.msra.mxu0 0.0
        %437 = vmatprep.subr.mxu0 0.0
        %438 = vmatpush1.msra.mxu0 0.0
        %439 = vmatprep.subr.mxu0 0.0
        %440 = vmatpush1.msra.mxu0 0.0
        %441 = vmatprep.subr.mxu0 0.0
        %442 = vmatpush1.msra.mxu0 0.0
        %443 = vmatprep.subr.mxu0 0.0
        %444 = vmatpush1.msra.mxu0 0.0
        %445 = vmatprep.subr.mxu0 0.0
        %446 = vmatpush1.msra.mxu0 0.0
        %447 = vmatprep.subr.mxu0 0.0
        %448 = vmatpush1.msra.mxu0 0.0
        %449 = vmatprep.subr.mxu0 0.0
        %450 = vmatpush1.msra.mxu0 0.0
        %451 = vmatprep.subr.mxu0 0.0
        %452 = vmatpush1.msra.mxu0 0.0
        %453 = vmatprep.subr.mxu0 0.0
        %454 = vmatpush1.msra.mxu0 0.0
        %455 = vmatprep.subr.mxu0 0.0
        %456 = vmatpush1.msra.mxu0 0.0
        %457 = vmatprep.subr.mxu0 0.0
        %458 = vmatpush1.msra.mxu0 0.0
        %459 = vmatprep.subr.mxu0 0.0
        %460 = vmatpush1.msra.mxu0 0.0
        %461 = vmatprep.subr.mxu0 0.0
        %462 = vmatpush1.msra.mxu0 %v431
        %463 = vmatprep.subr.mxu0 0.0
        %464 = vmatpush1.msra.mxu0 %v360
        %465 = vmatprep.subr.mxu0 0.0
        %466 = vmatpush2.msra.mxu0 0.0
        %467 = vmatprep.subr.mxu0 0.0
        %468 = vmatpush2.msra.mxu0 0.0
        %469 = vmatprep.subr.mxu0 0.0
        %470 = vmatpush2.msra.mxu0 0.0
        %471 = vmatprep.subr.mxu0 0.0
        %472 = vmatpush2.msra.mxu0 0.0
        %473 = vmatprep.subr.mxu0 0.0
        %474 = vmatpush2.msra.mxu0 0.0
        %475 = vmatprep.subr.mxu0 0.0
        %476 = vmatpush2.msra.mxu0 0.0
        %477 = vmatprep.subr.mxu0 0.0
        %478 = vmatpush2.msra.mxu0 0.0
        %479 = vmatprep.subr.mxu0 0.0
        %480 = vmatpush2.msra.mxu0 0.0
        %481 = vmatprep.subr.mxu0 0.0
        %482 = vmatpush2.msra.mxu0 0.0
        %483 = vmatprep.subr.mxu0 0.0
        %484 = vmatpush2.msra.mxu0 0.0
        %485 = vmatprep.subr.mxu0 0.0
        %486 = vmatpush2.msra.mxu0 0.0
        %487 = vmatprep.subr.mxu0 0.0
        %488 = vmatpush2.msra.mxu0 0.0
        %489 = vmatprep.subr.mxu0 0.0
        %490 = vmatpush2.msra.mxu0 0.0
        %491 = vmatprep.subr.mxu0 0.0
        %492 = vmatpush2.msra.mxu0 0.0
        %493 = vmatprep.subr.mxu0 0.0
        %494 = vmatpush2.msra.mxu0 0.0
        %495 = vmatprep.subr.mxu0 0.0
        %496 = vmatpush2.msra.mxu0 0.0
        %497 = vmatprep.mubr.f32.mxu0 0.0
        %498 = vmatmul.mubr.f32.gmra.mxu0 %v364
        %v499 = vpop.f32.mrf.mxu0
        %v500 = vadd.f32 0.0, %v499
        %v501 = vpop.f32.mrf.mxu0
        %502 = vmatprep.mubr.f32.mxu0 0.0
        %503 = vmatmul.mubr.f32.gmra.mxu0 %v367
        %v504 = vpop.f32.mrf.mxu0
        %v505 = vadd.f32 0.0, %v504
        %v506 = vpop.f32.mrf.mxu0
        %507 = vmatprep.mubr.f32.mxu0 0.0
        %508 = vmatmul.mubr.f32.gmra.mxu0 %v370
        %v509 = vpop.f32.mrf.mxu0
        %v510 = vadd.f32 0.0, %v509
        %v511 = vpop.f32.mrf.mxu0
        %512 = vmatprep.mubr.f32.mxu0 0.0
        %513 = vmatmul.mubr.f32.gmra.mxu0 %v373
        %v514 = vpop.f32.mrf.mxu0
        %v515 = vadd.f32 0.0, %v514
        %v516 = vpop.f32.mrf.mxu0
        %517 = vmatprep.mubr.f32.mxu0 0.0
        %518 = vmatmul.mubr.f32.gmra.mxu0 %v376
        %v519 = vpop.f32.mrf.mxu0
        %v520 = vadd.f32 0.0, %v519
        %v521 = vpop.f32.mrf.mxu0
        %522 = vmatprep.mubr.f32.mxu0 0.0
        %523 = vmatmul.mubr.f32.gmra.mxu0 %v379
        %v524 = vpop.f32.mrf.mxu0
        %v525 = vadd.f32 0.0, %v524
        %v526 = vpop.f32.mrf.mxu0
        %527 = vmatprep.mubr.f32.mxu0 0.0
        %528 = vmatmul.mubr.f32.gmra.mxu0 %v382
        %v529 = vpop.f32.mrf.mxu0
        %v530 = vadd.f32 0.0, %v529
        %v531 = vpop.f32.mrf.mxu0
        %532 = vmatprep.mubr.f32.mxu0 0.0
        %533 = vmatmul.mubr.f32.gmra.mxu0 %v385
        %v534 = vpop.f32.mrf.mxu0
        %v535 = vadd.f32 0.0, %v534
        %v536 = vpop.f32.mrf.mxu0
        %537 = vmatprep.mubr.f32.mxu0 0.0
        %538 = vmatmul.mubr.f32.gmra.mxu0 %v388
        %v539 = vpop.f32.mrf.mxu0
        %v540 = vadd.f32 0.0, %v539
        %v541 = vpop.f32.mrf.mxu0
        %542 = vmatprep.mubr.f32.mxu0 0.0
        %543 = vmatmul.mubr.f32.gmra.mxu0 %v391
        %v544 = vpop.f32.mrf.mxu0
        %v545 = vadd.f32 0.0, %v544
        %v546 = vpop.f32.mrf.mxu0
        %547 = vmatprep.mubr.f32.mxu0 0.0
        %548 = vmatmul.mubr.f32.gmra.mxu0 %v394
        %v549 = vpop.f32.mrf.mxu0
        %v550 = vadd.f32 0.0, %v549
        %v551 = vpop.f32.mrf.mxu0
        %552 = vmatprep.mubr.f32.mxu0 0.0
        %553 = vmatmul.mubr.f32.gmra.mxu0 %v397
        %v554 = vpop.f32.mrf.mxu0
        %v555 = vadd.f32 0.0, %v554
        %v556 = vpop.f32.mrf.mxu0
        %557 = vmatprep.mubr.f32.mxu0 0.0
        %558 = vmatmul.mubr.f32.gmra.mxu0 %v400
        %v559 = vpop.f32.mrf.mxu0
        %v560 = vadd.f32 0.0, %v559
        %v561 = vpop.f32.mrf.mxu0
        %562 = vmatprep.mubr.f32.mxu0 0.0
        %563 = vmatmul.mubr.f32.gmra.mxu0 %v403
        %v564 = vpop.f32.mrf.mxu0
        %v565 = vadd.f32 0.0, %v564
        %v566 = vpop.f32.mrf.mxu0
        %567 = vmatprep.mubr.f32.mxu0 0.0
        %568 = vmatmul.mubr.f32.gmra.mxu0 %v406
        %v569 = vpop.f32.mrf.mxu0
        %v570 = vadd.f32 0.0, %v569
        %v571 = vpop.f32.mrf.mxu0
        %572 = vmatprep.mubr.f32.mxu0 0.0
        %573 = vmatmul.mubr.f32.gmra.mxu0 %v409
        %v574 = vpop.f32.mrf.mxu0
        %v575 = vadd.f32 0.0, %v574
        %v576 = vpop.f32.mrf.mxu0
        %577 = vmatprep.mubr.f32.mxu0 0.0
        %578 = vmatmul.mubr.f32.gmra.mxu0 %v412
        %v579 = vpop.f32.mrf.mxu0
        %v580 = vadd.f32 0.0, %v579
        %v581 = vpop.f32.mrf.mxu0
        %582 = vmatprep.mubr.f32.mxu0 0.0
        %583 = vmatmul.mubr.f32.gmra.mxu0 %v415
        %v584 = vpop.f32.mrf.mxu0
        %v585 = vadd.f32 0.0, %v584
        %v586 = vpop.f32.mrf.mxu0
        %587 = vmatprep.mubr.f32.mxu0 0.0
        %588 = vmatmul.mubr.f32.gmra.mxu0 %v418
        %v589 = vpop.f32.mrf.mxu0
        %v590 = vadd.f32 0.0, %v589
        %v591 = vpop.f32.mrf.mxu0
        %592 = vmatprep.mubr.f32.mxu0 0.0
        %593 = vmatmul.mubr.f32.gmra.mxu0 %v421
        %v594 = vpop.f32.mrf.mxu0
        %v595 = vadd.f32 0.0, %v594
        %v596 = vpop.f32.mrf.mxu0
        %597 = vmatprep.mubr.f32.mxu0 0.0
        %598 = vmatmul.mubr.f32.gmra.mxu0 %v424
        %v599 = vpop.f32.mrf.mxu0
        %v600 = vadd.f32 0.0, %v599
        %v601 = vpop.f32.mrf.mxu0
        %602 = vmatprep.mubr.f32.mxu0 0.0
        %603 = vmatmul.mubr.f32.gmra.mxu0 %v427
        %v604 = vpop.f32.mrf.mxu0
        %v605 = vadd.f32 0.0, %v604
        %v606 = vpop.f32.mrf.mxu0
        %607 = vdwg.mxu0
        %v609 = vsel %vm362, %v332, 0
        %v612 = vsel %vm362, %v333, 0
        %v615 = vsel %vm362, %v353, 0
        %v618 = vsel %vm429, %v355, 0
        %620 = vmatprep.subr.mxu0 0.0
        %621 = vmatpush1.msra.mxu0 0.0
        %622 = vmatprep.subr.mxu0 0.0
        %623 = vmatpush1.msra.mxu0 0.0
        %624 = vmatprep.subr.mxu0 0.0
        %625 = vmatpush1.msra.mxu0 0.0
        %626 = vmatprep.subr.mxu0 0.0
        %627 = vmatpush1.msra.mxu0 0.0
        %628 = vmatprep.subr.mxu0 0.0
        %629 = vmatpush1.msra.mxu0 0.0
        %630 = vmatprep.subr.mxu0 0.0
        %631 = vmatpush1.msra.mxu0 0.0
        %632 = vmatprep.subr.mxu0 0.0
        %633 = vmatpush1.msra.mxu0 0.0
        %634 = vmatprep.subr.mxu0 0.0
        %635 = vmatpush1.msra.mxu0 0.0
        %636 = vmatprep.subr.mxu0 0.0
        %637 = vmatpush1.msra.mxu0 0.0
        %638 = vmatprep.subr.mxu0 0.0
        %639 = vmatpush1.msra.mxu0 0.0
        %640 = vmatprep.subr.mxu0 0.0
        %641 = vmatpush1.msra.mxu0 0.0
        %642 = vmatprep.subr.mxu0 0.0
        %643 = vmatpush1.msra.mxu0 0.0
        %644 = vmatprep.subr.mxu0 0.0
        %645 = vmatpush1.msra.mxu0 0.0
        %646 = vmatprep.subr.mxu0 0.0
        %647 = vmatpush1.msra.mxu0 0.0
        %648 = vmatprep.subr.mxu0 0.0
        %649 = vmatpush1.msra.mxu0 %v618
        %650 = vmatprep.subr.mxu0 0.0
        %651 = vmatpush1.msra.mxu0 %v354
        %652 = vmatprep.subr.mxu0 0.0
        %653 = vmatpush2.msra.mxu0 0.0
        %654 = vmatprep.subr.mxu0 0.0
        %655 = vmatpush2.msra.mxu0 0.0
        %656 = vmatprep.subr.mxu0 0.0
        %657 = vmatpush2.msra.mxu0 0.0
        %658 = vmatprep.subr.mxu0 0.0
        %659 = vmatpush2.msra.mxu0 0.0
        %660 = vmatprep.subr.mxu0 0.0
        %661 = vmatpush2.msra.mxu0 0.0
        %662 = vmatprep.subr.mxu0 0.0
        %663 = vmatpush2.msra.mxu0 0.0
        %664 = vmatprep.subr.mxu0 0.0
        %665 = vmatpush2.msra.mxu0 0.0
        %666 = vmatprep.subr.mxu0 0.0
        %667 = vmatpush2.msra.mxu0 0.0
        %668 = vmatprep.subr.mxu0 0.0
        %669 = vmatpush2.msra.mxu0 0.0
        %670 = vmatprep.subr.mxu0 0.0
        %671 = vmatpush2.msra.mxu0 0.0
        %672 = vmatprep.subr.mxu0 0.0
        %673 = vmatpush2.msra.mxu0 0.0
        %674 = vmatprep.subr.mxu0 0.0
        %675 = vmatpush2.msra.mxu0 0.0
        %676 = vmatprep.subr.mxu0 0.0
        %677 = vmatpush2.msra.mxu0 0.0
        %678 = vmatprep.subr.mxu0 0.0
        %679 = vmatpush2.msra.mxu0 0.0
        %680 = vmatprep.subr.mxu0 0.0
        %681 = vmatpush2.msra.mxu0 0.0
        %682 = vmatprep.subr.mxu0 0.0
        %683 = vmatpush2.msra.mxu0 0.0
        %684 = vmatprep.mubr.f32.mxu0 0.0
        %685 = vmatmul.mubr.f32.gmra.mxu0 %v609
        %v686 = vpop.f32.mrf.mxu0
        %v687 = vadd.f32 %v500, %v686
        %v688 = vpop.f32.mrf.mxu0
        %689 = vmatprep.mubr.f32.mxu0 0.0
        %690 = vmatmul.mubr.f32.gmra.mxu0 %v612
        %v691 = vpop.f32.mrf.mxu0
        %v692 = vadd.f32 %v505, %v691
        %v693 = vpop.f32.mrf.mxu0
        %694 = vmatprep.mubr.f32.mxu0 0.0
        %695 = vmatmul.mubr.f32.gmra.mxu0 %v364
        %v696 = vpop.f32.mrf.mxu0
        %v697 = vadd.f32 %v510, %v696
        %v698 = vpop.f32.mrf.mxu0
        %699 = vmatprep.mubr.f32.mxu0 0.0
        %700 = vmatmul.mubr.f32.gmra.mxu0 %v367
        %v701 = vpop.f32.mrf.mxu0
        %v702 = vadd.f32 %v515, %v701
        %v703 = vpop.f32.mrf.mxu0
        %704 = vmatprep.mubr.f32.mxu0 0.0
        %705 = vmatmul.mubr.f32.gmra.mxu0 %v370
        %v706 = vpop.f32.mrf.mxu0
        %v707 = vadd.f32 %v520, %v706
        %v708 = vpop.f32.mrf.mxu0
        %709 = vmatprep.mubr.f32.mxu0 0.0
        %710 = vmatmul.mubr.f32.gmra.mxu0 %v373
        %v711 = vpop.f32.mrf.mxu0
        %v712 = vadd.f32 %v525, %v711
        %v713 = vpop.f32.mrf.mxu0
        %714 = vmatprep.mubr.f32.mxu0 0.0
        %715 = vmatmul.mubr.f32.gmra.mxu0 %v376
        %v716 = vpop.f32.mrf.mxu0
        %v717 = vadd.f32 %v530, %v716
        %v718 = vpop.f32.mrf.mxu0
        %719 = vmatprep.mubr.f32.mxu0 0.0
        %720 = vmatmul.mubr.f32.gmra.mxu0 %v379
        %v721 = vpop.f32.mrf.mxu0
        %v722 = vadd.f32 %v535, %v721
        %v723 = vpop.f32.mrf.mxu0
        %724 = vmatprep.mubr.f32.mxu0 0.0
        %725 = vmatmul.mubr.f32.gmra.mxu0 %v382
        %v726 = vpop.f32.mrf.mxu0
        %v727 = vadd.f32 %v540, %v726
        %v728 = vpop.f32.mrf.mxu0
        %729 = vmatprep.mubr.f32.mxu0 0.0
        %730 = vmatmul.mubr.f32.gmra.mxu0 %v385
        %v731 = vpop.f32.mrf.mxu0
        %v732 = vadd.f32 %v545, %v731
        %v733 = vpop.f32.mrf.mxu0
        %734 = vmatprep.mubr.f32.mxu0 0.0
        %735 = vmatmul.mubr.f32.gmra.mxu0 %v388
        %v736 = vpop.f32.mrf.mxu0
        %v737 = vadd.f32 %v550, %v736
        %v738 = vpop.f32.mrf.mxu0
        %739 = vmatprep.mubr.f32.mxu0 0.0
        %740 = vmatmul.mubr.f32.gmra.mxu0 %v391
        %v741 = vpop.f32.mrf.mxu0
        %v742 = vadd.f32 %v555, %v741
        %v743 = vpop.f32.mrf.mxu0
        %744 = vmatprep.mubr.f32.mxu0 0.0
        %745 = vmatmul.mubr.f32.gmra.mxu0 %v394
        %v746 = vpop.f32.mrf.mxu0
        %v747 = vadd.f32 %v560, %v746
        %v748 = vpop.f32.mrf.mxu0
        %749 = vmatprep.mubr.f32.mxu0 0.0
        %750 = vmatmul.mubr.f32.gmra.mxu0 %v397
        %v751 = vpop.f32.mrf.mxu0
        %v752 = vadd.f32 %v565, %v751
        %v753 = vpop.f32.mrf.mxu0
        %754 = vmatprep.mubr.f32.mxu0 0.0
        %755 = vmatmul.mubr.f32.gmra.mxu0 %v400
        %v756 = vpop.f32.mrf.mxu0
        %v757 = vadd.f32 %v570, %v756
        %v758 = vpop.f32.mrf.mxu0
        %759 = vmatprep.mubr.f32.mxu0 0.0
        %760 = vmatmul.mubr.f32.gmra.mxu0 %v403
        %v761 = vpop.f32.mrf.mxu0
        %v762 = vadd.f32 %v575, %v761
        %v763 = vpop.f32.mrf.mxu0
        %764 = vmatprep.mubr.f32.mxu0 0.0
        %765 = vmatmul.mubr.f32.gmra.mxu0 %v406
        %v766 = vpop.f32.mrf.mxu0
        %v767 = vadd.f32 %v580, %v766
        %v768 = vpop.f32.mrf.mxu0
        %769 = vmatprep.mubr.f32.mxu0 0.0
        %770 = vmatmul.mubr.f32.gmra.mxu0 %v409
        %v771 = vpop.f32.mrf.mxu0
        %v772 = vadd.f32 %v585, %v771
        %v773 = vpop.f32.mrf.mxu0
        %774 = vmatprep.mubr.f32.mxu0 0.0
        %775 = vmatmul.mubr.f32.gmra.mxu0 %v412
        %v776 = vpop.f32.mrf.mxu0
        %v777 = vadd.f32 %v590, %v776
        %v778 = vpop.f32.mrf.mxu0
        %779 = vmatprep.mubr.f32.mxu0 0.0
        %780 = vmatmul.mubr.f32.gmra.mxu0 %v415
        %v781 = vpop.f32.mrf.mxu0
        %v782 = vadd.f32 %v595, %v781
        %v783 = vpop.f32.mrf.mxu0
        %784 = vmatprep.mubr.f32.mxu0 0.0
        %785 = vmatmul.mubr.f32.gmra.mxu0 %v418
        %v786 = vpop.f32.mrf.mxu0
        %v787 = vadd.f32 %v600, %v786
        %v788 = vpop.f32.mrf.mxu0
        %789 = vmatprep.mubr.f32.mxu0 0.0
        %790 = vmatmul.mubr.f32.gmra.mxu0 %v615
        %v791 = vpop.f32.mrf.mxu0
        %v792 = vadd.f32 %v605, %v791
        %v793 = vpop.f32.mrf.mxu0
        %794 = vdwg.mxu0
        %v795 = vld [vmem:[%s330 + $0x20] sm:$0xff]
        %v796 = vld [vmem:[%s330 + $0x28] sm:$0xff]
        %v797 = vld [vmem:[%s330 + $0x30] sm:$0xff]
        %v798 = vld [vmem:[%s330 + $0x38] sm:$0xff]
        %v799 = vld [vmem:[%s330 + $0x40] sm:$0xff]
        %v800 = vld [vmem:[%s330 + $0x48] sm:$0xff]
        %v801 = vld [vmem:[%s330 + $0x50] sm:$0xff]
        %v802 = vld [vmem:[%s330 + $0x58] sm:$0xff]
        %v803 = vld [vmem:[%s330 + $0x60] sm:$0xff]
        %v804 = vld [vmem:[%s330 + $0x68] sm:$0xff]
        %v805 = vld [vmem:[%s330 + $0x70] sm:$0xff]
        %v806 = vld [vmem:[%s330 + $0x78] sm:$0xff]
        %v807 = vld [vmem:[%s330 + $0x80] sm:$0xff]
        %v808 = vld [vmem:[%s330 + $0x88] sm:$0xff]
        %v809 = vld [vmem:[%s330 + $0x90] sm:$0xff]
        %v810 = vld [vmem:[%s330 + $0x98] sm:$0xff]
        %v811 = vld [vmem:[%s330 + $0xa0] sm:$0xff]
        %v812 = vld [vmem:[%s330 + $0xa8] sm:$0xff]
        %v813 = vld [vmem:[%s330 + $0xb0] sm:$0xff]
        %v814 = vld [vmem:[%s330 + $0xb8] sm:$0xff]
        %v815 = vld [vmem:[%s330 + $0xc0] sm:$0xff]
        %v816 = vld [vmem:[%s330 + $0xc8] sm:$0x7]
        %s817 = scalar_lea.vmem %s1, 32
        %v818 = vld [vmem:[%s817] sm:$0xff]
        %v819 = vld [vmem:[%s817 + $0x8] sm:$0xf]
        %v821 = vsel %vm362, %v795, 0
        %v824 = vsel %vm362, %v796, 0
        %v827 = vsel %vm362, %v797, 0
        %v830 = vsel %vm362, %v798, 0
        %v833 = vsel %vm362, %v799, 0
        %v836 = vsel %vm362, %v800, 0
        %v839 = vsel %vm362, %v801, 0
        %v842 = vsel %vm362, %v802, 0
        %v845 = vsel %vm362, %v803, 0
        %v848 = vsel %vm362, %v804, 0
        %v851 = vsel %vm362, %v805, 0
        %v854 = vsel %vm362, %v806, 0
        %v857 = vsel %vm362, %v807, 0
        %v860 = vsel %vm362, %v808, 0
        %v863 = vsel %vm362, %v809, 0
        %v866 = vsel %vm362, %v810, 0
        %v869 = vsel %vm362, %v811, 0
        %v872 = vsel %vm362, %v812, 0
        %v875 = vsel %vm362, %v813, 0
        %v878 = vsel %vm362, %v814, 0
        %v881 = vsel %vm362, %v815, 0
        %v884 = vsel %vm362, %v816, 0
        %v887 = vsel %vm429, %v819, 0
        %889 = vmatprep.subr.mxu0 0.0
        %890 = vmatpush1.msra.mxu0 0.0
        %891 = vmatprep.subr.mxu0 0.0
        %892 = vmatpush1.msra.mxu0 0.0
        %893 = vmatprep.subr.mxu0 0.0
        %894 = vmatpush1.msra.mxu0 0.0
        %895 = vmatprep.subr.mxu0 0.0
        %896 = vmatpush1.msra.mxu0 0.0
        %897 = vmatprep.subr.mxu0 0.0
        %898 = vmatpush1.msra.mxu0 0.0
        %899 = vmatprep.subr.mxu0 0.0
        %900 = vmatpush1.msra.mxu0 0.0
        %901 = vmatprep.subr.mxu0 0.0
        %902 = vmatpush1.msra.mxu0 0.0
        %903 = vmatprep.subr.mxu0 0.0
        %904 = vmatpush1.msra.mxu0 0.0
        %905 = vmatprep.subr.mxu0 0.0
        %906 = vmatpush1.msra.mxu0 0.0
        %907 = vmatprep.subr.mxu0 0.0
        %908 = vmatpush1.msra.mxu0 0.0
        %909 = vmatprep.subr.mxu0 0.0
        %910 = vmatpush1.msra.mxu0 0.0
        %911 = vmatprep.subr.mxu0 0.0
        %912 = vmatpush1.msra.mxu0 0.0
        %913 = vmatprep.subr.mxu0 0.0
        %914 = vmatpush1.msra.mxu0 0.0
        %915 = vmatprep.subr.mxu0 0.0
        %916 = vmatpush1.msra.mxu0 0.0
        %917 = vmatprep.subr.mxu0 0.0
        %918 = vmatpush1.msra.mxu0 %v887
        %919 = vmatprep.subr.mxu0 0.0
        %920 = vmatpush1.msra.mxu0 %v818
        %921 = vmatprep.subr.mxu0 0.0
        %922 = vmatpush2.msra.mxu0 0.0
        %923 = vmatprep.subr.mxu0 0.0
        %924 = vmatpush2.msra.mxu0 0.0
        %925 = vmatprep.subr.mxu0 0.0
        %926 = vmatpush2.msra.mxu0 0.0
        %927 = vmatprep.subr.mxu0 0.0
        %928 = vmatpush2.msra.mxu0 0.0
        %929 = vmatprep.subr.mxu0 0.0
        %930 = vmatpush2.msra.mxu0 0.0
        %931 = vmatprep.subr.mxu0 0.0
        %932 = vmatpush2.msra.mxu0 0.0
        %933 = vmatprep.subr.mxu0 0.0
        %934 = vmatpush2.msra.mxu0 0.0
        %935 = vmatprep.subr.mxu0 0.0
        %936 = vmatpush2.msra.mxu0 0.0
        %937 = vmatprep.subr.mxu0 0.0
        %938 = vmatpush2.msra.mxu0 0.0
        %939 = vmatprep.subr.mxu0 0.0
        %940 = vmatpush2.msra.mxu0 0.0
        %941 = vmatprep.subr.mxu0 0.0
        %942 = vmatpush2.msra.mxu0 0.0
        %943 = vmatprep.subr.mxu0 0.0
        %944 = vmatpush2.msra.mxu0 0.0
        %945 = vmatprep.subr.mxu0 0.0
        %946 = vmatpush2.msra.mxu0 0.0
        %947 = vmatprep.subr.mxu0 0.0
        %948 = vmatpush2.msra.mxu0 0.0
        %949 = vmatprep.subr.mxu0 0.0
        %950 = vmatpush2.msra.mxu0 0.0
        %951 = vmatprep.subr.mxu0 0.0
        %952 = vmatpush2.msra.mxu0 0.0
        %953 = vmatprep.mubr.f32.mxu0 0.0
        %954 = vmatmul.mubr.f32.gmra.mxu0 %v821
        %v955 = vpop.f32.mrf.mxu0
        %v956 = vadd.f32 0.0, %v955
        %v957 = vpop.f32.mrf.mxu0
        %958 = vmatprep.mubr.f32.mxu0 0.0
        %959 = vmatmul.mubr.f32.gmra.mxu0 %v824
        %v960 = vpop.f32.mrf.mxu0
        %v961 = vadd.f32 0.0, %v960
        %v962 = vpop.f32.mrf.mxu0
        %963 = vmatprep.mubr.f32.mxu0 0.0
        %964 = vmatmul.mubr.f32.gmra.mxu0 %v827
        %v965 = vpop.f32.mrf.mxu0
        %v966 = vadd.f32 0.0, %v965
        %v967 = vpop.f32.mrf.mxu0
        %968 = vmatprep.mubr.f32.mxu0 0.0
        %969 = vmatmul.mubr.f32.gmra.mxu0 %v830
        %v970 = vpop.f32.mrf.mxu0
        %v971 = vadd.f32 0.0, %v970
        %v972 = vpop.f32.mrf.mxu0
        %973 = vmatprep.mubr.f32.mxu0 0.0
        %974 = vmatmul.mubr.f32.gmra.mxu0 %v833
        %v975 = vpop.f32.mrf.mxu0
        %v976 = vadd.f32 0.0, %v975
        %v977 = vpop.f32.mrf.mxu0
        %978 = vmatprep.mubr.f32.mxu0 0.0
        %979 = vmatmul.mubr.f32.gmra.mxu0 %v836
        %v980 = vpop.f32.mrf.mxu0
        %v981 = vadd.f32 0.0, %v980
        %v982 = vpop.f32.mrf.mxu0
        %983 = vmatprep.mubr.f32.mxu0 0.0
        %984 = vmatmul.mubr.f32.gmra.mxu0 %v839
        %v985 = vpop.f32.mrf.mxu0
        %v986 = vadd.f32 0.0, %v985
        %v987 = vpop.f32.mrf.mxu0
        %988 = vmatprep.mubr.f32.mxu0 0.0
        %989 = vmatmul.mubr.f32.gmra.mxu0 %v842
        %v990 = vpop.f32.mrf.mxu0
        %v991 = vadd.f32 0.0, %v990
        %v992 = vpop.f32.mrf.mxu0
        %993 = vmatprep.mubr.f32.mxu0 0.0
        %994 = vmatmul.mubr.f32.gmra.mxu0 %v845
        %v995 = vpop.f32.mrf.mxu0
        %v996 = vadd.f32 0.0, %v995
        %v997 = vpop.f32.mrf.mxu0
        %998 = vmatprep.mubr.f32.mxu0 0.0
        %999 = vmatmul.mubr.f32.gmra.mxu0 %v848
        %v1000 = vpop.f32.mrf.mxu0
        %v1001 = vadd.f32 0.0, %v1000
        %v1002 = vpop.f32.mrf.mxu0
        %1003 = vmatprep.mubr.f32.mxu0 0.0
        %1004 = vmatmul.mubr.f32.gmra.mxu0 %v851
        %v1005 = vpop.f32.mrf.mxu0
        %v1006 = vadd.f32 0.0, %v1005
        %v1007 = vpop.f32.mrf.mxu0
        %1008 = vmatprep.mubr.f32.mxu0 0.0
        %1009 = vmatmul.mubr.f32.gmra.mxu0 %v854
        %v1010 = vpop.f32.mrf.mxu0
        %v1011 = vadd.f32 0.0, %v1010
        %v1012 = vpop.f32.mrf.mxu0
        %1013 = vmatprep.mubr.f32.mxu0 0.0
        %1014 = vmatmul.mubr.f32.gmra.mxu0 %v857
        %v1015 = vpop.f32.mrf.mxu0
        %v1016 = vadd.f32 0.0, %v1015
        %v1017 = vpop.f32.mrf.mxu0
        %1018 = vmatprep.mubr.f32.mxu0 0.0
        %1019 = vmatmul.mubr.f32.gmra.mxu0 %v860
        %v1020 = vpop.f32.mrf.mxu0
        %v1021 = vadd.f32 0.0, %v1020
        %v1022 = vpop.f32.mrf.mxu0
        %1023 = vmatprep.mubr.f32.mxu0 0.0
        %1024 = vmatmul.mubr.f32.gmra.mxu0 %v863
        %v1025 = vpop.f32.mrf.mxu0
        %v1026 = vadd.f32 0.0, %v1025
        %v1027 = vpop.f32.mrf.mxu0
        %1028 = vmatprep.mubr.f32.mxu0 0.0
        %1029 = vmatmul.mubr.f32.gmra.mxu0 %v866
        %v1030 = vpop.f32.mrf.mxu0
        %v1031 = vadd.f32 0.0, %v1030
        %v1032 = vpop.f32.mrf.mxu0
        %1033 = vmatprep.mubr.f32.mxu0 0.0
        %1034 = vmatmul.mubr.f32.gmra.mxu0 %v869
        %v1035 = vpop.f32.mrf.mxu0
        %v1036 = vadd.f32 0.0, %v1035
        %v1037 = vpop.f32.mrf.mxu0
        %1038 = vmatprep.mubr.f32.mxu0 0.0
        %1039 = vmatmul.mubr.f32.gmra.mxu0 %v872
        %v1040 = vpop.f32.mrf.mxu0
        %v1041 = vadd.f32 0.0, %v1040
        %v1042 = vpop.f32.mrf.mxu0
        %1043 = vmatprep.mubr.f32.mxu0 0.0
        %1044 = vmatmul.mubr.f32.gmra.mxu0 %v875
        %v1045 = vpop.f32.mrf.mxu0
        %v1046 = vadd.f32 0.0, %v1045
        %v1047 = vpop.f32.mrf.mxu0
        %1048 = vmatprep.mubr.f32.mxu0 0.0
        %1049 = vmatmul.mubr.f32.gmra.mxu0 %v878
        %v1050 = vpop.f32.mrf.mxu0
        %v1051 = vadd.f32 0.0, %v1050
        %v1052 = vpop.f32.mrf.mxu0
        %1053 = vmatprep.mubr.f32.mxu0 0.0
        %1054 = vmatmul.mubr.f32.gmra.mxu0 %v881
        %v1055 = vpop.f32.mrf.mxu0
        %v1056 = vadd.f32 0.0, %v1055
        %v1057 = vpop.f32.mrf.mxu0
        %1058 = vmatprep.mubr.f32.mxu0 0.0
        %1059 = vmatmul.mubr.f32.gmra.mxu0 %v884
        %v1060 = vpop.f32.mrf.mxu0
        %v1061 = vadd.f32 0.0, %v1060
        %v1062 = vpop.f32.mrf.mxu0
        %1063 = vdwg.mxu0
        %v1064 = vadd.f32 %v687, %v956
        %v1065 = vadd.f32 %v692, %v961
        %v1066 = vadd.f32 %v697, %v966
        %v1067 = vadd.f32 %v702, %v971
        %v1068 = vadd.f32 %v707, %v976
        %v1069 = vadd.f32 %v712, %v981
        %v1070 = vadd.f32 %v717, %v986
        %v1071 = vadd.f32 %v722, %v991
        %v1072 = vadd.f32 %v727, %v996
        %v1073 = vadd.f32 %v732, %v1001
        %v1074 = vadd.f32 %v737, %v1006
        %v1075 = vadd.f32 %v742, %v1011
        %v1076 = vadd.f32 %v747, %v1016
        %v1077 = vadd.f32 %v752, %v1021
        %v1078 = vadd.f32 %v757, %v1026
        %v1079 = vadd.f32 %v762, %v1031
        %v1080 = vadd.f32 %v767, %v1036
        %v1081 = vadd.f32 %v772, %v1041
        %v1082 = vadd.f32 %v777, %v1046
        %v1083 = vadd.f32 %v782, %v1051
        %v1084 = vadd.f32 %v787, %v1056
        %v1085 = vadd.f32 %v792, %v1061
        %v1086 = vld [vmem:[%s2] sm:$0x1]
        %v1088 = vlaneseq
        %v1089 = vshrl.u32 %v1088, 7
        %v1090 = vsub.s32 0, %v1089
        %v1091 = vrot.slane %v1086, %v1090
        %v1093 = vadd.f32 %v1064, %v1091
        %v1094 = vadd.f32 %v1065, %v1091
        %v1095 = vadd.f32 %v1066, %v1091
        %v1096 = vadd.f32 %v1067, %v1091
        %v1097 = vadd.f32 %v1068, %v1091
        %v1098 = vadd.f32 %v1069, %v1091
        %v1099 = vadd.f32 %v1070, %v1091
        %v1100 = vadd.f32 %v1071, %v1091
        %v1101 = vadd.f32 %v1072, %v1091
        %v1102 = vadd.f32 %v1073, %v1091
        %v1103 = vadd.f32 %v1074, %v1091
        %v1104 = vadd.f32 %v1075, %v1091
        %v1105 = vadd.f32 %v1076, %v1091
        %v1106 = vadd.f32 %v1077, %v1091
        %v1107 = vadd.f32 %v1078, %v1091
        %v1108 = vadd.f32 %v1079, %v1091
        %v1109 = vadd.f32 %v1080, %v1091
        %v1110 = vadd.f32 %v1081, %v1091
        %v1111 = vadd.f32 %v1082, %v1091
        %v1112 = vadd.f32 %v1083, %v1091
        %v1113 = vadd.f32 %v1084, %v1091
        %v1114 = vadd.f32 %v1085, %v1091
        %v1115 = vmax.f32 %v1093, 0.0
        %v1116 = vmax.f32 %v1094, 0.0
        %v1117 = vmax.f32 %v1095, 0.0
        %v1118 = vmax.f32 %v1096, 0.0
        %v1119 = vmax.f32 %v1097, 0.0
        %v1120 = vmax.f32 %v1098, 0.0
        %v1121 = vmax.f32 %v1099, 0.0
        %v1122 = vmax.f32 %v1100, 0.0
        %v1123 = vmax.f32 %v1101, 0.0
        %v1124 = vmax.f32 %v1102, 0.0
        %v1125 = vmax.f32 %v1103, 0.0
        %v1126 = vmax.f32 %v1104, 0.0
        %v1127 = vmax.f32 %v1105, 0.0
        %v1128 = vmax.f32 %v1106, 0.0
        %v1129 = vmax.f32 %v1107, 0.0
        %v1130 = vmax.f32 %v1108, 0.0
        %v1131 = vmax.f32 %v1109, 0.0
        %v1132 = vmax.f32 %v1110, 0.0
        %v1133 = vmax.f32 %v1111, 0.0
        %v1134 = vmax.f32 %v1112, 0.0
        %v1135 = vmax.f32 %v1113, 0.0
        %v1136 = vmax.f32 %v1114, 0.0
        %vm1137 = vcmask 261120
        %1138 = vst.msk [vmem:[#allocation2] sm:$0xff] %vm1137, %v1115
        %1139 = vst.msk [vmem:[#allocation2 + $0x8] sm:$0xff] %vm1137, %v1116
        %1140 = vst.msk [vmem:[#allocation2 + $0x10] sm:$0xff] %vm1137, %v1117
        %1141 = vst.msk [vmem:[#allocation2 + $0x18] sm:$0xff] %vm1137, %v1118
        %1142 = vst.msk [vmem:[#allocation2 + $0x20] sm:$0xff] %vm1137, %v1119
        %1143 = vst.msk [vmem:[#allocation2 + $0x28] sm:$0xff] %vm1137, %v1120
        %1144 = vst.msk [vmem:[#allocation2 + $0x30] sm:$0xff] %vm1137, %v1121
        %1145 = vst.msk [vmem:[#allocation2 + $0x38] sm:$0xff] %vm1137, %v1122
        %1146 = vst.msk [vmem:[#allocation2 + $0x40] sm:$0xff] %vm1137, %v1123
        %1147 = vst.msk [vmem:[#allocation2 + $0x48] sm:$0xff] %vm1137, %v1124
        %1148 = vst.msk [vmem:[#allocation2 + $0x50] sm:$0xff] %vm1137, %v1125
        %1149 = vst.msk [vmem:[#allocation2 + $0x58] sm:$0xff] %vm1137, %v1126
        %1150 = vst.msk [vmem:[#allocation2 + $0x60] sm:$0xff] %vm1137, %v1127
        %1151 = vst.msk [vmem:[#allocation2 + $0x68] sm:$0xff] %vm1137, %v1128
        %1152 = vst.msk [vmem:[#allocation2 + $0x70] sm:$0xff] %vm1137, %v1129
        %1153 = vst.msk [vmem:[#allocation2 + $0x78] sm:$0xff] %vm1137, %v1130
        %1154 = vst.msk [vmem:[#allocation2 + $0x80] sm:$0xff] %vm1137, %v1131
        %1155 = vst.msk [vmem:[#allocation2 + $0x88] sm:$0xff] %vm1137, %v1132
        %1156 = vst.msk [vmem:[#allocation2 + $0x90] sm:$0xff] %vm1137, %v1133
        %1157 = vst.msk [vmem:[#allocation2 + $0x98] sm:$0xff] %vm1137, %v1134
        %1158 = vst.msk [vmem:[#allocation2 + $0xa0] sm:$0xff] %vm1137, %v1135
        %vm1159 = vcmask 256000
        %1160 = vst.msk [vmem:[#allocation2 + $0xa8] sm:$0x7] %vm1159, %v1136
        %v1161 = vld [vmem:[#allocation2] sm:$0xff]
        %v1162 = vld [vmem:[#allocation2 + $0x8] sm:$0xff]
        %v1163 = vld [vmem:[#allocation2 + $0x10] sm:$0xff]
        %v1164 = vld [vmem:[#allocation2 + $0x18] sm:$0xff]
        %v1165 = vld [vmem:[#allocation2 + $0x20] sm:$0xff]
        %v1166 = vld [vmem:[#allocation2 + $0x28] sm:$0xff]
        %v1167 = vld [vmem:[#allocation2 + $0x30] sm:$0xff]
        %v1168 = vld [vmem:[#allocation2 + $0x38] sm:$0xff]
        %v1169 = vld [vmem:[#allocation2 + $0x40] sm:$0xff]
        %v1170 = vld [vmem:[#allocation2 + $0x48] sm:$0xff]
        %v1171 = vld [vmem:[#allocation2 + $0x50] sm:$0xff]
        %v1172 = vld [vmem:[#allocation2 + $0x58] sm:$0xff]
        %v1173 = vld [vmem:[#allocation2 + $0x60] sm:$0xff]
        %v1174 = vld [vmem:[#allocation2 + $0x68] sm:$0xff]
        %v1175 = vld [vmem:[#allocation2 + $0x70] sm:$0xff]
        %v1176 = vld [vmem:[#allocation2 + $0x78] sm:$0xff]
        %v1177 = vld [vmem:[#allocation2 + $0x80] sm:$0xff]
        %v1178 = vld [vmem:[#allocation2 + $0x88] sm:$0x1]
        %v1179 = vld [vmem:[%s3] sm:$0xff]
        %v1180 = vld [vmem:[%s3 + $0x8] sm:$0xff]
        %v1181 = vld [vmem:[%s3 + $0x10] sm:$0xff]
        %v1182 = vld [vmem:[%s3 + $0x18] sm:$0xff]
        %v1183 = vld [vmem:[#allocation2 + $0x1] sm:$0xff]
        %v1184 = vld [vmem:[#allocation2 + $0x9] sm:$0xff]
        %v1185 = vld [vmem:[#allocation2 + $0x11] sm:$0xff]
        %v1186 = vld [vmem:[#allocation2 + $0x19] sm:$0xff]
        %v1187 = vld [vmem:[#allocation2 + $0x21] sm:$0xff]
        %v1188 = vld [vmem:[#allocation2 + $0x29] sm:$0xff]
        %v1189 = vld [vmem:[#allocation2 + $0x31] sm:$0xff]
        %v1190 = vld [vmem:[#allocation2 + $0x39] sm:$0xff]
        %v1191 = vld [vmem:[#allocation2 + $0x41] sm:$0xff]
        %v1192 = vld [vmem:[#allocation2 + $0x49] sm:$0xff]
        %v1193 = vld [vmem:[#allocation2 + $0x51] sm:$0xff]
        %v1194 = vld [vmem:[#allocation2 + $0x59] sm:$0xff]
        %v1195 = vld [vmem:[#allocation2 + $0x61] sm:$0xff]
        %v1196 = vld [vmem:[#allocation2 + $0x69] sm:$0xff]
        %v1197 = vld [vmem:[#allocation2 + $0x71] sm:$0xff]
        %v1198 = vld [vmem:[#allocation2 + $0x79] sm:$0xff]
        %v1199 = vld [vmem:[#allocation2 + $0x81] sm:$0xff]
        %v1200 = vld [vmem:[#allocation2 + $0x89] sm:$0x1]
        %s1201 = scalar_lea.vmem %s3, 32
        %v1202 = vld [vmem:[%s1201] sm:$0xff]
        %v1203 = vld [vmem:[%s1201 + $0x8] sm:$0xff]
        %v1204 = vld [vmem:[%s1201 + $0x10] sm:$0xff]
        %v1205 = vld [vmem:[%s1201 + $0x18] sm:$0xff]
        %v1207 = vsel %vm1137, %v1183, 0
        %v1210 = vsel %vm1137, %v1184, 0
        %v1213 = vsel %vm1137, %v1185, 0
        %v1216 = vsel %vm1137, %v1186, 0
        %v1219 = vsel %vm1137, %v1187, 0
        %v1222 = vsel %vm1137, %v1188, 0
        %v1225 = vsel %vm1137, %v1189, 0
        %v1228 = vsel %vm1137, %v1190, 0
        %v1231 = vsel %vm1137, %v1191, 0
        %v1234 = vsel %vm1137, %v1192, 0
        %v1237 = vsel %vm1137, %v1193, 0
        %v1240 = vsel %vm1137, %v1194, 0
        %v1243 = vsel %vm1137, %v1195, 0
        %v1246 = vsel %vm1137, %v1196, 0
        %v1249 = vsel %vm1137, %v1197, 0
        %v1252 = vsel %vm1137, %v1198, 0
        %v1255 = vsel %vm1137, %v1199, 0
        %v1258 = vsel %vm1137, %v1200, 0
        %1260 = vmatprep.subr.mxu0 0.0
        %1261 = vmatpush1.msra.mxu0 0.0
        %1262 = vmatprep.subr.mxu0 0.0
        %1263 = vmatpush1.msra.mxu0 0.0
        %1264 = vmatprep.subr.mxu0 0.0
        %1265 = vmatpush1.msra.mxu0 0.0
        %1266 = vmatprep.subr.mxu0 0.0
        %1267 = vmatpush1.msra.mxu0 0.0
        %1268 = vmatprep.subr.mxu0 0.0
        %1269 = vmatpush1.msra.mxu0 0.0
        %1270 = vmatprep.subr.mxu0 0.0
        %1271 = vmatpush1.msra.mxu0 0.0
        %1272 = vmatprep.subr.mxu0 0.0
        %1273 = vmatpush1.msra.mxu0 0.0
        %1274 = vmatprep.subr.mxu0 0.0
        %1275 = vmatpush1.msra.mxu0 0.0
        %1276 = vmatprep.subr.mxu0 0.0
        %1277 = vmatpush1.msra.mxu0 0.0
        %1278 = vmatprep.subr.mxu0 0.0
        %1279 = vmatpush1.msra.mxu0 0.0
        %1280 = vmatprep.subr.mxu0 0.0
        %1281 = vmatpush1.msra.mxu0 0.0
        %1282 = vmatprep.subr.mxu0 0.0
        %1283 = vmatpush1.msra.mxu0 0.0
        %1284 = vmatprep.subr.mxu0 0.0
        %1285 = vmatpush1.msra.mxu0 %v1205
        %1286 = vmatprep.subr.mxu0 0.0
        %1287 = vmatpush1.msra.mxu0 %v1204
        %1288 = vmatprep.subr.mxu0 0.0
        %1289 = vmatpush1.msra.mxu0 %v1203
        %1290 = vmatprep.subr.mxu0 0.0
        %1291 = vmatpush1.msra.mxu0 %v1202
        %1292 = vmatprep.subr.mxu0 0.0
        %1293 = vmatpush2.msra.mxu0 0.0
        %1294 = vmatprep.subr.mxu0 0.0
        %1295 = vmatpush2.msra.mxu0 0.0
        %1296 = vmatprep.subr.mxu0 0.0
        %1297 = vmatpush2.msra.mxu0 0.0
        %1298 = vmatprep.subr.mxu0 0.0
        %1299 = vmatpush2.msra.mxu0 0.0
        %1300 = vmatprep.subr.mxu0 0.0
        %1301 = vmatpush2.msra.mxu0 0.0
        %1302 = vmatprep.subr.mxu0 0.0
        %1303 = vmatpush2.msra.mxu0 0.0
        %1304 = vmatprep.subr.mxu0 0.0
        %1305 = vmatpush2.msra.mxu0 0.0
        %1306 = vmatprep.subr.mxu0 0.0
        %1307 = vmatpush2.msra.mxu0 0.0
        %1308 = vmatprep.subr.mxu0 0.0
        %1309 = vmatpush2.msra.mxu0 0.0
        %1310 = vmatprep.subr.mxu0 0.0
        %1311 = vmatpush2.msra.mxu0 0.0
        %1312 = vmatprep.subr.mxu0 0.0
        %1313 = vmatpush2.msra.mxu0 0.0
        %1314 = vmatprep.subr.mxu0 0.0
        %1315 = vmatpush2.msra.mxu0 0.0
        %1316 = vmatprep.subr.mxu0 0.0
        %1317 = vmatpush2.msra.mxu0 0.0
        %1318 = vmatprep.subr.mxu0 0.0
        %1319 = vmatpush2.msra.mxu0 0.0
        %1320 = vmatprep.subr.mxu0 0.0
        %1321 = vmatpush2.msra.mxu0 0.0
        %1322 = vmatprep.subr.mxu0 0.0
        %1323 = vmatpush2.msra.mxu0 0.0
        %1324 = vmatprep.mubr.f32.mxu0 0.0
        %1325 = vmatmul.mubr.f32.gmra.mxu0 %v1207
        %v1326 = vpop.f32.mrf.mxu0
        %v1327 = vadd.f32 0.0, %v1326
        %v1328 = vpop.f32.mrf.mxu0
        %1329 = vmatprep.mubr.f32.mxu0 0.0
        %1330 = vmatmul.mubr.f32.gmra.mxu0 %v1210
        %v1331 = vpop.f32.mrf.mxu0
        %v1332 = vadd.f32 0.0, %v1331
        %v1333 = vpop.f32.mrf.mxu0
        %1334 = vmatprep.mubr.f32.mxu0 0.0
        %1335 = vmatmul.mubr.f32.gmra.mxu0 %v1213
        %v1336 = vpop.f32.mrf.mxu0
        %v1337 = vadd.f32 0.0, %v1336
        %v1338 = vpop.f32.mrf.mxu0
        %1339 = vmatprep.mubr.f32.mxu0 0.0
        %1340 = vmatmul.mubr.f32.gmra.mxu0 %v1216
        %v1341 = vpop.f32.mrf.mxu0
        %v1342 = vadd.f32 0.0, %v1341
        %v1343 = vpop.f32.mrf.mxu0
        %1344 = vmatprep.mubr.f32.mxu0 0.0
        %1345 = vmatmul.mubr.f32.gmra.mxu0 %v1219
        %v1346 = vpop.f32.mrf.mxu0
        %v1347 = vadd.f32 0.0, %v1346
        %v1348 = vpop.f32.mrf.mxu0
        %1349 = vmatprep.mubr.f32.mxu0 0.0
        %1350 = vmatmul.mubr.f32.gmra.mxu0 %v1222
        %v1351 = vpop.f32.mrf.mxu0
        %v1352 = vadd.f32 0.0, %v1351
        %v1353 = vpop.f32.mrf.mxu0
        %1354 = vmatprep.mubr.f32.mxu0 0.0
        %1355 = vmatmul.mubr.f32.gmra.mxu0 %v1225
        %v1356 = vpop.f32.mrf.mxu0
        %v1357 = vadd.f32 0.0, %v1356
        %v1358 = vpop.f32.mrf.mxu0
        %1359 = vmatprep.mubr.f32.mxu0 0.0
        %1360 = vmatmul.mubr.f32.gmra.mxu0 %v1228
        %v1361 = vpop.f32.mrf.mxu0
        %v1362 = vadd.f32 0.0, %v1361
        %v1363 = vpop.f32.mrf.mxu0
        %1364 = vmatprep.mubr.f32.mxu0 0.0
        %1365 = vmatmul.mubr.f32.gmra.mxu0 %v1231
        %v1366 = vpop.f32.mrf.mxu0
        %v1367 = vadd.f32 0.0, %v1366
        %v1368 = vpop.f32.mrf.mxu0
        %1369 = vmatprep.mubr.f32.mxu0 0.0
        %1370 = vmatmul.mubr.f32.gmra.mxu0 %v1234
        %v1371 = vpop.f32.mrf.mxu0
        %v1372 = vadd.f32 0.0, %v1371
        %v1373 = vpop.f32.mrf.mxu0
        %1374 = vmatprep.mubr.f32.mxu0 0.0
        %1375 = vmatmul.mubr.f32.gmra.mxu0 %v1237
        %v1376 = vpop.f32.mrf.mxu0
        %v1377 = vadd.f32 0.0, %v1376
        %v1378 = vpop.f32.mrf.mxu0
        %1379 = vmatprep.mubr.f32.mxu0 0.0
        %1380 = vmatmul.mubr.f32.gmra.mxu0 %v1240
        %v1381 = vpop.f32.mrf.mxu0
        %v1382 = vadd.f32 0.0, %v1381
        %v1383 = vpop.f32.mrf.mxu0
        %1384 = vmatprep.mubr.f32.mxu0 0.0
        %1385 = vmatmul.mubr.f32.gmra.mxu0 %v1243
        %v1386 = vpop.f32.mrf.mxu0
        %v1387 = vadd.f32 0.0, %v1386
        %v1388 = vpop.f32.mrf.mxu0
        %1389 = vmatprep.mubr.f32.mxu0 0.0
        %1390 = vmatmul.mubr.f32.gmra.mxu0 %v1246
        %v1391 = vpop.f32.mrf.mxu0
        %v1392 = vadd.f32 0.0, %v1391
        %v1393 = vpop.f32.mrf.mxu0
        %1394 = vmatprep.mubr.f32.mxu0 0.0
        %1395 = vmatmul.mubr.f32.gmra.mxu0 %v1249
        %v1396 = vpop.f32.mrf.mxu0
        %v1397 = vadd.f32 0.0, %v1396
        %v1398 = vpop.f32.mrf.mxu0
        %1399 = vmatprep.mubr.f32.mxu0 0.0
        %1400 = vmatmul.mubr.f32.gmra.mxu0 %v1252
        %v1401 = vpop.f32.mrf.mxu0
        %v1402 = vadd.f32 0.0, %v1401
        %v1403 = vpop.f32.mrf.mxu0
        %1404 = vmatprep.mubr.f32.mxu0 0.0
        %1405 = vmatmul.mubr.f32.gmra.mxu0 %v1255
        %v1406 = vpop.f32.mrf.mxu0
        %v1407 = vadd.f32 0.0, %v1406
        %v1408 = vpop.f32.mrf.mxu0
        %1409 = vmatprep.mubr.f32.mxu0 0.0
        %1410 = vmatmul.mubr.f32.gmra.mxu0 %v1258
        %v1411 = vpop.f32.mrf.mxu0
        %v1412 = vadd.f32 0.0, %v1411
        %v1413 = vpop.f32.mrf.mxu0
        %1414 = vdwg.mxu0
        %v1416 = vsel %vm1137, %v1161, 0
        %v1419 = vsel %vm1137, %v1162, 0
        %v1422 = vsel %vm1137, %v1163, 0
        %v1425 = vsel %vm1137, %v1164, 0
        %v1428 = vsel %vm1137, %v1165, 0
        %v1431 = vsel %vm1137, %v1166, 0
        %v1434 = vsel %vm1137, %v1167, 0
        %v1437 = vsel %vm1137, %v1168, 0
        %v1440 = vsel %vm1137, %v1169, 0
        %v1443 = vsel %vm1137, %v1170, 0
        %v1446 = vsel %vm1137, %v1171, 0
        %v1449 = vsel %vm1137, %v1172, 0
        %v1452 = vsel %vm1137, %v1173, 0
        %v1455 = vsel %vm1137, %v1174, 0
        %v1458 = vsel %vm1137, %v1175, 0
        %v1461 = vsel %vm1137, %v1176, 0
        %v1464 = vsel %vm1137, %v1177, 0
        %v1467 = vsel %vm1137, %v1178, 0
        %1469 = vmatprep.subr.mxu0 0.0
        %1470 = vmatpush1.msra.mxu0 0.0
        %1471 = vmatprep.subr.mxu0 0.0
        %1472 = vmatpush1.msra.mxu0 0.0
        %1473 = vmatprep.subr.mxu0 0.0
        %1474 = vmatpush1.msra.mxu0 0.0
        %1475 = vmatprep.subr.mxu0 0.0
        %1476 = vmatpush1.msra.mxu0 0.0
        %1477 = vmatprep.subr.mxu0 0.0
        %1478 = vmatpush1.msra.mxu0 0.0
        %1479 = vmatprep.subr.mxu0 0.0
        %1480 = vmatpush1.msra.mxu0 0.0
        %1481 = vmatprep.subr.mxu0 0.0
        %1482 = vmatpush1.msra.mxu0 0.0
        %1483 = vmatprep.subr.mxu0 0.0
        %1484 = vmatpush1.msra.mxu0 0.0
        %1485 = vmatprep.subr.mxu0 0.0
        %1486 = vmatpush1.msra.mxu0 0.0
        %1487 = vmatprep.subr.mxu0 0.0
        %1488 = vmatpush1.msra.mxu0 0.0
        %1489 = vmatprep.subr.mxu0 0.0
        %1490 = vmatpush1.msra.mxu0 0.0
        %1491 = vmatprep.subr.mxu0 0.0
        %1492 = vmatpush1.msra.mxu0 0.0
        %1493 = vmatprep.subr.mxu0 0.0
        %1494 = vmatpush1.msra.mxu0 %v1182
        %1495 = vmatprep.subr.mxu0 0.0
        %1496 = vmatpush1.msra.mxu0 %v1181
        %1497 = vmatprep.subr.mxu0 0.0
        %1498 = vmatpush1.msra.mxu0 %v1180
        %1499 = vmatprep.subr.mxu0 0.0
        %1500 = vmatpush1.msra.mxu0 %v1179
        %1501 = vmatprep.subr.mxu0 0.0
        %1502 = vmatpush2.msra.mxu0 0.0
        %1503 = vmatprep.subr.mxu0 0.0
        %1504 = vmatpush2.msra.mxu0 0.0
        %1505 = vmatprep.subr.mxu0 0.0
        %1506 = vmatpush2.msra.mxu0 0.0
        %1507 = vmatprep.subr.mxu0 0.0
        %1508 = vmatpush2.msra.mxu0 0.0
        %1509 = vmatprep.subr.mxu0 0.0
        %1510 = vmatpush2.msra.mxu0 0.0
        %1511 = vmatprep.subr.mxu0 0.0
        %1512 = vmatpush2.msra.mxu0 0.0
        %1513 = vmatprep.subr.mxu0 0.0
        %1514 = vmatpush2.msra.mxu0 0.0
        %1515 = vmatprep.subr.mxu0 0.0
        %1516 = vmatpush2.msra.mxu0 0.0
        %1517 = vmatprep.subr.mxu0 0.0
        %1518 = vmatpush2.msra.mxu0 0.0
        %1519 = vmatprep.subr.mxu0 0.0
        %1520 = vmatpush2.msra.mxu0 0.0
        %1521 = vmatprep.subr.mxu0 0.0
        %1522 = vmatpush2.msra.mxu0 0.0
        %1523 = vmatprep.subr.mxu0 0.0
        %1524 = vmatpush2.msra.mxu0 0.0
        %1525 = vmatprep.subr.mxu0 0.0
        %1526 = vmatpush2.msra.mxu0 0.0
        %1527 = vmatprep.subr.mxu0 0.0
        %1528 = vmatpush2.msra.mxu0 0.0
        %1529 = vmatprep.subr.mxu0 0.0
        %1530 = vmatpush2.msra.mxu0 0.0
        %1531 = vmatprep.subr.mxu0 0.0
        %1532 = vmatpush2.msra.mxu0 0.0
        %1533 = vmatprep.mubr.f32.mxu0 0.0
        %1534 = vmatmul.mubr.f32.gmra.mxu0 %v1416
        %v1535 = vpop.f32.mrf.mxu0
        %v1536 = vadd.f32 %v1327, %v1535
        %v1537 = vpop.f32.mrf.mxu0
        %1538 = vmatprep.mubr.f32.mxu0 0.0
        %1539 = vmatmul.mubr.f32.gmra.mxu0 %v1419
        %v1540 = vpop.f32.mrf.mxu0
        %v1541 = vadd.f32 %v1332, %v1540
        %v1542 = vpop.f32.mrf.mxu0
        %1543 = vmatprep.mubr.f32.mxu0 0.0
        %1544 = vmatmul.mubr.f32.gmra.mxu0 %v1422
        %v1545 = vpop.f32.mrf.mxu0
        %v1546 = vadd.f32 %v1337, %v1545
        %v1547 = vpop.f32.mrf.mxu0
        %1548 = vmatprep.mubr.f32.mxu0 0.0
        %1549 = vmatmul.mubr.f32.gmra.mxu0 %v1425
        %v1550 = vpop.f32.mrf.mxu0
        %v1551 = vadd.f32 %v1342, %v1550
        %v1552 = vpop.f32.mrf.mxu0
        %1553 = vmatprep.mubr.f32.mxu0 0.0
        %1554 = vmatmul.mubr.f32.gmra.mxu0 %v1428
        %v1555 = vpop.f32.mrf.mxu0
        %v1556 = vadd.f32 %v1347, %v1555
        %v1557 = vpop.f32.mrf.mxu0
        %1558 = vmatprep.mubr.f32.mxu0 0.0
        %1559 = vmatmul.mubr.f32.gmra.mxu0 %v1431
        %v1560 = vpop.f32.mrf.mxu0
        %v1561 = vadd.f32 %v1352, %v1560
        %v1562 = vpop.f32.mrf.mxu0
        %1563 = vmatprep.mubr.f32.mxu0 0.0
        %1564 = vmatmul.mubr.f32.gmra.mxu0 %v1434
        %v1565 = vpop.f32.mrf.mxu0
        %v1566 = vadd.f32 %v1357, %v1565
        %v1567 = vpop.f32.mrf.mxu0
        %1568 = vmatprep.mubr.f32.mxu0 0.0
        %1569 = vmatmul.mubr.f32.gmra.mxu0 %v1437
        %v1570 = vpop.f32.mrf.mxu0
        %v1571 = vadd.f32 %v1362, %v1570
        %v1572 = vpop.f32.mrf.mxu0
        %1573 = vmatprep.mubr.f32.mxu0 0.0
        %1574 = vmatmul.mubr.f32.gmra.mxu0 %v1440
        %v1575 = vpop.f32.mrf.mxu0
        %v1576 = vadd.f32 %v1367, %v1575
        %v1577 = vpop.f32.mrf.mxu0
        %1578 = vmatprep.mubr.f32.mxu0 0.0
        %1579 = vmatmul.mubr.f32.gmra.mxu0 %v1443
        %v1580 = vpop.f32.mrf.mxu0
        %v1581 = vadd.f32 %v1372, %v1580
        %v1582 = vpop.f32.mrf.mxu0
        %1583 = vmatprep.mubr.f32.mxu0 0.0
        %1584 = vmatmul.mubr.f32.gmra.mxu0 %v1446
        %v1585 = vpop.f32.mrf.mxu0
        %v1586 = vadd.f32 %v1377, %v1585
        %v1587 = vpop.f32.mrf.mxu0
        %1588 = vmatprep.mubr.f32.mxu0 0.0
        %1589 = vmatmul.mubr.f32.gmra.mxu0 %v1449
        %v1590 = vpop.f32.mrf.mxu0
        %v1591 = vadd.f32 %v1382, %v1590
        %v1592 = vpop.f32.mrf.mxu0
        %1593 = vmatprep.mubr.f32.mxu0 0.0
        %1594 = vmatmul.mubr.f32.gmra.mxu0 %v1452
        %v1595 = vpop.f32.mrf.mxu0
        %v1596 = vadd.f32 %v1387, %v1595
        %v1597 = vpop.f32.mrf.mxu0
        %1598 = vmatprep.mubr.f32.mxu0 0.0
        %1599 = vmatmul.mubr.f32.gmra.mxu0 %v1455
        %v1600 = vpop.f32.mrf.mxu0
        %v1601 = vadd.f32 %v1392, %v1600
        %v1602 = vpop.f32.mrf.mxu0
        %1603 = vmatprep.mubr.f32.mxu0 0.0
        %1604 = vmatmul.mubr.f32.gmra.mxu0 %v1458
        %v1605 = vpop.f32.mrf.mxu0
        %v1606 = vadd.f32 %v1397, %v1605
        %v1607 = vpop.f32.mrf.mxu0
        %1608 = vmatprep.mubr.f32.mxu0 0.0
        %1609 = vmatmul.mubr.f32.gmra.mxu0 %v1461
        %v1610 = vpop.f32.mrf.mxu0
        %v1611 = vadd.f32 %v1402, %v1610
        %v1612 = vpop.f32.mrf.mxu0
        %1613 = vmatprep.mubr.f32.mxu0 0.0
        %1614 = vmatmul.mubr.f32.gmra.mxu0 %v1464
        %v1615 = vpop.f32.mrf.mxu0
        %v1616 = vadd.f32 %v1407, %v1615
        %v1617 = vpop.f32.mrf.mxu0
        %1618 = vmatprep.mubr.f32.mxu0 0.0
        %1619 = vmatmul.mubr.f32.gmra.mxu0 %v1467
        %v1620 = vpop.f32.mrf.mxu0
        %v1621 = vadd.f32 %v1412, %v1620
        %v1622 = vpop.f32.mrf.mxu0
        %1623 = vdwg.mxu0
        %v1624 = vld [vmem:[#allocation2 + $0x2] sm:$0xff]
        %v1625 = vld [vmem:[#allocation2 + $0xa] sm:$0xff]
        %v1626 = vld [vmem:[#allocation2 + $0x12] sm:$0xff]
        %v1627 = vld [vmem:[#allocation2 + $0x1a] sm:$0xff]
        %v1628 = vld [vmem:[#allocation2 + $0x22] sm:$0xff]
        %v1629 = vld [vmem:[#allocation2 + $0x2a] sm:$0xff]
        %v1630 = vld [vmem:[#allocation2 + $0x32] sm:$0xff]
        %v1631 = vld [vmem:[#allocation2 + $0x3a] sm:$0xff]
        %v1632 = vld [vmem:[#allocation2 + $0x42] sm:$0xff]
        %v1633 = vld [vmem:[#allocation2 + $0x4a] sm:$0xff]
        %v1634 = vld [vmem:[#allocation2 + $0x52] sm:$0xff]
        %v1635 = vld [vmem:[#allocation2 + $0x5a] sm:$0xff]
        %v1636 = vld [vmem:[#allocation2 + $0x62] sm:$0xff]
        %v1637 = vld [vmem:[#allocation2 + $0x6a] sm:$0xff]
        %v1638 = vld [vmem:[#allocation2 + $0x72] sm:$0xff]
        %v1639 = vld [vmem:[#allocation2 + $0x7a] sm:$0xff]
        %v1640 = vld [vmem:[#allocation2 + $0x82] sm:$0xff]
        %v1641 = vld [vmem:[#allocation2 + $0x8a] sm:$0x1]
        %s1642 = scalar_lea.vmem %s3, 64
        %v1643 = vld [vmem:[%s1642] sm:$0xff]
        %v1644 = vld [vmem:[%s1642 + $0x8] sm:$0xff]
        %v1645 = vld [vmem:[%s1642 + $0x10] sm:$0xff]
        %v1646 = vld [vmem:[%s1642 + $0x18] sm:$0xff]
        %v1648 = vsel %vm1137, %v1624, 0
        %v1651 = vsel %vm1137, %v1625, 0
        %v1654 = vsel %vm1137, %v1626, 0
        %v1657 = vsel %vm1137, %v1627, 0
        %v1660 = vsel %vm1137, %v1628, 0
        %v1663 = vsel %vm1137, %v1629, 0
        %v1666 = vsel %vm1137, %v1630, 0
        %v1669 = vsel %vm1137, %v1631, 0
        %v1672 = vsel %vm1137, %v1632, 0
        %v1675 = vsel %vm1137, %v1633, 0
        %v1678 = vsel %vm1137, %v1634, 0
        %v1681 = vsel %vm1137, %v1635, 0
        %v1684 = vsel %vm1137, %v1636, 0
        %v1687 = vsel %vm1137, %v1637, 0
        %v1690 = vsel %vm1137, %v1638, 0
        %v1693 = vsel %vm1137, %v1639, 0
        %v1696 = vsel %vm1137, %v1640, 0
        %v1699 = vsel %vm1137, %v1641, 0
        %1701 = vmatprep.subr.mxu0 0.0
        %1702 = vmatpush1.msra.mxu0 0.0
        %1703 = vmatprep.subr.mxu0 0.0
        %1704 = vmatpush1.msra.mxu0 0.0
        %1705 = vmatprep.subr.mxu0 0.0
        %1706 = vmatpush1.msra.mxu0 0.0
        %1707 = vmatprep.subr.mxu0 0.0
        %1708 = vmatpush1.msra.mxu0 0.0
        %1709 = vmatprep.subr.mxu0 0.0
        %1710 = vmatpush1.msra.mxu0 0.0
        %1711 = vmatprep.subr.mxu0 0.0
        %1712 = vmatpush1.msra.mxu0 0.0
        %1713 = vmatprep.subr.mxu0 0.0
        %1714 = vmatpush1.msra.mxu0 0.0
        %1715 = vmatprep.subr.mxu0 0.0
        %1716 = vmatpush1.msra.mxu0 0.0
        %1717 = vmatprep.subr.mxu0 0.0
        %1718 = vmatpush1.msra.mxu0 0.0
        %1719 = vmatprep.subr.mxu0 0.0
        %1720 = vmatpush1.msra.mxu0 0.0
        %1721 = vmatprep.subr.mxu0 0.0
        %1722 = vmatpush1.msra.mxu0 0.0
        %1723 = vmatprep.subr.mxu0 0.0
        %1724 = vmatpush1.msra.mxu0 0.0
        %1725 = vmatprep.subr.mxu0 0.0
        %1726 = vmatpush1.msra.mxu0 %v1646
        %1727 = vmatprep.subr.mxu0 0.0
        %1728 = vmatpush1.msra.mxu0 %v1645
        %1729 = vmatprep.subr.mxu0 0.0
        %1730 = vmatpush1.msra.mxu0 %v1644
        %1731 = vmatprep.subr.mxu0 0.0
        %1732 = vmatpush1.msra.mxu0 %v1643
        %1733 = vmatprep.subr.mxu0 0.0
        %1734 = vmatpush2.msra.mxu0 0.0
        %1735 = vmatprep.subr.mxu0 0.0
        %1736 = vmatpush2.msra.mxu0 0.0
        %1737 = vmatprep.subr.mxu0 0.0
        %1738 = vmatpush2.msra.mxu0 0.0
        %1739 = vmatprep.subr.mxu0 0.0
        %1740 = vmatpush2.msra.mxu0 0.0
        %1741 = vmatprep.subr.mxu0 0.0
        %1742 = vmatpush2.msra.mxu0 0.0
        %1743 = vmatprep.subr.mxu0 0.0
        %1744 = vmatpush2.msra.mxu0 0.0
        %1745 = vmatprep.subr.mxu0 0.0
        %1746 = vmatpush2.msra.mxu0 0.0
        %1747 = vmatprep.subr.mxu0 0.0
        %1748 = vmatpush2.msra.mxu0 0.0
        %1749 = vmatprep.subr.mxu0 0.0
        %1750 = vmatpush2.msra.mxu0 0.0
        %1751 = vmatprep.subr.mxu0 0.0
        %1752 = vmatpush2.msra.mxu0 0.0
        %1753 = vmatprep.subr.mxu0 0.0
        %1754 = vmatpush2.msra.mxu0 0.0
        %1755 = vmatprep.subr.mxu0 0.0
        %1756 = vmatpush2.msra.mxu0 0.0
        %1757 = vmatprep.subr.mxu0 0.0
        %1758 = vmatpush2.msra.mxu0 0.0
        %1759 = vmatprep.subr.mxu0 0.0
        %1760 = vmatpush2.msra.mxu0 0.0
        %1761 = vmatprep.subr.mxu0 0.0
        %1762 = vmatpush2.msra.mxu0 0.0
        %1763 = vmatprep.subr.mxu0 0.0
        %1764 = vmatpush2.msra.mxu0 0.0
        %1765 = vmatprep.mubr.f32.mxu0 0.0
        %1766 = vmatmul.mubr.f32.gmra.mxu0 %v1648
        %v1767 = vpop.f32.mrf.mxu0
        %v1768 = vadd.f32 0.0, %v1767
        %v1769 = vpop.f32.mrf.mxu0
        %1770 = vmatprep.mubr.f32.mxu0 0.0
        %1771 = vmatmul.mubr.f32.gmra.mxu0 %v1651
        %v1772 = vpop.f32.mrf.mxu0
        %v1773 = vadd.f32 0.0, %v1772
        %v1774 = vpop.f32.mrf.mxu0
        %1775 = vmatprep.mubr.f32.mxu0 0.0
        %1776 = vmatmul.mubr.f32.gmra.mxu0 %v1654
        %v1777 = vpop.f32.mrf.mxu0
        %v1778 = vadd.f32 0.0, %v1777
        %v1779 = vpop.f32.mrf.mxu0
        %1780 = vmatprep.mubr.f32.mxu0 0.0
        %1781 = vmatmul.mubr.f32.gmra.mxu0 %v1657
        %v1782 = vpop.f32.mrf.mxu0
        %v1783 = vadd.f32 0.0, %v1782
        %v1784 = vpop.f32.mrf.mxu0
        %1785 = vmatprep.mubr.f32.mxu0 0.0
        %1786 = vmatmul.mubr.f32.gmra.mxu0 %v1660
        %v1787 = vpop.f32.mrf.mxu0
        %v1788 = vadd.f32 0.0, %v1787
        %v1789 = vpop.f32.mrf.mxu0
        %1790 = vmatprep.mubr.f32.mxu0 0.0
        %1791 = vmatmul.mubr.f32.gmra.mxu0 %v1663
        %v1792 = vpop.f32.mrf.mxu0
        %v1793 = vadd.f32 0.0, %v1792
        %v1794 = vpop.f32.mrf.mxu0
        %1795 = vmatprep.mubr.f32.mxu0 0.0
        %1796 = vmatmul.mubr.f32.gmra.mxu0 %v1666
        %v1797 = vpop.f32.mrf.mxu0
        %v1798 = vadd.f32 0.0, %v1797
        %v1799 = vpop.f32.mrf.mxu0
        %1800 = vmatprep.mubr.f32.mxu0 0.0
        %1801 = vmatmul.mubr.f32.gmra.mxu0 %v1669
        %v1802 = vpop.f32.mrf.mxu0
        %v1803 = vadd.f32 0.0, %v1802
        %v1804 = vpop.f32.mrf.mxu0
        %1805 = vmatprep.mubr.f32.mxu0 0.0
        %1806 = vmatmul.mubr.f32.gmra.mxu0 %v1672
        %v1807 = vpop.f32.mrf.mxu0
        %v1808 = vadd.f32 0.0, %v1807
        %v1809 = vpop.f32.mrf.mxu0
        %1810 = vmatprep.mubr.f32.mxu0 0.0
        %1811 = vmatmul.mubr.f32.gmra.mxu0 %v1675
        %v1812 = vpop.f32.mrf.mxu0
        %v1813 = vadd.f32 0.0, %v1812
        %v1814 = vpop.f32.mrf.mxu0
        %1815 = vmatprep.mubr.f32.mxu0 0.0
        %1816 = vmatmul.mubr.f32.gmra.mxu0 %v1678
        %v1817 = vpop.f32.mrf.mxu0
        %v1818 = vadd.f32 0.0, %v1817
        %v1819 = vpop.f32.mrf.mxu0
        %1820 = vmatprep.mubr.f32.mxu0 0.0
        %1821 = vmatmul.mubr.f32.gmra.mxu0 %v1681
        %v1822 = vpop.f32.mrf.mxu0
        %v1823 = vadd.f32 0.0, %v1822
        %v1824 = vpop.f32.mrf.mxu0
        %1825 = vmatprep.mubr.f32.mxu0 0.0
        %1826 = vmatmul.mubr.f32.gmra.mxu0 %v1684
        %v1827 = vpop.f32.mrf.mxu0
        %v1828 = vadd.f32 0.0, %v1827
        %v1829 = vpop.f32.mrf.mxu0
        %1830 = vmatprep.mubr.f32.mxu0 0.0
        %1831 = vmatmul.mubr.f32.gmra.mxu0 %v1687
        %v1832 = vpop.f32.mrf.mxu0
        %v1833 = vadd.f32 0.0, %v1832
        %v1834 = vpop.f32.mrf.mxu0
        %1835 = vmatprep.mubr.f32.mxu0 0.0
        %1836 = vmatmul.mubr.f32.gmra.mxu0 %v1690
        %v1837 = vpop.f32.mrf.mxu0
        %v1838 = vadd.f32 0.0, %v1837
        %v1839 = vpop.f32.mrf.mxu0
        %1840 = vmatprep.mubr.f32.mxu0 0.0
        %1841 = vmatmul.mubr.f32.gmra.mxu0 %v1693
        %v1842 = vpop.f32.mrf.mxu0
        %v1843 = vadd.f32 0.0, %v1842
        %v1844 = vpop.f32.mrf.mxu0
        %1845 = vmatprep.mubr.f32.mxu0 0.0
        %1846 = vmatmul.mubr.f32.gmra.mxu0 %v1696
        %v1847 = vpop.f32.mrf.mxu0
        %v1848 = vadd.f32 0.0, %v1847
        %v1849 = vpop.f32.mrf.mxu0
        %1850 = vmatprep.mubr.f32.mxu0 0.0
        %1851 = vmatmul.mubr.f32.gmra.mxu0 %v1699
        %v1852 = vpop.f32.mrf.mxu0
        %v1853 = vadd.f32 0.0, %v1852
        %v1854 = vpop.f32.mrf.mxu0
        %1855 = vdwg.mxu0
        %v1856 = vadd.f32 %v1536, %v1768
        %v1857 = vadd.f32 %v1541, %v1773
        %v1858 = vadd.f32 %v1546, %v1778
        %v1859 = vadd.f32 %v1551, %v1783
        %v1860 = vadd.f32 %v1556, %v1788
        %v1861 = vadd.f32 %v1561, %v1793
        %v1862 = vadd.f32 %v1566, %v1798
        %v1863 = vadd.f32 %v1571, %v1803
        %v1864 = vadd.f32 %v1576, %v1808
        %v1865 = vadd.f32 %v1581, %v1813
        %v1866 = vadd.f32 %v1586, %v1818
        %v1867 = vadd.f32 %v1591, %v1823
        %v1868 = vadd.f32 %v1596, %v1828
        %v1869 = vadd.f32 %v1601, %v1833
        %v1870 = vadd.f32 %v1606, %v1838
        %v1871 = vadd.f32 %v1611, %v1843
        %v1872 = vadd.f32 %v1616, %v1848
        %v1873 = vadd.f32 %v1621, %v1853
        %v1874 = vld [vmem:[#allocation2 + $0x10] sm:$0xff]
        %v1875 = vld [vmem:[#allocation2 + $0x18] sm:$0xff]
        %v1876 = vld [vmem:[#allocation2 + $0x20] sm:$0xff]
        %v1877 = vld [vmem:[#allocation2 + $0x28] sm:$0xff]
        %v1878 = vld [vmem:[#allocation2 + $0x30] sm:$0xff]
        %v1879 = vld [vmem:[#allocation2 + $0x38] sm:$0xff]
        %v1880 = vld [vmem:[#allocation2 + $0x40] sm:$0xff]
        %v1881 = vld [vmem:[#allocation2 + $0x48] sm:$0xff]
        %v1882 = vld [vmem:[#allocation2 + $0x50] sm:$0xff]
        %v1883 = vld [vmem:[#allocation2 + $0x58] sm:$0xff]
        %v1884 = vld [vmem:[#allocation2 + $0x60] sm:$0xff]
        %v1885 = vld [vmem:[#allocation2 + $0x68] sm:$0xff]
        %v1886 = vld [vmem:[#allocation2 + $0x70] sm:$0xff]
        %v1887 = vld [vmem:[#allocation2 + $0x78] sm:$0xff]
        %v1888 = vld [vmem:[#allocation2 + $0x80] sm:$0xff]
        %v1889 = vld [vmem:[#allocation2 + $0x88] sm:$0xff]
        %v1890 = vld [vmem:[#allocation2 + $0x90] sm:$0xff]
        %v1891 = vld [vmem:[#allocation2 + $0x98] sm:$0x1]
        %s1892 = scalar_lea.vmem %s3, 96
        %v1893 = vld [vmem:[%s1892] sm:$0xff]
        %v1894 = vld [vmem:[%s1892 + $0x8] sm:$0xff]
        %v1895 = vld [vmem:[%s1892 + $0x10] sm:$0xff]
        %v1896 = vld [vmem:[%s1892 + $0x18] sm:$0xff]
        %v1898 = vsel %vm1137, %v1874, 0
        %v1901 = vsel %vm1137, %v1875, 0
        %v1904 = vsel %vm1137, %v1876, 0
        %v1907 = vsel %vm1137, %v1877, 0
        %v1910 = vsel %vm1137, %v1878, 0
        %v1913 = vsel %vm1137, %v1879, 0
        %v1916 = vsel %vm1137, %v1880, 0
        %v1919 = vsel %vm1137, %v1881, 0
        %v1922 = vsel %vm1137, %v1882, 0
        %v1925 = vsel %vm1137, %v1883, 0
        %v1928 = vsel %vm1137, %v1884, 0
        %v1931 = vsel %vm1137, %v1885, 0
        %v1934 = vsel %vm1137, %v1886, 0
        %v1937 = vsel %vm1137, %v1887, 0
        %v1940 = vsel %vm1137, %v1888, 0
        %v1943 = vsel %vm1137, %v1889, 0
        %v1946 = vsel %vm1137, %v1890, 0
        %v1949 = vsel %vm1137, %v1891, 0
        %1951 = vmatprep.subr.mxu0 0.0
        %1952 = vmatpush1.msra.mxu0 0.0
        %1953 = vmatprep.subr.mxu0 0.0
        %1954 = vmatpush1.msra.mxu0 0.0
        %1955 = vmatprep.subr.mxu0 0.0
        %1956 = vmatpush1.msra.mxu0 0.0
        %1957 = vmatprep.subr.mxu0 0.0
        %1958 = vmatpush1.msra.mxu0 0.0
        %1959 = vmatprep.subr.mxu0 0.0
        %1960 = vmatpush1.msra.mxu0 0.0
        %1961 = vmatprep.subr.mxu0 0.0
        %1962 = vmatpush1.msra.mxu0 0.0
        %1963 = vmatprep.subr.mxu0 0.0
        %1964 = vmatpush1.msra.mxu0 0.0
        %1965 = vmatprep.subr.mxu0 0.0
        %1966 = vmatpush1.msra.mxu0 0.0
        %1967 = vmatprep.subr.mxu0 0.0
        %1968 = vmatpush1.msra.mxu0 0.0
        %1969 = vmatprep.subr.mxu0 0.0
        %1970 = vmatpush1.msra.mxu0 0.0
        %1971 = vmatprep.subr.mxu0 0.0
        %1972 = vmatpush1.msra.mxu0 0.0
        %1973 = vmatprep.subr.mxu0 0.0
        %1974 = vmatpush1.msra.mxu0 0.0
        %1975 = vmatprep.subr.mxu0 0.0
        %1976 = vmatpush1.msra.mxu0 %v1896
        %1977 = vmatprep.subr.mxu0 0.0
        %1978 = vmatpush1.msra.mxu0 %v1895
        %1979 = vmatprep.subr.mxu0 0.0
        %1980 = vmatpush1.msra.mxu0 %v1894
        %1981 = vmatprep.subr.mxu0 0.0
        %1982 = vmatpush1.msra.mxu0 %v1893
        %1983 = vmatprep.subr.mxu0 0.0
        %1984 = vmatpush2.msra.mxu0 0.0
        %1985 = vmatprep.subr.mxu0 0.0
        %1986 = vmatpush2.msra.mxu0 0.0
        %1987 = vmatprep.subr.mxu0 0.0
        %1988 = vmatpush2.msra.mxu0 0.0
        %1989 = vmatprep.subr.mxu0 0.0
        %1990 = vmatpush2.msra.mxu0 0.0
        %1991 = vmatprep.subr.mxu0 0.0
        %1992 = vmatpush2.msra.mxu0 0.0
        %1993 = vmatprep.subr.mxu0 0.0
        %1994 = vmatpush2.msra.mxu0 0.0
        %1995 = vmatprep.subr.mxu0 0.0
        %1996 = vmatpush2.msra.mxu0 0.0
        %1997 = vmatprep.subr.mxu0 0.0
        %1998 = vmatpush2.msra.mxu0 0.0
        %1999 = vmatprep.subr.mxu0 0.0
        %2000 = vmatpush2.msra.mxu0 0.0
        %2001 = vmatprep.subr.mxu0 0.0
        %2002 = vmatpush2.msra.mxu0 0.0
        %2003 = vmatprep.subr.mxu0 0.0
        %2004 = vmatpush2.msra.mxu0 0.0
        %2005 = vmatprep.subr.mxu0 0.0
        %2006 = vmatpush2.msra.mxu0 0.0
        %2007 = vmatprep.subr.mxu0 0.0
        %2008 = vmatpush2.msra.mxu0 0.0
        %2009 = vmatprep.subr.mxu0 0.0
        %2010 = vmatpush2.msra.mxu0 0.0
        %2011 = vmatprep.subr.mxu0 0.0
        %2012 = vmatpush2.msra.mxu0 0.0
        %2013 = vmatprep.subr.mxu0 0.0
        %2014 = vmatpush2.msra.mxu0 0.0
        %2015 = vmatprep.mubr.f32.mxu0 0.0
        %2016 = vmatmul.mubr.f32.gmra.mxu0 %v1898
        %v2017 = vpop.f32.mrf.mxu0
        %v2018 = vadd.f32 0.0, %v2017
        %v2019 = vpop.f32.mrf.mxu0
        %2020 = vmatprep.mubr.f32.mxu0 0.0
        %2021 = vmatmul.mubr.f32.gmra.mxu0 %v1901
        %v2022 = vpop.f32.mrf.mxu0
        %v2023 = vadd.f32 0.0, %v2022
        %v2024 = vpop.f32.mrf.mxu0
        %2025 = vmatprep.mubr.f32.mxu0 0.0
        %2026 = vmatmul.mubr.f32.gmra.mxu0 %v1904
        %v2027 = vpop.f32.mrf.mxu0
        %v2028 = vadd.f32 0.0, %v2027
        %v2029 = vpop.f32.mrf.mxu0
        %2030 = vmatprep.mubr.f32.mxu0 0.0
        %2031 = vmatmul.mubr.f32.gmra.mxu0 %v1907
        %v2032 = vpop.f32.mrf.mxu0
        %v2033 = vadd.f32 0.0, %v2032
        %v2034 = vpop.f32.mrf.mxu0
        %2035 = vmatprep.mubr.f32.mxu0 0.0
        %2036 = vmatmul.mubr.f32.gmra.mxu0 %v1910
        %v2037 = vpop.f32.mrf.mxu0
        %v2038 = vadd.f32 0.0, %v2037
        %v2039 = vpop.f32.mrf.mxu0
        %2040 = vmatprep.mubr.f32.mxu0 0.0
        %2041 = vmatmul.mubr.f32.gmra.mxu0 %v1913
        %v2042 = vpop.f32.mrf.mxu0
        %v2043 = vadd.f32 0.0, %v2042
        %v2044 = vpop.f32.mrf.mxu0
        %2045 = vmatprep.mubr.f32.mxu0 0.0
        %2046 = vmatmul.mubr.f32.gmra.mxu0 %v1916
        %v2047 = vpop.f32.mrf.mxu0
        %v2048 = vadd.f32 0.0, %v2047
        %v2049 = vpop.f32.mrf.mxu0
        %2050 = vmatprep.mubr.f32.mxu0 0.0
        %2051 = vmatmul.mubr.f32.gmra.mxu0 %v1919
        %v2052 = vpop.f32.mrf.mxu0
        %v2053 = vadd.f32 0.0, %v2052
        %v2054 = vpop.f32.mrf.mxu0
        %2055 = vmatprep.mubr.f32.mxu0 0.0
        %2056 = vmatmul.mubr.f32.gmra.mxu0 %v1922
        %v2057 = vpop.f32.mrf.mxu0
        %v2058 = vadd.f32 0.0, %v2057
        %v2059 = vpop.f32.mrf.mxu0
        %2060 = vmatprep.mubr.f32.mxu0 0.0
        %2061 = vmatmul.mubr.f32.gmra.mxu0 %v1925
        %v2062 = vpop.f32.mrf.mxu0
        %v2063 = vadd.f32 0.0, %v2062
        %v2064 = vpop.f32.mrf.mxu0
        %2065 = vmatprep.mubr.f32.mxu0 0.0
        %2066 = vmatmul.mubr.f32.gmra.mxu0 %v1928
        %v2067 = vpop.f32.mrf.mxu0
        %v2068 = vadd.f32 0.0, %v2067
        %v2069 = vpop.f32.mrf.mxu0
        %2070 = vmatprep.mubr.f32.mxu0 0.0
        %2071 = vmatmul.mubr.f32.gmra.mxu0 %v1931
        %v2072 = vpop.f32.mrf.mxu0
        %v2073 = vadd.f32 0.0, %v2072
        %v2074 = vpop.f32.mrf.mxu0
        %2075 = vmatprep.mubr.f32.mxu0 0.0
        %2076 = vmatmul.mubr.f32.gmra.mxu0 %v1934
        %v2077 = vpop.f32.mrf.mxu0
        %v2078 = vadd.f32 0.0, %v2077
        %v2079 = vpop.f32.mrf.mxu0
        %2080 = vmatprep.mubr.f32.mxu0 0.0
        %2081 = vmatmul.mubr.f32.gmra.mxu0 %v1937
        %v2082 = vpop.f32.mrf.mxu0
        %v2083 = vadd.f32 0.0, %v2082
        %v2084 = vpop.f32.mrf.mxu0
        %2085 = vmatprep.mubr.f32.mxu0 0.0
        %2086 = vmatmul.mubr.f32.gmra.mxu0 %v1940
        %v2087 = vpop.f32.mrf.mxu0
        %v2088 = vadd.f32 0.0, %v2087
        %v2089 = vpop.f32.mrf.mxu0
        %2090 = vmatprep.mubr.f32.mxu0 0.0
        %2091 = vmatmul.mubr.f32.gmra.mxu0 %v1943
        %v2092 = vpop.f32.mrf.mxu0
        %v2093 = vadd.f32 0.0, %v2092
        %v2094 = vpop.f32.mrf.mxu0
        %2095 = vmatprep.mubr.f32.mxu0 0.0
        %2096 = vmatmul.mubr.f32.gmra.mxu0 %v1946
        %v2097 = vpop.f32.mrf.mxu0
        %v2098 = vadd.f32 0.0, %v2097
        %v2099 = vpop.f32.mrf.mxu0
        %2100 = vmatprep.mubr.f32.mxu0 0.0
        %2101 = vmatmul.mubr.f32.gmra.mxu0 %v1949
        %v2102 = vpop.f32.mrf.mxu0
        %v2103 = vadd.f32 0.0, %v2102
        %v2104 = vpop.f32.mrf.mxu0
        %2105 = vdwg.mxu0
        %v2106 = vadd.f32 %v1856, %v2018
        %v2107 = vadd.f32 %v1857, %v2023
        %v2108 = vadd.f32 %v1858, %v2028
        %v2109 = vadd.f32 %v1859, %v2033
        %v2110 = vadd.f32 %v1860, %v2038
        %v2111 = vadd.f32 %v1861, %v2043
        %v2112 = vadd.f32 %v1862, %v2048
        %v2113 = vadd.f32 %v1863, %v2053
        %v2114 = vadd.f32 %v1864, %v2058
        %v2115 = vadd.f32 %v1865, %v2063
        %v2116 = vadd.f32 %v1866, %v2068
        %v2117 = vadd.f32 %v1867, %v2073
        %v2118 = vadd.f32 %v1868, %v2078
        %v2119 = vadd.f32 %v1869, %v2083
        %v2120 = vadd.f32 %v1870, %v2088
        %v2121 = vadd.f32 %v1871, %v2093
        %v2122 = vadd.f32 %v1872, %v2098
        %v2123 = vadd.f32 %v1873, %v2103
        %v2124 = vld [vmem:[#allocation2 + $0x11] sm:$0xff]
        %v2125 = vld [vmem:[#allocation2 + $0x19] sm:$0xff]
        %v2126 = vld [vmem:[#allocation2 + $0x21] sm:$0xff]
        %v2127 = vld [vmem:[#allocation2 + $0x29] sm:$0xff]
        %v2128 = vld [vmem:[#allocation2 + $0x31] sm:$0xff]
        %v2129 = vld [vmem:[#allocation2 + $0x39] sm:$0xff]
        %v2130 = vld [vmem:[#allocation2 + $0x41] sm:$0xff]
        %v2131 = vld [vmem:[#allocation2 + $0x49] sm:$0xff]
        %v2132 = vld [vmem:[#allocation2 + $0x51] sm:$0xff]
        %v2133 = vld [vmem:[#allocation2 + $0x59] sm:$0xff]
        %v2134 = vld [vmem:[#allocation2 + $0x61] sm:$0xff]
        %v2135 = vld [vmem:[#allocation2 + $0x69] sm:$0xff]
        %v2136 = vld [vmem:[#allocation2 + $0x71] sm:$0xff]
        %v2137 = vld [vmem:[#allocation2 + $0x79] sm:$0xff]
        %v2138 = vld [vmem:[#allocation2 + $0x81] sm:$0xff]
        %v2139 = vld [vmem:[#allocation2 + $0x89] sm:$0xff]
        %v2140 = vld [vmem:[#allocation2 + $0x91] sm:$0xff]
        %v2141 = vld [vmem:[#allocation2 + $0x99] sm:$0x1]
        %s2142 = scalar_lea.vmem %s3, 128
        %v2143 = vld [vmem:[%s2142] sm:$0xff]
        %v2144 = vld [vmem:[%s2142 + $0x8] sm:$0xff]
        %v2145 = vld [vmem:[%s2142 + $0x10] sm:$0xff]
        %v2146 = vld [vmem:[%s2142 + $0x18] sm:$0xff]
        %v2148 = vsel %vm1137, %v2124, 0
        %v2151 = vsel %vm1137, %v2125, 0
        %v2154 = vsel %vm1137, %v2126, 0
        %v2157 = vsel %vm1137, %v2127, 0
        %v2160 = vsel %vm1137, %v2128, 0
        %v2163 = vsel %vm1137, %v2129, 0
        %v2166 = vsel %vm1137, %v2130, 0
        %v2169 = vsel %vm1137, %v2131, 0
        %v2172 = vsel %vm1137, %v2132, 0
        %v2175 = vsel %vm1137, %v2133, 0
        %v2178 = vsel %vm1137, %v2134, 0
        %v2181 = vsel %vm1137, %v2135, 0
        %v2184 = vsel %vm1137, %v2136, 0
        %v2187 = vsel %vm1137, %v2137, 0
        %v2190 = vsel %vm1137, %v2138, 0
        %v2193 = vsel %vm1137, %v2139, 0
        %v2196 = vsel %vm1137, %v2140, 0
        %v2199 = vsel %vm1137, %v2141, 0
        %2201 = vmatprep.subr.mxu0 0.0
        %2202 = vmatpush1.msra.mxu0 0.0
        %2203 = vmatprep.subr.mxu0 0.0
        %2204 = vmatpush1.msra.mxu0 0.0
        %2205 = vmatprep.subr.mxu0 0.0
        %2206 = vmatpush1.msra.mxu0 0.0
        %2207 = vmatprep.subr.mxu0 0.0
        %2208 = vmatpush1.msra.mxu0 0.0
        %2209 = vmatprep.subr.mxu0 0.0
        %2210 = vmatpush1.msra.mxu0 0.0
        %2211 = vmatprep.subr.mxu0 0.0
        %2212 = vmatpush1.msra.mxu0 0.0
        %2213 = vmatprep.subr.mxu0 0.0
        %2214 = vmatpush1.msra.mxu0 0.0
        %2215 = vmatprep.subr.mxu0 0.0
        %2216 = vmatpush1.msra.mxu0 0.0
        %2217 = vmatprep.subr.mxu0 0.0
        %2218 = vmatpush1.msra.mxu0 0.0
        %2219 = vmatprep.subr.mxu0 0.0
        %2220 = vmatpush1.msra.mxu0 0.0
        %2221 = vmatprep.subr.mxu0 0.0
        %2222 = vmatpush1.msra.mxu0 0.0
        %2223 = vmatprep.subr.mxu0 0.0
        %2224 = vmatpush1.msra.mxu0 0.0
        %2225 = vmatprep.subr.mxu0 0.0
        %2226 = vmatpush1.msra.mxu0 %v2146
        %2227 = vmatprep.subr.mxu0 0.0
        %2228 = vmatpush1.msra.mxu0 %v2145
        %2229 = vmatprep.subr.mxu0 0.0
        %2230 = vmatpush1.msra.mxu0 %v2144
        %2231 = vmatprep.subr.mxu0 0.0
        %2232 = vmatpush1.msra.mxu0 %v2143
        %2233 = vmatprep.subr.mxu0 0.0
        %2234 = vmatpush2.msra.mxu0 0.0
        %2235 = vmatprep.subr.mxu0 0.0
        %2236 = vmatpush2.msra.mxu0 0.0
        %2237 = vmatprep.subr.mxu0 0.0
        %2238 = vmatpush2.msra.mxu0 0.0
        %2239 = vmatprep.subr.mxu0 0.0
        %2240 = vmatpush2.msra.mxu0 0.0
        %2241 = vmatprep.subr.mxu0 0.0
        %2242 = vmatpush2.msra.mxu0 0.0
        %2243 = vmatprep.subr.mxu0 0.0
        %2244 = vmatpush2.msra.mxu0 0.0
        %2245 = vmatprep.subr.mxu0 0.0
        %2246 = vmatpush2.msra.mxu0 0.0
        %2247 = vmatprep.subr.mxu0 0.0
        %2248 = vmatpush2.msra.mxu0 0.0
        %2249 = vmatprep.subr.mxu0 0.0
        %2250 = vmatpush2.msra.mxu0 0.0
        %2251 = vmatprep.subr.mxu0 0.0
        %2252 = vmatpush2.msra.mxu0 0.0
        %2253 = vmatprep.subr.mxu0 0.0
        %2254 = vmatpush2.msra.mxu0 0.0
        %2255 = vmatprep.subr.mxu0 0.0
        %2256 = vmatpush2.msra.mxu0 0.0
        %2257 = vmatprep.subr.mxu0 0.0
        %2258 = vmatpush2.msra.mxu0 0.0
        %2259 = vmatprep.subr.mxu0 0.0
        %2260 = vmatpush2.msra.mxu0 0.0
        %2261 = vmatprep.subr.mxu0 0.0
        %2262 = vmatpush2.msra.mxu0 0.0
        %2263 = vmatprep.subr.mxu0 0.0
        %2264 = vmatpush2.msra.mxu0 0.0
        %2265 = vmatprep.mubr.f32.mxu0 0.0
        %2266 = vmatmul.mubr.f32.gmra.mxu0 %v2148
        %v2267 = vpop.f32.mrf.mxu0
        %v2268 = vadd.f32 0.0, %v2267
        %v2269 = vpop.f32.mrf.mxu0
        %2270 = vmatprep.mubr.f32.mxu0 0.0
        %2271 = vmatmul.mubr.f32.gmra.mxu0 %v2151
        %v2272 = vpop.f32.mrf.mxu0
        %v2273 = vadd.f32 0.0, %v2272
        %v2274 = vpop.f32.mrf.mxu0
        %2275 = vmatprep.mubr.f32.mxu0 0.0
        %2276 = vmatmul.mubr.f32.gmra.mxu0 %v2154
        %v2277 = vpop.f32.mrf.mxu0
        %v2278 = vadd.f32 0.0, %v2277
        %v2279 = vpop.f32.mrf.mxu0
        %2280 = vmatprep.mubr.f32.mxu0 0.0
        %2281 = vmatmul.mubr.f32.gmra.mxu0 %v2157
        %v2282 = vpop.f32.mrf.mxu0
        %v2283 = vadd.f32 0.0, %v2282
        %v2284 = vpop.f32.mrf.mxu0
        %2285 = vmatprep.mubr.f32.mxu0 0.0
        %2286 = vmatmul.mubr.f32.gmra.mxu0 %v2160
        %v2287 = vpop.f32.mrf.mxu0
        %v2288 = vadd.f32 0.0, %v2287
        %v2289 = vpop.f32.mrf.mxu0
        %2290 = vmatprep.mubr.f32.mxu0 0.0
        %2291 = vmatmul.mubr.f32.gmra.mxu0 %v2163
        %v2292 = vpop.f32.mrf.mxu0
        %v2293 = vadd.f32 0.0, %v2292
        %v2294 = vpop.f32.mrf.mxu0
        %2295 = vmatprep.mubr.f32.mxu0 0.0
        %2296 = vmatmul.mubr.f32.gmra.mxu0 %v2166
        %v2297 = vpop.f32.mrf.mxu0
        %v2298 = vadd.f32 0.0, %v2297
        %v2299 = vpop.f32.mrf.mxu0
        %2300 = vmatprep.mubr.f32.mxu0 0.0
        %2301 = vmatmul.mubr.f32.gmra.mxu0 %v2169
        %v2302 = vpop.f32.mrf.mxu0
        %v2303 = vadd.f32 0.0, %v2302
        %v2304 = vpop.f32.mrf.mxu0
        %2305 = vmatprep.mubr.f32.mxu0 0.0
        %2306 = vmatmul.mubr.f32.gmra.mxu0 %v2172
        %v2307 = vpop.f32.mrf.mxu0
        %v2308 = vadd.f32 0.0, %v2307
        %v2309 = vpop.f32.mrf.mxu0
        %2310 = vmatprep.mubr.f32.mxu0 0.0
        %2311 = vmatmul.mubr.f32.gmra.mxu0 %v2175
        %v2312 = vpop.f32.mrf.mxu0
        %v2313 = vadd.f32 0.0, %v2312
        %v2314 = vpop.f32.mrf.mxu0
        %2315 = vmatprep.mubr.f32.mxu0 0.0
        %2316 = vmatmul.mubr.f32.gmra.mxu0 %v2178
        %v2317 = vpop.f32.mrf.mxu0
        %v2318 = vadd.f32 0.0, %v2317
        %v2319 = vpop.f32.mrf.mxu0
        %2320 = vmatprep.mubr.f32.mxu0 0.0
        %2321 = vmatmul.mubr.f32.gmra.mxu0 %v2181
        %v2322 = vpop.f32.mrf.mxu0
        %v2323 = vadd.f32 0.0, %v2322
        %v2324 = vpop.f32.mrf.mxu0
        %2325 = vmatprep.mubr.f32.mxu0 0.0
        %2326 = vmatmul.mubr.f32.gmra.mxu0 %v2184
        %v2327 = vpop.f32.mrf.mxu0
        %v2328 = vadd.f32 0.0, %v2327
        %v2329 = vpop.f32.mrf.mxu0
        %2330 = vmatprep.mubr.f32.mxu0 0.0
        %2331 = vmatmul.mubr.f32.gmra.mxu0 %v2187
        %v2332 = vpop.f32.mrf.mxu0
        %v2333 = vadd.f32 0.0, %v2332
        %v2334 = vpop.f32.mrf.mxu0
        %2335 = vmatprep.mubr.f32.mxu0 0.0
        %2336 = vmatmul.mubr.f32.gmra.mxu0 %v2190
        %v2337 = vpop.f32.mrf.mxu0
        %v2338 = vadd.f32 0.0, %v2337
        %v2339 = vpop.f32.mrf.mxu0
        %2340 = vmatprep.mubr.f32.mxu0 0.0
        %2341 = vmatmul.mubr.f32.gmra.mxu0 %v2193
        %v2342 = vpop.f32.mrf.mxu0
        %v2343 = vadd.f32 0.0, %v2342
        %v2344 = vpop.f32.mrf.mxu0
        %2345 = vmatprep.mubr.f32.mxu0 0.0
        %2346 = vmatmul.mubr.f32.gmra.mxu0 %v2196
        %v2347 = vpop.f32.mrf.mxu0
        %v2348 = vadd.f32 0.0, %v2347
        %v2349 = vpop.f32.mrf.mxu0
        %2350 = vmatprep.mubr.f32.mxu0 0.0
        %2351 = vmatmul.mubr.f32.gmra.mxu0 %v2199
        %v2352 = vpop.f32.mrf.mxu0
        %v2353 = vadd.f32 0.0, %v2352
        %v2354 = vpop.f32.mrf.mxu0
        %2355 = vdwg.mxu0
        %v2356 = vadd.f32 %v2106, %v2268
        %v2357 = vadd.f32 %v2107, %v2273
        %v2358 = vadd.f32 %v2108, %v2278
        %v2359 = vadd.f32 %v2109, %v2283
        %v2360 = vadd.f32 %v2110, %v2288
        %v2361 = vadd.f32 %v2111, %v2293
        %v2362 = vadd.f32 %v2112, %v2298
        %v2363 = vadd.f32 %v2113, %v2303
        %v2364 = vadd.f32 %v2114, %v2308
        %v2365 = vadd.f32 %v2115, %v2313
        %v2366 = vadd.f32 %v2116, %v2318
        %v2367 = vadd.f32 %v2117, %v2323
        %v2368 = vadd.f32 %v2118, %v2328
        %v2369 = vadd.f32 %v2119, %v2333
        %v2370 = vadd.f32 %v2120, %v2338
        %v2371 = vadd.f32 %v2121, %v2343
        %v2372 = vadd.f32 %v2122, %v2348
        %v2373 = vadd.f32 %v2123, %v2353
        %v2374 = vld [vmem:[#allocation2 + $0x12] sm:$0xff]
        %v2375 = vld [vmem:[#allocation2 + $0x1a] sm:$0xff]
        %v2376 = vld [vmem:[#allocation2 + $0x22] sm:$0xff]
        %v2377 = vld [vmem:[#allocation2 + $0x2a] sm:$0xff]
        %v2378 = vld [vmem:[#allocation2 + $0x32] sm:$0xff]
        %v2379 = vld [vmem:[#allocation2 + $0x3a] sm:$0xff]
        %v2380 = vld [vmem:[#allocation2 + $0x42] sm:$0xff]
        %v2381 = vld [vmem:[#allocation2 + $0x4a] sm:$0xff]
        %v2382 = vld [vmem:[#allocation2 + $0x52] sm:$0xff]
        %v2383 = vld [vmem:[#allocation2 + $0x5a] sm:$0xff]
        %v2384 = vld [vmem:[#allocation2 + $0x62] sm:$0xff]
        %v2385 = vld [vmem:[#allocation2 + $0x6a] sm:$0xff]
        %v2386 = vld [vmem:[#allocation2 + $0x72] sm:$0xff]
        %v2387 = vld [vmem:[#allocation2 + $0x7a] sm:$0xff]
        %v2388 = vld [vmem:[#allocation2 + $0x82] sm:$0xff]
        %v2389 = vld [vmem:[#allocation2 + $0x8a] sm:$0xff]
        %v2390 = vld [vmem:[#allocation2 + $0x92] sm:$0xff]
        %v2391 = vld [vmem:[#allocation2 + $0x9a] sm:$0x1]
        %s2392 = scalar_lea.vmem %s3, 160
        %v2393 = vld [vmem:[%s2392] sm:$0xff]
        %v2394 = vld [vmem:[%s2392 + $0x8] sm:$0xff]
        %v2395 = vld [vmem:[%s2392 + $0x10] sm:$0xff]
        %v2396 = vld [vmem:[%s2392 + $0x18] sm:$0xff]
        %v2398 = vsel %vm1137, %v2374, 0
        %v2401 = vsel %vm1137, %v2375, 0
        %v2404 = vsel %vm1137, %v2376, 0
        %v2407 = vsel %vm1137, %v2377, 0
        %v2410 = vsel %vm1137, %v2378, 0
        %v2413 = vsel %vm1137, %v2379, 0
        %v2416 = vsel %vm1137, %v2380, 0
        %v2419 = vsel %vm1137, %v2381, 0
        %v2422 = vsel %vm1137, %v2382, 0
        %v2425 = vsel %vm1137, %v2383, 0
        %v2428 = vsel %vm1137, %v2384, 0
        %v2431 = vsel %vm1137, %v2385, 0
        %v2434 = vsel %vm1137, %v2386, 0
        %v2437 = vsel %vm1137, %v2387, 0
        %v2440 = vsel %vm1137, %v2388, 0
        %v2443 = vsel %vm1137, %v2389, 0
        %v2446 = vsel %vm1137, %v2390, 0
        %v2449 = vsel %vm1137, %v2391, 0
        %2451 = vmatprep.subr.mxu0 0.0
        %2452 = vmatpush1.msra.mxu0 0.0
        %2453 = vmatprep.subr.mxu0 0.0
        %2454 = vmatpush1.msra.mxu0 0.0
        %2455 = vmatprep.subr.mxu0 0.0
        %2456 = vmatpush1.msra.mxu0 0.0
        %2457 = vmatprep.subr.mxu0 0.0
        %2458 = vmatpush1.msra.mxu0 0.0
        %2459 = vmatprep.subr.mxu0 0.0
        %2460 = vmatpush1.msra.mxu0 0.0
        %2461 = vmatprep.subr.mxu0 0.0
        %2462 = vmatpush1.msra.mxu0 0.0
        %2463 = vmatprep.subr.mxu0 0.0
        %2464 = vmatpush1.msra.mxu0 0.0
        %2465 = vmatprep.subr.mxu0 0.0
        %2466 = vmatpush1.msra.mxu0 0.0
        %2467 = vmatprep.subr.mxu0 0.0
        %2468 = vmatpush1.msra.mxu0 0.0
        %2469 = vmatprep.subr.mxu0 0.0
        %2470 = vmatpush1.msra.mxu0 0.0
        %2471 = vmatprep.subr.mxu0 0.0
        %2472 = vmatpush1.msra.mxu0 0.0
        %2473 = vmatprep.subr.mxu0 0.0
        %2474 = vmatpush1.msra.mxu0 0.0
        %2475 = vmatprep.subr.mxu0 0.0
        %2476 = vmatpush1.msra.mxu0 %v2396
        %2477 = vmatprep.subr.mxu0 0.0
        %2478 = vmatpush1.msra.mxu0 %v2395
        %2479 = vmatprep.subr.mxu0 0.0
        %2480 = vmatpush1.msra.mxu0 %v2394
        %2481 = vmatprep.subr.mxu0 0.0
        %2482 = vmatpush1.msra.mxu0 %v2393
        %2483 = vmatprep.subr.mxu0 0.0
        %2484 = vmatpush2.msra.mxu0 0.0
        %2485 = vmatprep.subr.mxu0 0.0
        %2486 = vmatpush2.msra.mxu0 0.0
        %2487 = vmatprep.subr.mxu0 0.0
        %2488 = vmatpush2.msra.mxu0 0.0
        %2489 = vmatprep.subr.mxu0 0.0
        %2490 = vmatpush2.msra.mxu0 0.0
        %2491 = vmatprep.subr.mxu0 0.0
        %2492 = vmatpush2.msra.mxu0 0.0
        %2493 = vmatprep.subr.mxu0 0.0
        %2494 = vmatpush2.msra.mxu0 0.0
        %2495 = vmatprep.subr.mxu0 0.0
        %2496 = vmatpush2.msra.mxu0 0.0
        %2497 = vmatprep.subr.mxu0 0.0
        %2498 = vmatpush2.msra.mxu0 0.0
        %2499 = vmatprep.subr.mxu0 0.0
        %2500 = vmatpush2.msra.mxu0 0.0
        %2501 = vmatprep.subr.mxu0 0.0
        %2502 = vmatpush2.msra.mxu0 0.0
        %2503 = vmatprep.subr.mxu0 0.0
        %2504 = vmatpush2.msra.mxu0 0.0
        %2505 = vmatprep.subr.mxu0 0.0
        %2506 = vmatpush2.msra.mxu0 0.0
        %2507 = vmatprep.subr.mxu0 0.0
        %2508 = vmatpush2.msra.mxu0 0.0
        %2509 = vmatprep.subr.mxu0 0.0
        %2510 = vmatpush2.msra.mxu0 0.0
        %2511 = vmatprep.subr.mxu0 0.0
        %2512 = vmatpush2.msra.mxu0 0.0
        %2513 = vmatprep.subr.mxu0 0.0
        %2514 = vmatpush2.msra.mxu0 0.0
        %2515 = vmatprep.mubr.f32.mxu0 0.0
        %2516 = vmatmul.mubr.f32.gmra.mxu0 %v2398
        %v2517 = vpop.f32.mrf.mxu0
        %v2518 = vadd.f32 0.0, %v2517
        %v2519 = vpop.f32.mrf.mxu0
        %2520 = vmatprep.mubr.f32.mxu0 0.0
        %2521 = vmatmul.mubr.f32.gmra.mxu0 %v2401
        %v2522 = vpop.f32.mrf.mxu0
        %v2523 = vadd.f32 0.0, %v2522
        %v2524 = vpop.f32.mrf.mxu0
        %2525 = vmatprep.mubr.f32.mxu0 0.0
        %2526 = vmatmul.mubr.f32.gmra.mxu0 %v2404
        %v2527 = vpop.f32.mrf.mxu0
        %v2528 = vadd.f32 0.0, %v2527
        %v2529 = vpop.f32.mrf.mxu0
        %2530 = vmatprep.mubr.f32.mxu0 0.0
        %2531 = vmatmul.mubr.f32.gmra.mxu0 %v2407
        %v2532 = vpop.f32.mrf.mxu0
        %v2533 = vadd.f32 0.0, %v2532
        %v2534 = vpop.f32.mrf.mxu0
        %2535 = vmatprep.mubr.f32.mxu0 0.0
        %2536 = vmatmul.mubr.f32.gmra.mxu0 %v2410
        %v2537 = vpop.f32.mrf.mxu0
        %v2538 = vadd.f32 0.0, %v2537
        %v2539 = vpop.f32.mrf.mxu0
        %2540 = vmatprep.mubr.f32.mxu0 0.0
        %2541 = vmatmul.mubr.f32.gmra.mxu0 %v2413
        %v2542 = vpop.f32.mrf.mxu0
        %v2543 = vadd.f32 0.0, %v2542
        %v2544 = vpop.f32.mrf.mxu0
        %2545 = vmatprep.mubr.f32.mxu0 0.0
        %2546 = vmatmul.mubr.f32.gmra.mxu0 %v2416
        %v2547 = vpop.f32.mrf.mxu0
        %v2548 = vadd.f32 0.0, %v2547
        %v2549 = vpop.f32.mrf.mxu0
        %2550 = vmatprep.mubr.f32.mxu0 0.0
        %2551 = vmatmul.mubr.f32.gmra.mxu0 %v2419
        %v2552 = vpop.f32.mrf.mxu0
        %v2553 = vadd.f32 0.0, %v2552
        %v2554 = vpop.f32.mrf.mxu0
        %2555 = vmatprep.mubr.f32.mxu0 0.0
        %2556 = vmatmul.mubr.f32.gmra.mxu0 %v2422
        %v2557 = vpop.f32.mrf.mxu0
        %v2558 = vadd.f32 0.0, %v2557
        %v2559 = vpop.f32.mrf.mxu0
        %2560 = vmatprep.mubr.f32.mxu0 0.0
        %2561 = vmatmul.mubr.f32.gmra.mxu0 %v2425
        %v2562 = vpop.f32.mrf.mxu0
        %v2563 = vadd.f32 0.0, %v2562
        %v2564 = vpop.f32.mrf.mxu0
        %2565 = vmatprep.mubr.f32.mxu0 0.0
        %2566 = vmatmul.mubr.f32.gmra.mxu0 %v2428
        %v2567 = vpop.f32.mrf.mxu0
        %v2568 = vadd.f32 0.0, %v2567
        %v2569 = vpop.f32.mrf.mxu0
        %2570 = vmatprep.mubr.f32.mxu0 0.0
        %2571 = vmatmul.mubr.f32.gmra.mxu0 %v2431
        %v2572 = vpop.f32.mrf.mxu0
        %v2573 = vadd.f32 0.0, %v2572
        %v2574 = vpop.f32.mrf.mxu0
        %2575 = vmatprep.mubr.f32.mxu0 0.0
        %2576 = vmatmul.mubr.f32.gmra.mxu0 %v2434
        %v2577 = vpop.f32.mrf.mxu0
        %v2578 = vadd.f32 0.0, %v2577
        %v2579 = vpop.f32.mrf.mxu0
        %2580 = vmatprep.mubr.f32.mxu0 0.0
        %2581 = vmatmul.mubr.f32.gmra.mxu0 %v2437
        %v2582 = vpop.f32.mrf.mxu0
        %v2583 = vadd.f32 0.0, %v2582
        %v2584 = vpop.f32.mrf.mxu0
        %2585 = vmatprep.mubr.f32.mxu0 0.0
        %2586 = vmatmul.mubr.f32.gmra.mxu0 %v2440
        %v2587 = vpop.f32.mrf.mxu0
        %v2588 = vadd.f32 0.0, %v2587
        %v2589 = vpop.f32.mrf.mxu0
        %2590 = vmatprep.mubr.f32.mxu0 0.0
        %2591 = vmatmul.mubr.f32.gmra.mxu0 %v2443
        %v2592 = vpop.f32.mrf.mxu0
        %v2593 = vadd.f32 0.0, %v2592
        %v2594 = vpop.f32.mrf.mxu0
        %2595 = vmatprep.mubr.f32.mxu0 0.0
        %2596 = vmatmul.mubr.f32.gmra.mxu0 %v2446
        %v2597 = vpop.f32.mrf.mxu0
        %v2598 = vadd.f32 0.0, %v2597
        %v2599 = vpop.f32.mrf.mxu0
        %2600 = vmatprep.mubr.f32.mxu0 0.0
        %2601 = vmatmul.mubr.f32.gmra.mxu0 %v2449
        %v2602 = vpop.f32.mrf.mxu0
        %v2603 = vadd.f32 0.0, %v2602
        %v2604 = vpop.f32.mrf.mxu0
        %2605 = vdwg.mxu0
        %v2606 = vadd.f32 %v2356, %v2518
        %v2607 = vadd.f32 %v2357, %v2523
        %v2608 = vadd.f32 %v2358, %v2528
        %v2609 = vadd.f32 %v2359, %v2533
        %v2610 = vadd.f32 %v2360, %v2538
        %v2611 = vadd.f32 %v2361, %v2543
        %v2612 = vadd.f32 %v2362, %v2548
        %v2613 = vadd.f32 %v2363, %v2553
        %v2614 = vadd.f32 %v2364, %v2558
        %v2615 = vadd.f32 %v2365, %v2563
        %v2616 = vadd.f32 %v2366, %v2568
        %v2617 = vadd.f32 %v2367, %v2573
        %v2618 = vadd.f32 %v2368, %v2578
        %v2619 = vadd.f32 %v2369, %v2583
        %v2620 = vadd.f32 %v2370, %v2588
        %v2621 = vadd.f32 %v2371, %v2593
        %v2622 = vadd.f32 %v2372, %v2598
        %v2623 = vadd.f32 %v2373, %v2603
        %v2624 = vld [vmem:[#allocation2 + $0x20] sm:$0xff]
        %v2625 = vld [vmem:[#allocation2 + $0x28] sm:$0xff]
        %v2626 = vld [vmem:[#allocation2 + $0x30] sm:$0xff]
        %v2627 = vld [vmem:[#allocation2 + $0x38] sm:$0xff]
        %v2628 = vld [vmem:[#allocation2 + $0x40] sm:$0xff]
        %v2629 = vld [vmem:[#allocation2 + $0x48] sm:$0xff]
        %v2630 = vld [vmem:[#allocation2 + $0x50] sm:$0xff]
        %v2631 = vld [vmem:[#allocation2 + $0x58] sm:$0xff]
        %v2632 = vld [vmem:[#allocation2 + $0x60] sm:$0xff]
        %v2633 = vld [vmem:[#allocation2 + $0x68] sm:$0xff]
        %v2634 = vld [vmem:[#allocation2 + $0x70] sm:$0xff]
        %v2635 = vld [vmem:[#allocation2 + $0x78] sm:$0xff]
        %v2636 = vld [vmem:[#allocation2 + $0x80] sm:$0xff]
        %v2637 = vld [vmem:[#allocation2 + $0x88] sm:$0xff]
        %v2638 = vld [vmem:[#allocation2 + $0x90] sm:$0xff]
        %v2639 = vld [vmem:[#allocation2 + $0x98] sm:$0xff]
        %v2640 = vld [vmem:[#allocation2 + $0xa0] sm:$0xff]
        %v2641 = vld [vmem:[#allocation2 + $0xa8] sm:$0x1]
        %s2642 = scalar_lea.vmem %s3, 192
        %v2643 = vld [vmem:[%s2642] sm:$0xff]
        %v2644 = vld [vmem:[%s2642 + $0x8] sm:$0xff]
        %v2645 = vld [vmem:[%s2642 + $0x10] sm:$0xff]
        %v2646 = vld [vmem:[%s2642 + $0x18] sm:$0xff]
        %v2648 = vsel %vm1137, %v2624, 0
        %v2651 = vsel %vm1137, %v2625, 0
        %v2654 = vsel %vm1137, %v2626, 0
        %v2657 = vsel %vm1137, %v2627, 0
        %v2660 = vsel %vm1137, %v2628, 0
        %v2663 = vsel %vm1137, %v2629, 0
        %v2666 = vsel %vm1137, %v2630, 0
        %v2669 = vsel %vm1137, %v2631, 0
        %v2672 = vsel %vm1137, %v2632, 0
        %v2675 = vsel %vm1137, %v2633, 0
        %v2678 = vsel %vm1137, %v2634, 0
        %v2681 = vsel %vm1137, %v2635, 0
        %v2684 = vsel %vm1137, %v2636, 0
        %v2687 = vsel %vm1137, %v2637, 0
        %v2690 = vsel %vm1137, %v2638, 0
        %v2693 = vsel %vm1137, %v2639, 0
        %v2696 = vsel %vm1137, %v2640, 0
        %v2699 = vsel %vm1137, %v2641, 0
        %2701 = vmatprep.subr.mxu0 0.0
        %2702 = vmatpush1.msra.mxu0 0.0
        %2703 = vmatprep.subr.mxu0 0.0
        %2704 = vmatpush1.msra.mxu0 0.0
        %2705 = vmatprep.subr.mxu0 0.0
        %2706 = vmatpush1.msra.mxu0 0.0
        %2707 = vmatprep.subr.mxu0 0.0
        %2708 = vmatpush1.msra.mxu0 0.0
        %2709 = vmatprep.subr.mxu0 0.0
        %2710 = vmatpush1.msra.mxu0 0.0
        %2711 = vmatprep.subr.mxu0 0.0
        %2712 = vmatpush1.msra.mxu0 0.0
        %2713 = vmatprep.subr.mxu0 0.0
        %2714 = vmatpush1.msra.mxu0 0.0
        %2715 = vmatprep.subr.mxu0 0.0
        %2716 = vmatpush1.msra.mxu0 0.0
        %2717 = vmatprep.subr.mxu0 0.0
        %2718 = vmatpush1.msra.mxu0 0.0
        %2719 = vmatprep.subr.mxu0 0.0
        %2720 = vmatpush1.msra.mxu0 0.0
        %2721 = vmatprep.subr.mxu0 0.0
        %2722 = vmatpush1.msra.mxu0 0.0
        %2723 = vmatprep.subr.mxu0 0.0
        %2724 = vmatpush1.msra.mxu0 0.0
        %2725 = vmatprep.subr.mxu0 0.0
        %2726 = vmatpush1.msra.mxu0 %v2646
        %2727 = vmatprep.subr.mxu0 0.0
        %2728 = vmatpush1.msra.mxu0 %v2645
        %2729 = vmatprep.subr.mxu0 0.0
        %2730 = vmatpush1.msra.mxu0 %v2644
        %2731 = vmatprep.subr.mxu0 0.0
        %2732 = vmatpush1.msra.mxu0 %v2643
        %2733 = vmatprep.subr.mxu0 0.0
        %2734 = vmatpush2.msra.mxu0 0.0
        %2735 = vmatprep.subr.mxu0 0.0
        %2736 = vmatpush2.msra.mxu0 0.0
        %2737 = vmatprep.subr.mxu0 0.0
        %2738 = vmatpush2.msra.mxu0 0.0
        %2739 = vmatprep.subr.mxu0 0.0
        %2740 = vmatpush2.msra.mxu0 0.0
        %2741 = vmatprep.subr.mxu0 0.0
        %2742 = vmatpush2.msra.mxu0 0.0
        %2743 = vmatprep.subr.mxu0 0.0
        %2744 = vmatpush2.msra.mxu0 0.0
        %2745 = vmatprep.subr.mxu0 0.0
        %2746 = vmatpush2.msra.mxu0 0.0
        %2747 = vmatprep.subr.mxu0 0.0
        %2748 = vmatpush2.msra.mxu0 0.0
        %2749 = vmatprep.subr.mxu0 0.0
        %2750 = vmatpush2.msra.mxu0 0.0
        %2751 = vmatprep.subr.mxu0 0.0
        %2752 = vmatpush2.msra.mxu0 0.0
        %2753 = vmatprep.subr.mxu0 0.0
        %2754 = vmatpush2.msra.mxu0 0.0
        %2755 = vmatprep.subr.mxu0 0.0
        %2756 = vmatpush2.msra.mxu0 0.0
        %2757 = vmatprep.subr.mxu0 0.0
        %2758 = vmatpush2.msra.mxu0 0.0
        %2759 = vmatprep.subr.mxu0 0.0
        %2760 = vmatpush2.msra.mxu0 0.0
        %2761 = vmatprep.subr.mxu0 0.0
        %2762 = vmatpush2.msra.mxu0 0.0
        %2763 = vmatprep.subr.mxu0 0.0
        %2764 = vmatpush2.msra.mxu0 0.0
        %2765 = vmatprep.mubr.f32.mxu0 0.0
        %2766 = vmatmul.mubr.f32.gmra.mxu0 %v2648
        %v2767 = vpop.f32.mrf.mxu0
        %v2768 = vadd.f32 0.0, %v2767
        %v2769 = vpop.f32.mrf.mxu0
        %2770 = vmatprep.mubr.f32.mxu0 0.0
        %2771 = vmatmul.mubr.f32.gmra.mxu0 %v2651
        %v2772 = vpop.f32.mrf.mxu0
        %v2773 = vadd.f32 0.0, %v2772
        %v2774 = vpop.f32.mrf.mxu0
        %2775 = vmatprep.mubr.f32.mxu0 0.0
        %2776 = vmatmul.mubr.f32.gmra.mxu0 %v2654
        %v2777 = vpop.f32.mrf.mxu0
        %v2778 = vadd.f32 0.0, %v2777
        %v2779 = vpop.f32.mrf.mxu0
        %2780 = vmatprep.mubr.f32.mxu0 0.0
        %2781 = vmatmul.mubr.f32.gmra.mxu0 %v2657
        %v2782 = vpop.f32.mrf.mxu0
        %v2783 = vadd.f32 0.0, %v2782
        %v2784 = vpop.f32.mrf.mxu0
        %2785 = vmatprep.mubr.f32.mxu0 0.0
        %2786 = vmatmul.mubr.f32.gmra.mxu0 %v2660
        %v2787 = vpop.f32.mrf.mxu0
        %v2788 = vadd.f32 0.0, %v2787
        %v2789 = vpop.f32.mrf.mxu0
        %2790 = vmatprep.mubr.f32.mxu0 0.0
        %2791 = vmatmul.mubr.f32.gmra.mxu0 %v2663
        %v2792 = vpop.f32.mrf.mxu0
        %v2793 = vadd.f32 0.0, %v2792
        %v2794 = vpop.f32.mrf.mxu0
        %2795 = vmatprep.mubr.f32.mxu0 0.0
        %2796 = vmatmul.mubr.f32.gmra.mxu0 %v2666
        %v2797 = vpop.f32.mrf.mxu0
        %v2798 = vadd.f32 0.0, %v2797
        %v2799 = vpop.f32.mrf.mxu0
        %2800 = vmatprep.mubr.f32.mxu0 0.0
        %2801 = vmatmul.mubr.f32.gmra.mxu0 %v2669
        %v2802 = vpop.f32.mrf.mxu0
        %v2803 = vadd.f32 0.0, %v2802
        %v2804 = vpop.f32.mrf.mxu0
        %2805 = vmatprep.mubr.f32.mxu0 0.0
        %2806 = vmatmul.mubr.f32.gmra.mxu0 %v2672
        %v2807 = vpop.f32.mrf.mxu0
        %v2808 = vadd.f32 0.0, %v2807
        %v2809 = vpop.f32.mrf.mxu0
        %2810 = vmatprep.mubr.f32.mxu0 0.0
        %2811 = vmatmul.mubr.f32.gmra.mxu0 %v2675
        %v2812 = vpop.f32.mrf.mxu0
        %v2813 = vadd.f32 0.0, %v2812
        %v2814 = vpop.f32.mrf.mxu0
        %2815 = vmatprep.mubr.f32.mxu0 0.0
        %2816 = vmatmul.mubr.f32.gmra.mxu0 %v2678
        %v2817 = vpop.f32.mrf.mxu0
        %v2818 = vadd.f32 0.0, %v2817
        %v2819 = vpop.f32.mrf.mxu0
        %2820 = vmatprep.mubr.f32.mxu0 0.0
        %2821 = vmatmul.mubr.f32.gmra.mxu0 %v2681
        %v2822 = vpop.f32.mrf.mxu0
        %v2823 = vadd.f32 0.0, %v2822
        %v2824 = vpop.f32.mrf.mxu0
        %2825 = vmatprep.mubr.f32.mxu0 0.0
        %2826 = vmatmul.mubr.f32.gmra.mxu0 %v2684
        %v2827 = vpop.f32.mrf.mxu0
        %v2828 = vadd.f32 0.0, %v2827
        %v2829 = vpop.f32.mrf.mxu0
        %2830 = vmatprep.mubr.f32.mxu0 0.0
        %2831 = vmatmul.mubr.f32.gmra.mxu0 %v2687
        %v2832 = vpop.f32.mrf.mxu0
        %v2833 = vadd.f32 0.0, %v2832
        %v2834 = vpop.f32.mrf.mxu0
        %2835 = vmatprep.mubr.f32.mxu0 0.0
        %2836 = vmatmul.mubr.f32.gmra.mxu0 %v2690
        %v2837 = vpop.f32.mrf.mxu0
        %v2838 = vadd.f32 0.0, %v2837
        %v2839 = vpop.f32.mrf.mxu0
        %2840 = vmatprep.mubr.f32.mxu0 0.0
        %2841 = vmatmul.mubr.f32.gmra.mxu0 %v2693
        %v2842 = vpop.f32.mrf.mxu0
        %v2843 = vadd.f32 0.0, %v2842
        %v2844 = vpop.f32.mrf.mxu0
        %2845 = vmatprep.mubr.f32.mxu0 0.0
        %2846 = vmatmul.mubr.f32.gmra.mxu0 %v2696
        %v2847 = vpop.f32.mrf.mxu0
        %v2848 = vadd.f32 0.0, %v2847
        %v2849 = vpop.f32.mrf.mxu0
        %2850 = vmatprep.mubr.f32.mxu0 0.0
        %2851 = vmatmul.mubr.f32.gmra.mxu0 %v2699
        %v2852 = vpop.f32.mrf.mxu0
        %v2853 = vadd.f32 0.0, %v2852
        %v2854 = vpop.f32.mrf.mxu0
        %2855 = vdwg.mxu0
        %v2856 = vadd.f32 %v2606, %v2768
        %v2857 = vadd.f32 %v2607, %v2773
        %v2858 = vadd.f32 %v2608, %v2778
        %v2859 = vadd.f32 %v2609, %v2783
        %v2860 = vadd.f32 %v2610, %v2788
        %v2861 = vadd.f32 %v2611, %v2793
        %v2862 = vadd.f32 %v2612, %v2798
        %v2863 = vadd.f32 %v2613, %v2803
        %v2864 = vadd.f32 %v2614, %v2808
        %v2865 = vadd.f32 %v2615, %v2813
        %v2866 = vadd.f32 %v2616, %v2818
        %v2867 = vadd.f32 %v2617, %v2823
        %v2868 = vadd.f32 %v2618, %v2828
        %v2869 = vadd.f32 %v2619, %v2833
        %v2870 = vadd.f32 %v2620, %v2838
        %v2871 = vadd.f32 %v2621, %v2843
        %v2872 = vadd.f32 %v2622, %v2848
        %v2873 = vadd.f32 %v2623, %v2853
        %v2874 = vld [vmem:[#allocation2 + $0x21] sm:$0xff]
        %v2875 = vld [vmem:[#allocation2 + $0x29] sm:$0xff]
        %v2876 = vld [vmem:[#allocation2 + $0x31] sm:$0xff]
        %v2877 = vld [vmem:[#allocation2 + $0x39] sm:$0xff]
        %v2878 = vld [vmem:[#allocation2 + $0x41] sm:$0xff]
        %v2879 = vld [vmem:[#allocation2 + $0x49] sm:$0xff]
        %v2880 = vld [vmem:[#allocation2 + $0x51] sm:$0xff]
        %v2881 = vld [vmem:[#allocation2 + $0x59] sm:$0xff]
        %v2882 = vld [vmem:[#allocation2 + $0x61] sm:$0xff]
        %v2883 = vld [vmem:[#allocation2 + $0x69] sm:$0xff]
        %v2884 = vld [vmem:[#allocation2 + $0x71] sm:$0xff]
        %v2885 = vld [vmem:[#allocation2 + $0x79] sm:$0xff]
        %v2886 = vld [vmem:[#allocation2 + $0x81] sm:$0xff]
        %v2887 = vld [vmem:[#allocation2 + $0x89] sm:$0xff]
        %v2888 = vld [vmem:[#allocation2 + $0x91] sm:$0xff]
        %v2889 = vld [vmem:[#allocation2 + $0x99] sm:$0xff]
        %v2890 = vld [vmem:[#allocation2 + $0xa1] sm:$0xff]
        %v2891 = vld [vmem:[#allocation2 + $0xa9] sm:$0x1]
        %s2892 = scalar_lea.vmem %s3, 224
        %v2893 = vld [vmem:[%s2892] sm:$0xff]
        %v2894 = vld [vmem:[%s2892 + $0x8] sm:$0xff]
        %v2895 = vld [vmem:[%s2892 + $0x10] sm:$0xff]
        %v2896 = vld [vmem:[%s2892 + $0x18] sm:$0xff]
        %v2898 = vsel %vm1137, %v2874, 0
        %v2901 = vsel %vm1137, %v2875, 0
        %v2904 = vsel %vm1137, %v2876, 0
        %v2907 = vsel %vm1137, %v2877, 0
        %v2910 = vsel %vm1137, %v2878, 0
        %v2913 = vsel %vm1137, %v2879, 0
        %v2916 = vsel %vm1137, %v2880, 0
        %v2919 = vsel %vm1137, %v2881, 0
        %v2922 = vsel %vm1137, %v2882, 0
        %v2925 = vsel %vm1137, %v2883, 0
        %v2928 = vsel %vm1137, %v2884, 0
        %v2931 = vsel %vm1137, %v2885, 0
        %v2934 = vsel %vm1137, %v2886, 0
        %v2937 = vsel %vm1137, %v2887, 0
        %v2940 = vsel %vm1137, %v2888, 0
        %v2943 = vsel %vm1137, %v2889, 0
        %v2946 = vsel %vm1137, %v2890, 0
        %v2949 = vsel %vm1137, %v2891, 0
        %2951 = vmatprep.subr.mxu0 0.0
        %2952 = vmatpush1.msra.mxu0 0.0
        %2953 = vmatprep.subr.mxu0 0.0
        %2954 = vmatpush1.msra.mxu0 0.0
        %2955 = vmatprep.subr.mxu0 0.0
        %2956 = vmatpush1.msra.mxu0 0.0
        %2957 = vmatprep.subr.mxu0 0.0
        %2958 = vmatpush1.msra.mxu0 0.0
        %2959 = vmatprep.subr.mxu0 0.0
        %2960 = vmatpush1.msra.mxu0 0.0
        %2961 = vmatprep.subr.mxu0 0.0
        %2962 = vmatpush1.msra.mxu0 0.0
        %2963 = vmatprep.subr.mxu0 0.0
        %2964 = vmatpush1.msra.mxu0 0.0
        %2965 = vmatprep.subr.mxu0 0.0
        %2966 = vmatpush1.msra.mxu0 0.0
        %2967 = vmatprep.subr.mxu0 0.0
        %2968 = vmatpush1.msra.mxu0 0.0
        %2969 = vmatprep.subr.mxu0 0.0
        %2970 = vmatpush1.msra.mxu0 0.0
        %2971 = vmatprep.subr.mxu0 0.0
        %2972 = vmatpush1.msra.mxu0 0.0
        %2973 = vmatprep.subr.mxu0 0.0
        %2974 = vmatpush1.msra.mxu0 0.0
        %2975 = vmatprep.subr.mxu0 0.0
        %2976 = vmatpush1.msra.mxu0 %v2896
        %2977 = vmatprep.subr.mxu0 0.0
        %2978 = vmatpush1.msra.mxu0 %v2895
        %2979 = vmatprep.subr.mxu0 0.0
        %2980 = vmatpush1.msra.mxu0 %v2894
        %2981 = vmatprep.subr.mxu0 0.0
        %2982 = vmatpush1.msra.mxu0 %v2893
        %2983 = vmatprep.subr.mxu0 0.0
        %2984 = vmatpush2.msra.mxu0 0.0
        %2985 = vmatprep.subr.mxu0 0.0
        %2986 = vmatpush2.msra.mxu0 0.0
        %2987 = vmatprep.subr.mxu0 0.0
        %2988 = vmatpush2.msra.mxu0 0.0
        %2989 = vmatprep.subr.mxu0 0.0
        %2990 = vmatpush2.msra.mxu0 0.0
        %2991 = vmatprep.subr.mxu0 0.0
        %2992 = vmatpush2.msra.mxu0 0.0
        %2993 = vmatprep.subr.mxu0 0.0
        %2994 = vmatpush2.msra.mxu0 0.0
        %2995 = vmatprep.subr.mxu0 0.0
        %2996 = vmatpush2.msra.mxu0 0.0
        %2997 = vmatprep.subr.mxu0 0.0
        %2998 = vmatpush2.msra.mxu0 0.0
        %2999 = vmatprep.subr.mxu0 0.0
        %3000 = vmatpush2.msra.mxu0 0.0
        %3001 = vmatprep.subr.mxu0 0.0
        %3002 = vmatpush2.msra.mxu0 0.0
        %3003 = vmatprep.subr.mxu0 0.0
        %3004 = vmatpush2.msra.mxu0 0.0
        %3005 = vmatprep.subr.mxu0 0.0
        %3006 = vmatpush2.msra.mxu0 0.0
        %3007 = vmatprep.subr.mxu0 0.0
        %3008 = vmatpush2.msra.mxu0 0.0
        %3009 = vmatprep.subr.mxu0 0.0
        %3010 = vmatpush2.msra.mxu0 0.0
        %3011 = vmatprep.subr.mxu0 0.0
        %3012 = vmatpush2.msra.mxu0 0.0
        %3013 = vmatprep.subr.mxu0 0.0
        %3014 = vmatpush2.msra.mxu0 0.0
        %3015 = vmatprep.mubr.f32.mxu0 0.0
        %3016 = vmatmul.mubr.f32.gmra.mxu0 %v2898
        %v3017 = vpop.f32.mrf.mxu0
        %v3018 = vadd.f32 0.0, %v3017
        %v3019 = vpop.f32.mrf.mxu0
        %3020 = vmatprep.mubr.f32.mxu0 0.0
        %3021 = vmatmul.mubr.f32.gmra.mxu0 %v2901
        %v3022 = vpop.f32.mrf.mxu0
        %v3023 = vadd.f32 0.0, %v3022
        %v3024 = vpop.f32.mrf.mxu0
        %3025 = vmatprep.mubr.f32.mxu0 0.0
        %3026 = vmatmul.mubr.f32.gmra.mxu0 %v2904
        %v3027 = vpop.f32.mrf.mxu0
        %v3028 = vadd.f32 0.0, %v3027
        %v3029 = vpop.f32.mrf.mxu0
        %3030 = vmatprep.mubr.f32.mxu0 0.0
        %3031 = vmatmul.mubr.f32.gmra.mxu0 %v2907
        %v3032 = vpop.f32.mrf.mxu0
        %v3033 = vadd.f32 0.0, %v3032
        %v3034 = vpop.f32.mrf.mxu0
        %3035 = vmatprep.mubr.f32.mxu0 0.0
        %3036 = vmatmul.mubr.f32.gmra.mxu0 %v2910
        %v3037 = vpop.f32.mrf.mxu0
        %v3038 = vadd.f32 0.0, %v3037
        %v3039 = vpop.f32.mrf.mxu0
        %3040 = vmatprep.mubr.f32.mxu0 0.0
        %3041 = vmatmul.mubr.f32.gmra.mxu0 %v2913
        %v3042 = vpop.f32.mrf.mxu0
        %v3043 = vadd.f32 0.0, %v3042
        %v3044 = vpop.f32.mrf.mxu0
        %3045 = vmatprep.mubr.f32.mxu0 0.0
        %3046 = vmatmul.mubr.f32.gmra.mxu0 %v2916
        %v3047 = vpop.f32.mrf.mxu0
        %v3048 = vadd.f32 0.0, %v3047
        %v3049 = vpop.f32.mrf.mxu0
        %3050 = vmatprep.mubr.f32.mxu0 0.0
        %3051 = vmatmul.mubr.f32.gmra.mxu0 %v2919
        %v3052 = vpop.f32.mrf.mxu0
        %v3053 = vadd.f32 0.0, %v3052
        %v3054 = vpop.f32.mrf.mxu0
        %3055 = vmatprep.mubr.f32.mxu0 0.0
        %3056 = vmatmul.mubr.f32.gmra.mxu0 %v2922
        %v3057 = vpop.f32.mrf.mxu0
        %v3058 = vadd.f32 0.0, %v3057
        %v3059 = vpop.f32.mrf.mxu0
        %3060 = vmatprep.mubr.f32.mxu0 0.0
        %3061 = vmatmul.mubr.f32.gmra.mxu0 %v2925
        %v3062 = vpop.f32.mrf.mxu0
        %v3063 = vadd.f32 0.0, %v3062
        %v3064 = vpop.f32.mrf.mxu0
        %3065 = vmatprep.mubr.f32.mxu0 0.0
        %3066 = vmatmul.mubr.f32.gmra.mxu0 %v2928
        %v3067 = vpop.f32.mrf.mxu0
        %v3068 = vadd.f32 0.0, %v3067
        %v3069 = vpop.f32.mrf.mxu0
        %3070 = vmatprep.mubr.f32.mxu0 0.0
        %3071 = vmatmul.mubr.f32.gmra.mxu0 %v2931
        %v3072 = vpop.f32.mrf.mxu0
        %v3073 = vadd.f32 0.0, %v3072
        %v3074 = vpop.f32.mrf.mxu0
        %3075 = vmatprep.mubr.f32.mxu0 0.0
        %3076 = vmatmul.mubr.f32.gmra.mxu0 %v2934
        %v3077 = vpop.f32.mrf.mxu0
        %v3078 = vadd.f32 0.0, %v3077
        %v3079 = vpop.f32.mrf.mxu0
        %3080 = vmatprep.mubr.f32.mxu0 0.0
        %3081 = vmatmul.mubr.f32.gmra.mxu0 %v2937
        %v3082 = vpop.f32.mrf.mxu0
        %v3083 = vadd.f32 0.0, %v3082
        %v3084 = vpop.f32.mrf.mxu0
        %3085 = vmatprep.mubr.f32.mxu0 0.0
        %3086 = vmatmul.mubr.f32.gmra.mxu0 %v2940
        %v3087 = vpop.f32.mrf.mxu0
        %v3088 = vadd.f32 0.0, %v3087
        %v3089 = vpop.f32.mrf.mxu0
        %3090 = vmatprep.mubr.f32.mxu0 0.0
        %3091 = vmatmul.mubr.f32.gmra.mxu0 %v2943
        %v3092 = vpop.f32.mrf.mxu0
        %v3093 = vadd.f32 0.0, %v3092
        %v3094 = vpop.f32.mrf.mxu0
        %3095 = vmatprep.mubr.f32.mxu0 0.0
        %3096 = vmatmul.mubr.f32.gmra.mxu0 %v2946
        %v3097 = vpop.f32.mrf.mxu0
        %v3098 = vadd.f32 0.0, %v3097
        %v3099 = vpop.f32.mrf.mxu0
        %3100 = vmatprep.mubr.f32.mxu0 0.0
        %3101 = vmatmul.mubr.f32.gmra.mxu0 %v2949
        %v3102 = vpop.f32.mrf.mxu0
        %v3103 = vadd.f32 0.0, %v3102
        %v3104 = vpop.f32.mrf.mxu0
        %3105 = vdwg.mxu0
        %v3106 = vadd.f32 %v2856, %v3018
        %v3107 = vadd.f32 %v2857, %v3023
        %v3108 = vadd.f32 %v2858, %v3028
        %v3109 = vadd.f32 %v2859, %v3033
        %v3110 = vadd.f32 %v2860, %v3038
        %v3111 = vadd.f32 %v2861, %v3043
        %v3112 = vadd.f32 %v2862, %v3048
        %v3113 = vadd.f32 %v2863, %v3053
        %v3114 = vadd.f32 %v2864, %v3058
        %v3115 = vadd.f32 %v2865, %v3063
        %v3116 = vadd.f32 %v2866, %v3068
        %v3117 = vadd.f32 %v2867, %v3073
        %v3118 = vadd.f32 %v2868, %v3078
        %v3119 = vadd.f32 %v2869, %v3083
        %v3120 = vadd.f32 %v2870, %v3088
        %v3121 = vadd.f32 %v2871, %v3093
        %v3122 = vadd.f32 %v2872, %v3098
        %v3123 = vadd.f32 %v2873, %v3103
        %v3124 = vld [vmem:[#allocation2 + $0x22] sm:$0xff]
        %v3125 = vld [vmem:[#allocation2 + $0x2a] sm:$0xff]
        %v3126 = vld [vmem:[#allocation2 + $0x32] sm:$0xff]
        %v3127 = vld [vmem:[#allocation2 + $0x3a] sm:$0xff]
        %v3128 = vld [vmem:[#allocation2 + $0x42] sm:$0xff]
        %v3129 = vld [vmem:[#allocation2 + $0x4a] sm:$0xff]
        %v3130 = vld [vmem:[#allocation2 + $0x52] sm:$0xff]
        %v3131 = vld [vmem:[#allocation2 + $0x5a] sm:$0xff]
        %v3132 = vld [vmem:[#allocation2 + $0x62] sm:$0xff]
        %v3133 = vld [vmem:[#allocation2 + $0x6a] sm:$0xff]
        %v3134 = vld [vmem:[#allocation2 + $0x72] sm:$0xff]
        %v3135 = vld [vmem:[#allocation2 + $0x7a] sm:$0xff]
        %v3136 = vld [vmem:[#allocation2 + $0x82] sm:$0xff]
        %v3137 = vld [vmem:[#allocation2 + $0x8a] sm:$0xff]
        %v3138 = vld [vmem:[#allocation2 + $0x92] sm:$0xff]
        %v3139 = vld [vmem:[#allocation2 + $0x9a] sm:$0xff]
        %v3140 = vld [vmem:[#allocation2 + $0xa2] sm:$0xff]
        %v3141 = vld [vmem:[#allocation2 + $0xaa] sm:$0x1]
        %s3142 = scalar_lea.vmem %s3, 256
        %v3143 = vld [vmem:[%s3142] sm:$0xff]
        %v3144 = vld [vmem:[%s3142 + $0x8] sm:$0xff]
        %v3145 = vld [vmem:[%s3142 + $0x10] sm:$0xff]
        %v3146 = vld [vmem:[%s3142 + $0x18] sm:$0xff]
        %v3148 = vsel %vm1137, %v3124, 0
        %v3151 = vsel %vm1137, %v3125, 0
        %v3154 = vsel %vm1137, %v3126, 0
        %v3157 = vsel %vm1137, %v3127, 0
        %v3160 = vsel %vm1137, %v3128, 0
        %v3163 = vsel %vm1137, %v3129, 0
        %v3166 = vsel %vm1137, %v3130, 0
        %v3169 = vsel %vm1137, %v3131, 0
        %v3172 = vsel %vm1137, %v3132, 0
        %v3175 = vsel %vm1137, %v3133, 0
        %v3178 = vsel %vm1137, %v3134, 0
        %v3181 = vsel %vm1137, %v3135, 0
        %v3184 = vsel %vm1137, %v3136, 0
        %v3187 = vsel %vm1137, %v3137, 0
        %v3190 = vsel %vm1137, %v3138, 0
        %v3193 = vsel %vm1137, %v3139, 0
        %v3196 = vsel %vm1137, %v3140, 0
        %v3199 = vsel %vm1137, %v3141, 0
        %3201 = vmatprep.subr.mxu0 0.0
        %3202 = vmatpush1.msra.mxu0 0.0
        %3203 = vmatprep.subr.mxu0 0.0
        %3204 = vmatpush1.msra.mxu0 0.0
        %3205 = vmatprep.subr.mxu0 0.0
        %3206 = vmatpush1.msra.mxu0 0.0
        %3207 = vmatprep.subr.mxu0 0.0
        %3208 = vmatpush1.msra.mxu0 0.0
        %3209 = vmatprep.subr.mxu0 0.0
        %3210 = vmatpush1.msra.mxu0 0.0
        %3211 = vmatprep.subr.mxu0 0.0
        %3212 = vmatpush1.msra.mxu0 0.0
        %3213 = vmatprep.subr.mxu0 0.0
        %3214 = vmatpush1.msra.mxu0 0.0
        %3215 = vmatprep.subr.mxu0 0.0
        %3216 = vmatpush1.msra.mxu0 0.0
        %3217 = vmatprep.subr.mxu0 0.0
        %3218 = vmatpush1.msra.mxu0 0.0
        %3219 = vmatprep.subr.mxu0 0.0
        %3220 = vmatpush1.msra.mxu0 0.0
        %3221 = vmatprep.subr.mxu0 0.0
        %3222 = vmatpush1.msra.mxu0 0.0
        %3223 = vmatprep.subr.mxu0 0.0
        %3224 = vmatpush1.msra.mxu0 0.0
        %3225 = vmatprep.subr.mxu0 0.0
        %3226 = vmatpush1.msra.mxu0 %v3146
        %3227 = vmatprep.subr.mxu0 0.0
        %3228 = vmatpush1.msra.mxu0 %v3145
        %3229 = vmatprep.subr.mxu0 0.0
        %3230 = vmatpush1.msra.mxu0 %v3144
        %3231 = vmatprep.subr.mxu0 0.0
        %3232 = vmatpush1.msra.mxu0 %v3143
        %3233 = vmatprep.subr.mxu0 0.0
        %3234 = vmatpush2.msra.mxu0 0.0
        %3235 = vmatprep.subr.mxu0 0.0
        %3236 = vmatpush2.msra.mxu0 0.0
        %3237 = vmatprep.subr.mxu0 0.0
        %3238 = vmatpush2.msra.mxu0 0.0
        %3239 = vmatprep.subr.mxu0 0.0
        %3240 = vmatpush2.msra.mxu0 0.0
        %3241 = vmatprep.subr.mxu0 0.0
        %3242 = vmatpush2.msra.mxu0 0.0
        %3243 = vmatprep.subr.mxu0 0.0
        %3244 = vmatpush2.msra.mxu0 0.0
        %3245 = vmatprep.subr.mxu0 0.0
        %3246 = vmatpush2.msra.mxu0 0.0
        %3247 = vmatprep.subr.mxu0 0.0
        %3248 = vmatpush2.msra.mxu0 0.0
        %3249 = vmatprep.subr.mxu0 0.0
        %3250 = vmatpush2.msra.mxu0 0.0
        %3251 = vmatprep.subr.mxu0 0.0
        %3252 = vmatpush2.msra.mxu0 0.0
        %3253 = vmatprep.subr.mxu0 0.0
        %3254 = vmatpush2.msra.mxu0 0.0
        %3255 = vmatprep.subr.mxu0 0.0
        %3256 = vmatpush2.msra.mxu0 0.0
        %3257 = vmatprep.subr.mxu0 0.0
        %3258 = vmatpush2.msra.mxu0 0.0
        %3259 = vmatprep.subr.mxu0 0.0
        %3260 = vmatpush2.msra.mxu0 0.0
        %3261 = vmatprep.subr.mxu0 0.0
        %3262 = vmatpush2.msra.mxu0 0.0
        %3263 = vmatprep.subr.mxu0 0.0
        %3264 = vmatpush2.msra.mxu0 0.0
        %3265 = vmatprep.mubr.f32.mxu0 0.0
        %3266 = vmatmul.mubr.f32.gmra.mxu0 %v3148
        %v3267 = vpop.f32.mrf.mxu0
        %v3268 = vadd.f32 0.0, %v3267
        %v3269 = vpop.f32.mrf.mxu0
        %3270 = vmatprep.mubr.f32.mxu0 0.0
        %3271 = vmatmul.mubr.f32.gmra.mxu0 %v3151
        %v3272 = vpop.f32.mrf.mxu0
        %v3273 = vadd.f32 0.0, %v3272
        %v3274 = vpop.f32.mrf.mxu0
        %3275 = vmatprep.mubr.f32.mxu0 0.0
        %3276 = vmatmul.mubr.f32.gmra.mxu0 %v3154
        %v3277 = vpop.f32.mrf.mxu0
        %v3278 = vadd.f32 0.0, %v3277
        %v3279 = vpop.f32.mrf.mxu0
        %3280 = vmatprep.mubr.f32.mxu0 0.0
        %3281 = vmatmul.mubr.f32.gmra.mxu0 %v3157
        %v3282 = vpop.f32.mrf.mxu0
        %v3283 = vadd.f32 0.0, %v3282
        %v3284 = vpop.f32.mrf.mxu0
        %3285 = vmatprep.mubr.f32.mxu0 0.0
        %3286 = vmatmul.mubr.f32.gmra.mxu0 %v3160
        %v3287 = vpop.f32.mrf.mxu0
        %v3288 = vadd.f32 0.0, %v3287
        %v3289 = vpop.f32.mrf.mxu0
        %3290 = vmatprep.mubr.f32.mxu0 0.0
        %3291 = vmatmul.mubr.f32.gmra.mxu0 %v3163
        %v3292 = vpop.f32.mrf.mxu0
        %v3293 = vadd.f32 0.0, %v3292
        %v3294 = vpop.f32.mrf.mxu0
        %3295 = vmatprep.mubr.f32.mxu0 0.0
        %3296 = vmatmul.mubr.f32.gmra.mxu0 %v3166
        %v3297 = vpop.f32.mrf.mxu0
        %v3298 = vadd.f32 0.0, %v3297
        %v3299 = vpop.f32.mrf.mxu0
        %3300 = vmatprep.mubr.f32.mxu0 0.0
        %3301 = vmatmul.mubr.f32.gmra.mxu0 %v3169
        %v3302 = vpop.f32.mrf.mxu0
        %v3303 = vadd.f32 0.0, %v3302
        %v3304 = vpop.f32.mrf.mxu0
        %3305 = vmatprep.mubr.f32.mxu0 0.0
        %3306 = vmatmul.mubr.f32.gmra.mxu0 %v3172
        %v3307 = vpop.f32.mrf.mxu0
        %v3308 = vadd.f32 0.0, %v3307
        %v3309 = vpop.f32.mrf.mxu0
        %3310 = vmatprep.mubr.f32.mxu0 0.0
        %3311 = vmatmul.mubr.f32.gmra.mxu0 %v3175
        %v3312 = vpop.f32.mrf.mxu0
        %v3313 = vadd.f32 0.0, %v3312
        %v3314 = vpop.f32.mrf.mxu0
        %3315 = vmatprep.mubr.f32.mxu0 0.0
        %3316 = vmatmul.mubr.f32.gmra.mxu0 %v3178
        %v3317 = vpop.f32.mrf.mxu0
        %v3318 = vadd.f32 0.0, %v3317
        %v3319 = vpop.f32.mrf.mxu0
        %3320 = vmatprep.mubr.f32.mxu0 0.0
        %3321 = vmatmul.mubr.f32.gmra.mxu0 %v3181
        %v3322 = vpop.f32.mrf.mxu0
        %v3323 = vadd.f32 0.0, %v3322
        %v3324 = vpop.f32.mrf.mxu0
        %3325 = vmatprep.mubr.f32.mxu0 0.0
        %3326 = vmatmul.mubr.f32.gmra.mxu0 %v3184
        %v3327 = vpop.f32.mrf.mxu0
        %v3328 = vadd.f32 0.0, %v3327
        %v3329 = vpop.f32.mrf.mxu0
        %3330 = vmatprep.mubr.f32.mxu0 0.0
        %3331 = vmatmul.mubr.f32.gmra.mxu0 %v3187
        %v3332 = vpop.f32.mrf.mxu0
        %v3333 = vadd.f32 0.0, %v3332
        %v3334 = vpop.f32.mrf.mxu0
        %3335 = vmatprep.mubr.f32.mxu0 0.0
        %3336 = vmatmul.mubr.f32.gmra.mxu0 %v3190
        %v3337 = vpop.f32.mrf.mxu0
        %v3338 = vadd.f32 0.0, %v3337
        %v3339 = vpop.f32.mrf.mxu0
        %3340 = vmatprep.mubr.f32.mxu0 0.0
        %3341 = vmatmul.mubr.f32.gmra.mxu0 %v3193
        %v3342 = vpop.f32.mrf.mxu0
        %v3343 = vadd.f32 0.0, %v3342
        %v3344 = vpop.f32.mrf.mxu0
        %3345 = vmatprep.mubr.f32.mxu0 0.0
        %3346 = vmatmul.mubr.f32.gmra.mxu0 %v3196
        %v3347 = vpop.f32.mrf.mxu0
        %v3348 = vadd.f32 0.0, %v3347
        %v3349 = vpop.f32.mrf.mxu0
        %3350 = vmatprep.mubr.f32.mxu0 0.0
        %3351 = vmatmul.mubr.f32.gmra.mxu0 %v3199
        %v3352 = vpop.f32.mrf.mxu0
        %v3353 = vadd.f32 0.0, %v3352
        %v3354 = vpop.f32.mrf.mxu0
        %3355 = vdwg.mxu0
        %v3356 = vadd.f32 %v3106, %v3268
        %v3357 = vadd.f32 %v3107, %v3273
        %v3358 = vadd.f32 %v3108, %v3278
        %v3359 = vadd.f32 %v3109, %v3283
        %v3360 = vadd.f32 %v3110, %v3288
        %v3361 = vadd.f32 %v3111, %v3293
        %v3362 = vadd.f32 %v3112, %v3298
        %v3363 = vadd.f32 %v3113, %v3303
        %v3364 = vadd.f32 %v3114, %v3308
        %v3365 = vadd.f32 %v3115, %v3313
        %v3366 = vadd.f32 %v3116, %v3318
        %v3367 = vadd.f32 %v3117, %v3323
        %v3368 = vadd.f32 %v3118, %v3328
        %v3369 = vadd.f32 %v3119, %v3333
        %v3370 = vadd.f32 %v3120, %v3338
        %v3371 = vadd.f32 %v3121, %v3343
        %v3372 = vadd.f32 %v3122, %v3348
        %v3373 = vadd.f32 %v3123, %v3353
        %v3374 = vld [vmem:[%s4] sm:$0x1]
        %v3376 = vlaneseq
        %v3377 = vshrl.u32 %v3376, 7
        %v3378 = vsub.s32 0, %v3377
        %v3379 = vrot.slane %v3374, %v3378
        %v3381 = vadd.f32 %v3356, %v3379
        %v3382 = vadd.f32 %v3357, %v3379
        %v3383 = vadd.f32 %v3358, %v3379
        %v3384 = vadd.f32 %v3359, %v3379
        %v3385 = vadd.f32 %v3360, %v3379
        %v3386 = vadd.f32 %v3361, %v3379
        %v3387 = vadd.f32 %v3362, %v3379
        %v3388 = vadd.f32 %v3363, %v3379
        %v3389 = vadd.f32 %v3364, %v3379
        %v3390 = vadd.f32 %v3365, %v3379
        %v3391 = vadd.f32 %v3366, %v3379
        %v3392 = vadd.f32 %v3367, %v3379
        %v3393 = vadd.f32 %v3368, %v3379
        %v3394 = vadd.f32 %v3369, %v3379
        %v3395 = vadd.f32 %v3370, %v3379
        %v3396 = vadd.f32 %v3371, %v3379
        %v3397 = vadd.f32 %v3372, %v3379
        %v3398 = vadd.f32 %v3373, %v3379
        %v3399 = vmax.f32 %v3381, 0.0
        %v3400 = vmax.f32 %v3382, 0.0
        %v3401 = vmax.f32 %v3383, 0.0
        %v3402 = vmax.f32 %v3384, 0.0
        %v3403 = vmax.f32 %v3385, 0.0
        %v3404 = vmax.f32 %v3386, 0.0
        %v3405 = vmax.f32 %v3387, 0.0
        %v3406 = vmax.f32 %v3388, 0.0
        %v3407 = vmax.f32 %v3389, 0.0
        %v3408 = vmax.f32 %v3390, 0.0
        %v3409 = vmax.f32 %v3391, 0.0
        %v3410 = vmax.f32 %v3392, 0.0
        %v3411 = vmax.f32 %v3393, 0.0
        %v3412 = vmax.f32 %v3394, 0.0
        %v3413 = vmax.f32 %v3395, 0.0
        %v3414 = vmax.f32 %v3396, 0.0
        %v3415 = vmax.f32 %v3397, 0.0
        %v3416 = vmax.f32 %v3398, 0.0
        %vm3417 = vcmask 523264
        %3418 = vst.msk [vmem:[#allocation3] sm:$0xff] %vm3417, %v3399
        %3419 = vst.msk [vmem:[#allocation3 + $0x8] sm:$0xff] %vm3417, %v3400
        %3420 = vst.msk [vmem:[#allocation3 + $0x10] sm:$0xff] %vm3417, %v3401
        %3421 = vst.msk [vmem:[#allocation3 + $0x18] sm:$0xff] %vm3417, %v3402
        %3422 = vst.msk [vmem:[#allocation3 + $0x20] sm:$0xff] %vm3417, %v3403
        %3423 = vst.msk [vmem:[#allocation3 + $0x28] sm:$0xff] %vm3417, %v3404
        %3424 = vst.msk [vmem:[#allocation3 + $0x30] sm:$0xff] %vm3417, %v3405
        %3425 = vst.msk [vmem:[#allocation3 + $0x38] sm:$0xff] %vm3417, %v3406
        %3426 = vst.msk [vmem:[#allocation3 + $0x40] sm:$0xff] %vm3417, %v3407
        %3427 = vst.msk [vmem:[#allocation3 + $0x48] sm:$0xff] %vm3417, %v3408
        %3428 = vst.msk [vmem:[#allocation3 + $0x50] sm:$0xff] %vm3417, %v3409
        %3429 = vst.msk [vmem:[#allocation3 + $0x58] sm:$0xff] %vm3417, %v3410
        %3430 = vst.msk [vmem:[#allocation3 + $0x60] sm:$0xff] %vm3417, %v3411
        %3431 = vst.msk [vmem:[#allocation3 + $0x68] sm:$0xff] %vm3417, %v3412
        %3432 = vst.msk [vmem:[#allocation3 + $0x70] sm:$0xff] %vm3417, %v3413
        %3433 = vst.msk [vmem:[#allocation3 + $0x78] sm:$0xff] %vm3417, %v3414
        %3434 = vst.msk [vmem:[#allocation3 + $0x80] sm:$0xff] %vm3417, %v3415
        %vm3435 = vcmask 516096
        %3436 = vst.msk [vmem:[#allocation3 + $0x88] sm:$0x1] %vm3435, %v3416
        %v3437 = vld [vmem:[#allocation3] sm:$0x1]
        %3438 = vst.msk [vmem:[#allocation4] sm:$0x1] %vm3435, %v3437
        %v3439 = vld [vmem:[#allocation3 + $0x4] sm:$0x1]
        %3440 = vst.msk [vmem:[#allocation4 + $0x1] sm:$0x1] %vm3435, %v3439
        %v3441 = vld [vmem:[#allocation3 + $0x40] sm:$0x1]
        %3442 = vst.msk [vmem:[#allocation4 + $0x2] sm:$0x1] %vm3435, %v3441
        %v3443 = vld [vmem:[#allocation3 + $0x44] sm:$0x1]
        %3444 = vst.msk [vmem:[#allocation4 + $0x3] sm:$0x1] %vm3435, %v3443
        %v3445 = vld [vmem:[#allocation3 + $0x2] sm:$0x1]
        %3446 = vst.msk [vmem:[#allocation4 + $0x4] sm:$0x1] %vm3435, %v3445
        %v3447 = vld [vmem:[#allocation3 + $0x6] sm:$0x1]
        %3448 = vst.msk [vmem:[#allocation4 + $0x5] sm:$0x1] %vm3435, %v3447
        %v3449 = vld [vmem:[#allocation3 + $0x42] sm:$0x1]
        %3450 = vst.msk [vmem:[#allocation4 + $0x6] sm:$0x1] %vm3435, %v3449
        %v3451 = vld [vmem:[#allocation3 + $0x46] sm:$0x1]
        %3452 = vst.msk [vmem:[#allocation4 + $0x7] sm:$0x1] %vm3435, %v3451
        %v3453 = vld [vmem:[#allocation3 + $0x4] sm:$0x1]
        %3454 = vst.msk [vmem:[#allocation4 + $0x8] sm:$0x1] %vm3435, %v3453
        %v3455 = vld [vmem:[#allocation3 + $0x8] sm:$0x1]
        %3456 = vst.msk [vmem:[#allocation4 + $0x9] sm:$0x1] %vm3435, %v3455
        %v3457 = vld [vmem:[#allocation3 + $0x44] sm:$0x1]
        %3458 = vst.msk [vmem:[#allocation4 + $0xa] sm:$0x1] %vm3435, %v3457
        %v3459 = vld [vmem:[#allocation3 + $0x48] sm:$0x1]
        %3460 = vst.msk [vmem:[#allocation4 + $0xb] sm:$0x1] %vm3435, %v3459
        %v3461 = vld [vmem:[#allocation3 + $0x20] sm:$0x1]
        %3462 = vst.msk [vmem:[#allocation4 + $0xc] sm:$0x1] %vm3435, %v3461
        %v3463 = vld [vmem:[#allocation3 + $0x24] sm:$0x1]
        %3464 = vst.msk [vmem:[#allocation4 + $0xd] sm:$0x1] %vm3435, %v3463
        %v3465 = vld [vmem:[#allocation3 + $0x60] sm:$0x1]
        %3466 = vst.msk [vmem:[#allocation4 + $0xe] sm:$0x1] %vm3435, %v3465
        %v3467 = vld [vmem:[#allocation3 + $0x64] sm:$0x1]
        %3468 = vst.msk [vmem:[#allocation4 + $0xf] sm:$0x1] %vm3435, %v3467
        %v3469 = vld [vmem:[#allocation3 + $0x22] sm:$0x1]
        %3470 = vst.msk [vmem:[#allocation4 + $0x10] sm:$0x1] %vm3435, %v3469
        %v3471 = vld [vmem:[#allocation3 + $0x26] sm:$0x1]
        %3472 = vst.msk [vmem:[#allocation4 + $0x11] sm:$0x1] %vm3435, %v3471
        %v3473 = vld [vmem:[#allocation3 + $0x62] sm:$0x1]
        %3474 = vst.msk [vmem:[#allocation4 + $0x12] sm:$0x1] %vm3435, %v3473
        %v3475 = vld [vmem:[#allocation3 + $0x66] sm:$0x1]
        %3476 = vst.msk [vmem:[#allocation4 + $0x13] sm:$0x1] %vm3435, %v3475
        %v3477 = vld [vmem:[#allocation3 + $0x24] sm:$0x1]
        %3478 = vst.msk [vmem:[#allocation4 + $0x14] sm:$0x1] %vm3435, %v3477
        %v3479 = vld [vmem:[#allocation3 + $0x28] sm:$0x1]
        %3480 = vst.msk [vmem:[#allocation4 + $0x15] sm:$0x1] %vm3435, %v3479
        %v3481 = vld [vmem:[#allocation3 + $0x64] sm:$0x1]
        %3482 = vst.msk [vmem:[#allocation4 + $0x16] sm:$0x1] %vm3435, %v3481
        %v3483 = vld [vmem:[#allocation3 + $0x68] sm:$0x1]
        %3484 = vst.msk [vmem:[#allocation4 + $0x17] sm:$0x1] %vm3435, %v3483
        %v3485 = vld [vmem:[#allocation3 + $0x40] sm:$0x1]
        %3486 = vst.msk [vmem:[#allocation4 + $0x18] sm:$0x1] %vm3435, %v3485
        %v3487 = vld [vmem:[#allocation3 + $0x44] sm:$0x1]
        %3488 = vst.msk [vmem:[#allocation4 + $0x19] sm:$0x1] %vm3435, %v3487
        %v3489 = vld [vmem:[#allocation3 + $0x80] sm:$0x1]
        %3490 = vst.msk [vmem:[#allocation4 + $0x1a] sm:$0x1] %vm3435, %v3489
        %v3491 = vld [vmem:[#allocation3 + $0x84] sm:$0x1]
        %3492 = vst.msk [vmem:[#allocation4 + $0x1b] sm:$0x1] %vm3435, %v3491
        %v3493 = vld [vmem:[#allocation3 + $0x42] sm:$0x1]
        %3494 = vst.msk [vmem:[#allocation4 + $0x1c] sm:$0x1] %vm3435, %v3493
        %v3495 = vld [vmem:[#allocation3 + $0x46] sm:$0x1]
        %3496 = vst.msk [vmem:[#allocation4 + $0x1d] sm:$0x1] %vm3435, %v3495
        %v3497 = vld [vmem:[#allocation3 + $0x82] sm:$0x1]
        %3498 = vst.msk [vmem:[#allocation4 + $0x1e] sm:$0x1] %vm3435, %v3497
        %v3499 = vld [vmem:[#allocation3 + $0x86] sm:$0x1]
        %3500 = vst.msk [vmem:[#allocation4 + $0x1f] sm:$0x1] %vm3435, %v3499
        %v3501 = vld [vmem:[#allocation3 + $0x44] sm:$0x1]
        %3502 = vst.msk [vmem:[#allocation4 + $0x20] sm:$0x1] %vm3435, %v3501
        %v3503 = vld [vmem:[#allocation3 + $0x48] sm:$0x1]
        %3504 = vst.msk [vmem:[#allocation4 + $0x21] sm:$0x1] %vm3435, %v3503
        %v3505 = vld [vmem:[#allocation3 + $0x84] sm:$0x1]
        %3506 = vst.msk [vmem:[#allocation4 + $0x22] sm:$0x1] %vm3435, %v3505
        %v3507 = vld [vmem:[#allocation3 + $0x88] sm:$0x1]
        %3508 = vst.msk [vmem:[#allocation4 + $0x23] sm:$0x1] %vm3435, %v3507
        %v3509 = vld [vmem:[#allocation4] sm:$0xf]
        %v3510 = vld [vmem:[%s5] sm:$0xff]
        %v3511 = vld [vmem:[%s5 + $0x8] sm:$0xff]
        %v3512 = vld [vmem:[%s5 + $0x10] sm:$0xff]
        %v3513 = vld [vmem:[%s5 + $0x18] sm:$0xff]
        %v3514 = vld [vmem:[%s5 + $0x20] sm:$0xff]
        %v3515 = vld [vmem:[%s5 + $0x28] sm:$0xff]
        %v3516 = vld [vmem:[%s5 + $0x30] sm:$0xff]
        %v3517 = vld [vmem:[%s5 + $0x38] sm:$0xff]
        %v3518 = vld [vmem:[#allocation4 + $0x4] sm:$0xf]
        %s3519 = scalar_lea.vmem %s5, 64
        %v3520 = vld [vmem:[%s3519] sm:$0xff]
        %v3521 = vld [vmem:[%s3519 + $0x8] sm:$0xff]
        %v3522 = vld [vmem:[%s3519 + $0x10] sm:$0xff]
        %v3523 = vld [vmem:[%s3519 + $0x18] sm:$0xff]
        %v3524 = vld [vmem:[%s3519 + $0x20] sm:$0xff]
        %v3525 = vld [vmem:[%s3519 + $0x28] sm:$0xff]
        %v3526 = vld [vmem:[%s3519 + $0x30] sm:$0xff]
        %v3527 = vld [vmem:[%s3519 + $0x38] sm:$0xff]
        %v3529 = vsel %vm3417, %v3518, 0
        %3531 = vmatprep.subr.mxu0 0.0
        %3532 = vmatpush1.msra.mxu0 0.0
        %3533 = vmatprep.subr.mxu0 0.0
        %3534 = vmatpush1.msra.mxu0 0.0
        %3535 = vmatprep.subr.mxu0 0.0
        %3536 = vmatpush1.msra.mxu0 0.0
        %3537 = vmatprep.subr.mxu0 0.0
        %3538 = vmatpush1.msra.mxu0 0.0
        %3539 = vmatprep.subr.mxu0 0.0
        %3540 = vmatpush1.msra.mxu0 0.0
        %3541 = vmatprep.subr.mxu0 0.0
        %3542 = vmatpush1.msra.mxu0 0.0
        %3543 = vmatprep.subr.mxu0 0.0
        %3544 = vmatpush1.msra.mxu0 0.0
        %3545 = vmatprep.subr.mxu0 0.0
        %3546 = vmatpush1.msra.mxu0 0.0
        %3547 = vmatprep.subr.mxu0 0.0
        %3548 = vmatpush1.msra.mxu0 %v3527
        %3549 = vmatprep.subr.mxu0 0.0
        %3550 = vmatpush1.msra.mxu0 %v3526
        %3551 = vmatprep.subr.mxu0 0.0
        %3552 = vmatpush1.msra.mxu0 %v3525
        %3553 = vmatprep.subr.mxu0 0.0
        %3554 = vmatpush1.msra.mxu0 %v3524
        %3555 = vmatprep.subr.mxu0 0.0
        %3556 = vmatpush1.msra.mxu0 %v3523
        %3557 = vmatprep.subr.mxu0 0.0
        %3558 = vmatpush1.msra.mxu0 %v3522
        %3559 = vmatprep.subr.mxu0 0.0
        %3560 = vmatpush1.msra.mxu0 %v3521
        %3561 = vmatprep.subr.mxu0 0.0
        %3562 = vmatpush1.msra.mxu0 %v3520
        %3563 = vmatprep.subr.mxu0 0.0
        %3564 = vmatpush2.msra.mxu0 0.0
        %3565 = vmatprep.subr.mxu0 0.0
        %3566 = vmatpush2.msra.mxu0 0.0
        %3567 = vmatprep.subr.mxu0 0.0
        %3568 = vmatpush2.msra.mxu0 0.0
        %3569 = vmatprep.subr.mxu0 0.0
        %3570 = vmatpush2.msra.mxu0 0.0
        %3571 = vmatprep.subr.mxu0 0.0
        %3572 = vmatpush2.msra.mxu0 0.0
        %3573 = vmatprep.subr.mxu0 0.0
        %3574 = vmatpush2.msra.mxu0 0.0
        %3575 = vmatprep.subr.mxu0 0.0
        %3576 = vmatpush2.msra.mxu0 0.0
        %3577 = vmatprep.subr.mxu0 0.0
        %3578 = vmatpush2.msra.mxu0 0.0
        %3579 = vmatprep.subr.mxu0 0.0
        %3580 = vmatpush2.msra.mxu0 0.0
        %3581 = vmatprep.subr.mxu0 0.0
        %3582 = vmatpush2.msra.mxu0 0.0
        %3583 = vmatprep.subr.mxu0 0.0
        %3584 = vmatpush2.msra.mxu0 0.0
        %3585 = vmatprep.subr.mxu0 0.0
        %3586 = vmatpush2.msra.mxu0 0.0
        %3587 = vmatprep.subr.mxu0 0.0
        %3588 = vmatpush2.msra.mxu0 0.0
        %3589 = vmatprep.subr.mxu0 0.0
        %3590 = vmatpush2.msra.mxu0 0.0
        %3591 = vmatprep.subr.mxu0 0.0
        %3592 = vmatpush2.msra.mxu0 0.0
        %3593 = vmatprep.subr.mxu0 0.0
        %3594 = vmatpush2.msra.mxu0 0.0
        %3595 = vmatprep.mubr.f32.mxu0 0.0
        %3596 = vmatmul.mubr.f32.gmra.mxu0 %v3529
        %v3597 = vpop.f32.mrf.mxu0
        %v3598 = vadd.f32 0.0, %v3597
        %v3599 = vpop.f32.mrf.mxu0
        %3600 = vdwg.mxu0
        %v3602 = vsel %vm3417, %v3509, 0
        %3604 = vmatprep.subr.mxu0 0.0
        %3605 = vmatpush1.msra.mxu0 0.0
        %3606 = vmatprep.subr.mxu0 0.0
        %3607 = vmatpush1.msra.mxu0 0.0
        %3608 = vmatprep.subr.mxu0 0.0
        %3609 = vmatpush1.msra.mxu0 0.0
        %3610 = vmatprep.subr.mxu0 0.0
        %3611 = vmatpush1.msra.mxu0 0.0
        %3612 = vmatprep.subr.mxu0 0.0
        %3613 = vmatpush1.msra.mxu0 0.0
        %3614 = vmatprep.subr.mxu0 0.0
        %3615 = vmatpush1.msra.mxu0 0.0
        %3616 = vmatprep.subr.mxu0 0.0
        %3617 = vmatpush1.msra.mxu0 0.0
        %3618 = vmatprep.subr.mxu0 0.0
        %3619 = vmatpush1.msra.mxu0 0.0
        %3620 = vmatprep.subr.mxu0 0.0
        %3621 = vmatpush1.msra.mxu0 %v3517
        %3622 = vmatprep.subr.mxu0 0.0
        %3623 = vmatpush1.msra.mxu0 %v3516
        %3624 = vmatprep.subr.mxu0 0.0
        %3625 = vmatpush1.msra.mxu0 %v3515
        %3626 = vmatprep.subr.mxu0 0.0
        %3627 = vmatpush1.msra.mxu0 %v3514
        %3628 = vmatprep.subr.mxu0 0.0
        %3629 = vmatpush1.msra.mxu0 %v3513
        %3630 = vmatprep.subr.mxu0 0.0
        %3631 = vmatpush1.msra.mxu0 %v3512
        %3632 = vmatprep.subr.mxu0 0.0
        %3633 = vmatpush1.msra.mxu0 %v3511
        %3634 = vmatprep.subr.mxu0 0.0
        %3635 = vmatpush1.msra.mxu0 %v3510
        %3636 = vmatprep.subr.mxu0 0.0
        %3637 = vmatpush2.msra.mxu0 0.0
        %3638 = vmatprep.subr.mxu0 0.0
        %3639 = vmatpush2.msra.mxu0 0.0
        %3640 = vmatprep.subr.mxu0 0.0
        %3641 = vmatpush2.msra.mxu0 0.0
        %3642 = vmatprep.subr.mxu0 0.0
        %3643 = vmatpush2.msra.mxu0 0.0
        %3644 = vmatprep.subr.mxu0 0.0
        %3645 = vmatpush2.msra.mxu0 0.0
        %3646 = vmatprep.subr.mxu0 0.0
        %3647 = vmatpush2.msra.mxu0 0.0
        %3648 = vmatprep.subr.mxu0 0.0
        %3649 = vmatpush2.msra.mxu0 0.0
        %3650 = vmatprep.subr.mxu0 0.0
        %3651 = vmatpush2.msra.mxu0 0.0
        %3652 = vmatprep.subr.mxu0 0.0
        %3653 = vmatpush2.msra.mxu0 0.0
        %3654 = vmatprep.subr.mxu0 0.0
        %3655 = vmatpush2.msra.mxu0 0.0
        %3656 = vmatprep.subr.mxu0 0.0
        %3657 = vmatpush2.msra.mxu0 0.0
        %3658 = vmatprep.subr.mxu0 0.0
        %3659 = vmatpush2.msra.mxu0 0.0
        %3660 = vmatprep.subr.mxu0 0.0
        %3661 = vmatpush2.msra.mxu0 0.0
        %3662 = vmatprep.subr.mxu0 0.0
        %3663 = vmatpush2.msra.mxu0 0.0
        %3664 = vmatprep.subr.mxu0 0.0
        %3665 = vmatpush2.msra.mxu0 0.0
        %3666 = vmatprep.subr.mxu0 0.0
        %3667 = vmatpush2.msra.mxu0 0.0
        %3668 = vmatprep.mubr.f32.mxu0 0.0
        %3669 = vmatmul.mubr.f32.gmra.mxu0 %v3602
        %v3670 = vpop.f32.mrf.mxu0
        %v3671 = vadd.f32 %v3598, %v3670
        %v3672 = vpop.f32.mrf.mxu0
        %3673 = vdwg.mxu0
        %v3674 = vld [vmem:[#allocation4 + $0x8] sm:$0xf]
        %s3675 = scalar_lea.vmem %s5, 128
        %v3676 = vld [vmem:[%s3675] sm:$0xff]
        %v3677 = vld [vmem:[%s3675 + $0x8] sm:$0xff]
        %v3678 = vld [vmem:[%s3675 + $0x10] sm:$0xff]
        %v3679 = vld [vmem:[%s3675 + $0x18] sm:$0xff]
        %v3680 = vld [vmem:[%s3675 + $0x20] sm:$0xff]
        %v3681 = vld [vmem:[%s3675 + $0x28] sm:$0xff]
        %v3682 = vld [vmem:[%s3675 + $0x30] sm:$0xff]
        %v3683 = vld [vmem:[%s3675 + $0x38] sm:$0xff]
        %v3685 = vsel %vm3417, %v3674, 0
        %3687 = vmatprep.subr.mxu0 0.0
        %3688 = vmatpush1.msra.mxu0 0.0
        %3689 = vmatprep.subr.mxu0 0.0
        %3690 = vmatpush1.msra.mxu0 0.0
        %3691 = vmatprep.subr.mxu0 0.0
        %3692 = vmatpush1.msra.mxu0 0.0
        %3693 = vmatprep.subr.mxu0 0.0
        %3694 = vmatpush1.msra.mxu0 0.0
        %3695 = vmatprep.subr.mxu0 0.0
        %3696 = vmatpush1.msra.mxu0 0.0
        %3697 = vmatprep.subr.mxu0 0.0
        %3698 = vmatpush1.msra.mxu0 0.0
        %3699 = vmatprep.subr.mxu0 0.0
        %3700 = vmatpush1.msra.mxu0 0.0
        %3701 = vmatprep.subr.mxu0 0.0
        %3702 = vmatpush1.msra.mxu0 0.0
        %3703 = vmatprep.subr.mxu0 0.0
        %3704 = vmatpush1.msra.mxu0 %v3683
        %3705 = vmatprep.subr.mxu0 0.0
        %3706 = vmatpush1.msra.mxu0 %v3682
        %3707 = vmatprep.subr.mxu0 0.0
        %3708 = vmatpush1.msra.mxu0 %v3681
        %3709 = vmatprep.subr.mxu0 0.0
        %3710 = vmatpush1.msra.mxu0 %v3680
        %3711 = vmatprep.subr.mxu0 0.0
        %3712 = vmatpush1.msra.mxu0 %v3679
        %3713 = vmatprep.subr.mxu0 0.0
        %3714 = vmatpush1.msra.mxu0 %v3678
        %3715 = vmatprep.subr.mxu0 0.0
        %3716 = vmatpush1.msra.mxu0 %v3677
        %3717 = vmatprep.subr.mxu0 0.0
        %3718 = vmatpush1.msra.mxu0 %v3676
        %3719 = vmatprep.subr.mxu0 0.0
        %3720 = vmatpush2.msra.mxu0 0.0
        %3721 = vmatprep.subr.mxu0 0.0
        %3722 = vmatpush2.msra.mxu0 0.0
        %3723 = vmatprep.subr.mxu0 0.0
        %3724 = vmatpush2.msra.mxu0 0.0
        %3725 = vmatprep.subr.mxu0 0.0
        %3726 = vmatpush2.msra.mxu0 0.0
        %3727 = vmatprep.subr.mxu0 0.0
        %3728 = vmatpush2.msra.mxu0 0.0
        %3729 = vmatprep.subr.mxu0 0.0
        %3730 = vmatpush2.msra.mxu0 0.0
        %3731 = vmatprep.subr.mxu0 0.0
        %3732 = vmatpush2.msra.mxu0 0.0
        %3733 = vmatprep.subr.mxu0 0.0
        %3734 = vmatpush2.msra.mxu0 0.0
        %3735 = vmatprep.subr.mxu0 0.0
        %3736 = vmatpush2.msra.mxu0 0.0
        %3737 = vmatprep.subr.mxu0 0.0
        %3738 = vmatpush2.msra.mxu0 0.0
        %3739 = vmatprep.subr.mxu0 0.0
        %3740 = vmatpush2.msra.mxu0 0.0
        %3741 = vmatprep.subr.mxu0 0.0
        %3742 = vmatpush2.msra.mxu0 0.0
        %3743 = vmatprep.subr.mxu0 0.0
        %3744 = vmatpush2.msra.mxu0 0.0
        %3745 = vmatprep.subr.mxu0 0.0
        %3746 = vmatpush2.msra.mxu0 0.0
        %3747 = vmatprep.subr.mxu0 0.0
        %3748 = vmatpush2.msra.mxu0 0.0
        %3749 = vmatprep.subr.mxu0 0.0
        %3750 = vmatpush2.msra.mxu0 0.0
        %3751 = vmatprep.mubr.f32.mxu0 0.0
        %3752 = vmatmul.mubr.f32.gmra.mxu0 %v3685
        %v3753 = vpop.f32.mrf.mxu0
        %v3754 = vadd.f32 0.0, %v3753
        %v3755 = vpop.f32.mrf.mxu0
        %3756 = vdwg.mxu0
        %v3757 = vadd.f32 %v3671, %v3754
        %v3758 = vld [vmem:[#allocation4 + $0xc] sm:$0xf]
        %s3759 = scalar_lea.vmem %s5, 192
        %v3760 = vld [vmem:[%s3759] sm:$0xff]
        %v3761 = vld [vmem:[%s3759 + $0x8] sm:$0xff]
        %v3762 = vld [vmem:[%s3759 + $0x10] sm:$0xff]
        %v3763 = vld [vmem:[%s3759 + $0x18] sm:$0xff]
        %v3764 = vld [vmem:[%s3759 + $0x20] sm:$0xff]
        %v3765 = vld [vmem:[%s3759 + $0x28] sm:$0xff]
        %v3766 = vld [vmem:[%s3759 + $0x30] sm:$0xff]
        %v3767 = vld [vmem:[%s3759 + $0x38] sm:$0xff]
        %v3769 = vsel %vm3417, %v3758, 0
        %3771 = vmatprep.subr.mxu0 0.0
        %3772 = vmatpush1.msra.mxu0 0.0
        %3773 = vmatprep.subr.mxu0 0.0
        %3774 = vmatpush1.msra.mxu0 0.0
        %3775 = vmatprep.subr.mxu0 0.0
        %3776 = vmatpush1.msra.mxu0 0.0
        %3777 = vmatprep.subr.mxu0 0.0
        %3778 = vmatpush1.msra.mxu0 0.0
        %3779 = vmatprep.subr.mxu0 0.0
        %3780 = vmatpush1.msra.mxu0 0.0
        %3781 = vmatprep.subr.mxu0 0.0
        %3782 = vmatpush1.msra.mxu0 0.0
        %3783 = vmatprep.subr.mxu0 0.0
        %3784 = vmatpush1.msra.mxu0 0.0
        %3785 = vmatprep.subr.mxu0 0.0
        %3786 = vmatpush1.msra.mxu0 0.0
        %3787 = vmatprep.subr.mxu0 0.0
        %3788 = vmatpush1.msra.mxu0 %v3767
        %3789 = vmatprep.subr.mxu0 0.0
        %3790 = vmatpush1.msra.mxu0 %v3766
        %3791 = vmatprep.subr.mxu0 0.0
        %3792 = vmatpush1.msra.mxu0 %v3765
        %3793 = vmatprep.subr.mxu0 0.0
        %3794 = vmatpush1.msra.mxu0 %v3764
        %3795 = vmatprep.subr.mxu0 0.0
        %3796 = vmatpush1.msra.mxu0 %v3763
        %3797 = vmatprep.subr.mxu0 0.0
        %3798 = vmatpush1.msra.mxu0 %v3762
        %3799 = vmatprep.subr.mxu0 0.0
        %3800 = vmatpush1.msra.mxu0 %v3761
        %3801 = vmatprep.subr.mxu0 0.0
        %3802 = vmatpush1.msra.mxu0 %v3760
        %3803 = vmatprep.subr.mxu0 0.0
        %3804 = vmatpush2.msra.mxu0 0.0
        %3805 = vmatprep.subr.mxu0 0.0
        %3806 = vmatpush2.msra.mxu0 0.0
        %3807 = vmatprep.subr.mxu0 0.0
        %3808 = vmatpush2.msra.mxu0 0.0
        %3809 = vmatprep.subr.mxu0 0.0
        %3810 = vmatpush2.msra.mxu0 0.0
        %3811 = vmatprep.subr.mxu0 0.0
        %3812 = vmatpush2.msra.mxu0 0.0
        %3813 = vmatprep.subr.mxu0 0.0
        %3814 = vmatpush2.msra.mxu0 0.0
        %3815 = vmatprep.subr.mxu0 0.0
        %3816 = vmatpush2.msra.mxu0 0.0
        %3817 = vmatprep.subr.mxu0 0.0
        %3818 = vmatpush2.msra.mxu0 0.0
        %3819 = vmatprep.subr.mxu0 0.0
        %3820 = vmatpush2.msra.mxu0 0.0
        %3821 = vmatprep.subr.mxu0 0.0
        %3822 = vmatpush2.msra.mxu0 0.0
        %3823 = vmatprep.subr.mxu0 0.0
        %3824 = vmatpush2.msra.mxu0 0.0
        %3825 = vmatprep.subr.mxu0 0.0
        %3826 = vmatpush2.msra.mxu0 0.0
        %3827 = vmatprep.subr.mxu0 0.0
        %3828 = vmatpush2.msra.mxu0 0.0
        %3829 = vmatprep.subr.mxu0 0.0
        %3830 = vmatpush2.msra.mxu0 0.0
        %3831 = vmatprep.subr.mxu0 0.0
        %3832 = vmatpush2.msra.mxu0 0.0
        %3833 = vmatprep.subr.mxu0 0.0
        %3834 = vmatpush2.msra.mxu0 0.0
        %3835 = vmatprep.mubr.f32.mxu0 0.0
        %3836 = vmatmul.mubr.f32.gmra.mxu0 %v3769
        %v3837 = vpop.f32.mrf.mxu0
        %v3838 = vadd.f32 0.0, %v3837
        %v3839 = vpop.f32.mrf.mxu0
        %3840 = vdwg.mxu0
        %v3841 = vadd.f32 %v3757, %v3838
        %v3842 = vld [vmem:[#allocation4 + $0x10] sm:$0xf]
        %s3843 = scalar_lea.vmem %s5, 256
        %v3844 = vld [vmem:[%s3843] sm:$0xff]
        %v3845 = vld [vmem:[%s3843 + $0x8] sm:$0xff]
        %v3846 = vld [vmem:[%s3843 + $0x10] sm:$0xff]
        %v3847 = vld [vmem:[%s3843 + $0x18] sm:$0xff]
        %v3848 = vld [vmem:[%s3843 + $0x20] sm:$0xff]
        %v3849 = vld [vmem:[%s3843 + $0x28] sm:$0xff]
        %v3850 = vld [vmem:[%s3843 + $0x30] sm:$0xff]
        %v3851 = vld [vmem:[%s3843 + $0x38] sm:$0xff]
        %v3853 = vsel %vm3417, %v3842, 0
        %3855 = vmatprep.subr.mxu0 0.0
        %3856 = vmatpush1.msra.mxu0 0.0
        %3857 = vmatprep.subr.mxu0 0.0
        %3858 = vmatpush1.msra.mxu0 0.0
        %3859 = vmatprep.subr.mxu0 0.0
        %3860 = vmatpush1.msra.mxu0 0.0
        %3861 = vmatprep.subr.mxu0 0.0
        %3862 = vmatpush1.msra.mxu0 0.0
        %3863 = vmatprep.subr.mxu0 0.0
        %3864 = vmatpush1.msra.mxu0 0.0
        %3865 = vmatprep.subr.mxu0 0.0
        %3866 = vmatpush1.msra.mxu0 0.0
        %3867 = vmatprep.subr.mxu0 0.0
        %3868 = vmatpush1.msra.mxu0 0.0
        %3869 = vmatprep.subr.mxu0 0.0
        %3870 = vmatpush1.msra.mxu0 0.0
        %3871 = vmatprep.subr.mxu0 0.0
        %3872 = vmatpush1.msra.mxu0 %v3851
        %3873 = vmatprep.subr.mxu0 0.0
        %3874 = vmatpush1.msra.mxu0 %v3850
        %3875 = vmatprep.subr.mxu0 0.0
        %3876 = vmatpush1.msra.mxu0 %v3849
        %3877 = vmatprep.subr.mxu0 0.0
        %3878 = vmatpush1.msra.mxu0 %v3848
        %3879 = vmatprep.subr.mxu0 0.0
        %3880 = vmatpush1.msra.mxu0 %v3847
        %3881 = vmatprep.subr.mxu0 0.0
        %3882 = vmatpush1.msra.mxu0 %v3846
        %3883 = vmatprep.subr.mxu0 0.0
        %3884 = vmatpush1.msra.mxu0 %v3845
        %3885 = vmatprep.subr.mxu0 0.0
        %3886 = vmatpush1.msra.mxu0 %v3844
        %3887 = vmatprep.subr.mxu0 0.0
        %3888 = vmatpush2.msra.mxu0 0.0
        %3889 = vmatprep.subr.mxu0 0.0
        %3890 = vmatpush2.msra.mxu0 0.0
        %3891 = vmatprep.subr.mxu0 0.0
        %3892 = vmatpush2.msra.mxu0 0.0
        %3893 = vmatprep.subr.mxu0 0.0
        %3894 = vmatpush2.msra.mxu0 0.0
        %3895 = vmatprep.subr.mxu0 0.0
        %3896 = vmatpush2.msra.mxu0 0.0
        %3897 = vmatprep.subr.mxu0 0.0
        %3898 = vmatpush2.msra.mxu0 0.0
        %3899 = vmatprep.subr.mxu0 0.0
        %3900 = vmatpush2.msra.mxu0 0.0
        %3901 = vmatprep.subr.mxu0 0.0
        %3902 = vmatpush2.msra.mxu0 0.0
        %3903 = vmatprep.subr.mxu0 0.0
        %3904 = vmatpush2.msra.mxu0 0.0
        %3905 = vmatprep.subr.mxu0 0.0
        %3906 = vmatpush2.msra.mxu0 0.0
        %3907 = vmatprep.subr.mxu0 0.0
        %3908 = vmatpush2.msra.mxu0 0.0
        %3909 = vmatprep.subr.mxu0 0.0
        %3910 = vmatpush2.msra.mxu0 0.0
        %3911 = vmatprep.subr.mxu0 0.0
        %3912 = vmatpush2.msra.mxu0 0.0
        %3913 = vmatprep.subr.mxu0 0.0
        %3914 = vmatpush2.msra.mxu0 0.0
        %3915 = vmatprep.subr.mxu0 0.0
        %3916 = vmatpush2.msra.mxu0 0.0
        %3917 = vmatprep.subr.mxu0 0.0
        %3918 = vmatpush2.msra.mxu0 0.0
        %3919 = vmatprep.mubr.f32.mxu0 0.0
        %3920 = vmatmul.mubr.f32.gmra.mxu0 %v3853
        %v3921 = vpop.f32.mrf.mxu0
        %v3922 = vadd.f32 0.0, %v3921
        %v3923 = vpop.f32.mrf.mxu0
        %3924 = vdwg.mxu0
        %v3925 = vadd.f32 %v3841, %v3922
        %v3926 = vld [vmem:[#allocation4 + $0x14] sm:$0xf]
        %s3927 = scalar_lea.vmem %s5, 320
        %v3928 = vld [vmem:[%s3927] sm:$0xff]
        %v3929 = vld [vmem:[%s3927 + $0x8] sm:$0xff]
        %v3930 = vld [vmem:[%s3927 + $0x10] sm:$0xff]
        %v3931 = vld [vmem:[%s3927 + $0x18] sm:$0xff]
        %v3932 = vld [vmem:[%s3927 + $0x20] sm:$0xff]
        %v3933 = vld [vmem:[%s3927 + $0x28] sm:$0xff]
        %v3934 = vld [vmem:[%s3927 + $0x30] sm:$0xff]
        %v3935 = vld [vmem:[%s3927 + $0x38] sm:$0xff]
        %v3937 = vsel %vm3417, %v3926, 0
        %3939 = vmatprep.subr.mxu0 0.0
        %3940 = vmatpush1.msra.mxu0 0.0
        %3941 = vmatprep.subr.mxu0 0.0
        %3942 = vmatpush1.msra.mxu0 0.0
        %3943 = vmatprep.subr.mxu0 0.0
        %3944 = vmatpush1.msra.mxu0 0.0
        %3945 = vmatprep.subr.mxu0 0.0
        %3946 = vmatpush1.msra.mxu0 0.0
        %3947 = vmatprep.subr.mxu0 0.0
        %3948 = vmatpush1.msra.mxu0 0.0
        %3949 = vmatprep.subr.mxu0 0.0
        %3950 = vmatpush1.msra.mxu0 0.0
        %3951 = vmatprep.subr.mxu0 0.0
        %3952 = vmatpush1.msra.mxu0 0.0
        %3953 = vmatprep.subr.mxu0 0.0
        %3954 = vmatpush1.msra.mxu0 0.0
        %3955 = vmatprep.subr.mxu0 0.0
        %3956 = vmatpush1.msra.mxu0 %v3935
        %3957 = vmatprep.subr.mxu0 0.0
        %3958 = vmatpush1.msra.mxu0 %v3934
        %3959 = vmatprep.subr.mxu0 0.0
        %3960 = vmatpush1.msra.mxu0 %v3933
        %3961 = vmatprep.subr.mxu0 0.0
        %3962 = vmatpush1.msra.mxu0 %v3932
        %3963 = vmatprep.subr.mxu0 0.0
        %3964 = vmatpush1.msra.mxu0 %v3931
        %3965 = vmatprep.subr.mxu0 0.0
        %3966 = vmatpush1.msra.mxu0 %v3930
        %3967 = vmatprep.subr.mxu0 0.0
        %3968 = vmatpush1.msra.mxu0 %v3929
        %3969 = vmatprep.subr.mxu0 0.0
        %3970 = vmatpush1.msra.mxu0 %v3928
        %3971 = vmatprep.subr.mxu0 0.0
        %3972 = vmatpush2.msra.mxu0 0.0
        %3973 = vmatprep.subr.mxu0 0.0
        %3974 = vmatpush2.msra.mxu0 0.0
        %3975 = vmatprep.subr.mxu0 0.0
        %3976 = vmatpush2.msra.mxu0 0.0
        %3977 = vmatprep.subr.mxu0 0.0
        %3978 = vmatpush2.msra.mxu0 0.0
        %3979 = vmatprep.subr.mxu0 0.0
        %3980 = vmatpush2.msra.mxu0 0.0
        %3981 = vmatprep.subr.mxu0 0.0
        %3982 = vmatpush2.msra.mxu0 0.0
        %3983 = vmatprep.subr.mxu0 0.0
        %3984 = vmatpush2.msra.mxu0 0.0
        %3985 = vmatprep.subr.mxu0 0.0
        %3986 = vmatpush2.msra.mxu0 0.0
        %3987 = vmatprep.subr.mxu0 0.0
        %3988 = vmatpush2.msra.mxu0 0.0
        %3989 = vmatprep.subr.mxu0 0.0
        %3990 = vmatpush2.msra.mxu0 0.0
        %3991 = vmatprep.subr.mxu0 0.0
        %3992 = vmatpush2.msra.mxu0 0.0
        %3993 = vmatprep.subr.mxu0 0.0
        %3994 = vmatpush2.msra.mxu0 0.0
        %3995 = vmatprep.subr.mxu0 0.0
        %3996 = vmatpush2.msra.mxu0 0.0
        %3997 = vmatprep.subr.mxu0 0.0
        %3998 = vmatpush2.msra.mxu0 0.0
        %3999 = vmatprep.subr.mxu0 0.0
        %4000 = vmatpush2.msra.mxu0 0.0
        %4001 = vmatprep.subr.mxu0 0.0
        %4002 = vmatpush2.msra.mxu0 0.0
        %4003 = vmatprep.mubr.f32.mxu0 0.0
        %4004 = vmatmul.mubr.f32.gmra.mxu0 %v3937
        %v4005 = vpop.f32.mrf.mxu0
        %v4006 = vadd.f32 0.0, %v4005
        %v4007 = vpop.f32.mrf.mxu0
        %4008 = vdwg.mxu0
        %v4009 = vadd.f32 %v3925, %v4006
        %v4010 = vld [vmem:[#allocation4 + $0x18] sm:$0xf]
        %s4011 = scalar_lea.vmem %s5, 384
        %v4012 = vld [vmem:[%s4011] sm:$0xff]
        %v4013 = vld [vmem:[%s4011 + $0x8] sm:$0xff]
        %v4014 = vld [vmem:[%s4011 + $0x10] sm:$0xff]
        %v4015 = vld [vmem:[%s4011 + $0x18] sm:$0xff]
        %v4016 = vld [vmem:[%s4011 + $0x20] sm:$0xff]
        %v4017 = vld [vmem:[%s4011 + $0x28] sm:$0xff]
        %v4018 = vld [vmem:[%s4011 + $0x30] sm:$0xff]
        %v4019 = vld [vmem:[%s4011 + $0x38] sm:$0xff]
        %v4021 = vsel %vm3417, %v4010, 0
        %4023 = vmatprep.subr.mxu0 0.0
        %4024 = vmatpush1.msra.mxu0 0.0
        %4025 = vmatprep.subr.mxu0 0.0
        %4026 = vmatpush1.msra.mxu0 0.0
        %4027 = vmatprep.subr.mxu0 0.0
        %4028 = vmatpush1.msra.mxu0 0.0
        %4029 = vmatprep.subr.mxu0 0.0
        %4030 = vmatpush1.msra.mxu0 0.0
        %4031 = vmatprep.subr.mxu0 0.0
        %4032 = vmatpush1.msra.mxu0 0.0
        %4033 = vmatprep.subr.mxu0 0.0
        %4034 = vmatpush1.msra.mxu0 0.0
        %4035 = vmatprep.subr.mxu0 0.0
        %4036 = vmatpush1.msra.mxu0 0.0
        %4037 = vmatprep.subr.mxu0 0.0
        %4038 = vmatpush1.msra.mxu0 0.0
        %4039 = vmatprep.subr.mxu0 0.0
        %4040 = vmatpush1.msra.mxu0 %v4019
        %4041 = vmatprep.subr.mxu0 0.0
        %4042 = vmatpush1.msra.mxu0 %v4018
        %4043 = vmatprep.subr.mxu0 0.0
        %4044 = vmatpush1.msra.mxu0 %v4017
        %4045 = vmatprep.subr.mxu0 0.0
        %4046 = vmatpush1.msra.mxu0 %v4016
        %4047 = vmatprep.subr.mxu0 0.0
        %4048 = vmatpush1.msra.mxu0 %v4015
        %4049 = vmatprep.subr.mxu0 0.0
        %4050 = vmatpush1.msra.mxu0 %v4014
        %4051 = vmatprep.subr.mxu0 0.0
        %4052 = vmatpush1.msra.mxu0 %v4013
        %4053 = vmatprep.subr.mxu0 0.0
        %4054 = vmatpush1.msra.mxu0 %v4012
        %4055 = vmatprep.subr.mxu0 0.0
        %4056 = vmatpush2.msra.mxu0 0.0
        %4057 = vmatprep.subr.mxu0 0.0
        %4058 = vmatpush2.msra.mxu0 0.0
        %4059 = vmatprep.subr.mxu0 0.0
        %4060 = vmatpush2.msra.mxu0 0.0
        %4061 = vmatprep.subr.mxu0 0.0
        %4062 = vmatpush2.msra.mxu0 0.0
        %4063 = vmatprep.subr.mxu0 0.0
        %4064 = vmatpush2.msra.mxu0 0.0
        %4065 = vmatprep.subr.mxu0 0.0
        %4066 = vmatpush2.msra.mxu0 0.0
        %4067 = vmatprep.subr.mxu0 0.0
        %4068 = vmatpush2.msra.mxu0 0.0
        %4069 = vmatprep.subr.mxu0 0.0
        %4070 = vmatpush2.msra.mxu0 0.0
        %4071 = vmatprep.subr.mxu0 0.0
        %4072 = vmatpush2.msra.mxu0 0.0
        %4073 = vmatprep.subr.mxu0 0.0
        %4074 = vmatpush2.msra.mxu0 0.0
        %4075 = vmatprep.subr.mxu0 0.0
        %4076 = vmatpush2.msra.mxu0 0.0
        %4077 = vmatprep.subr.mxu0 0.0
        %4078 = vmatpush2.msra.mxu0 0.0
        %4079 = vmatprep.subr.mxu0 0.0
        %4080 = vmatpush2.msra.mxu0 0.0
        %4081 = vmatprep.subr.mxu0 0.0
        %4082 = vmatpush2.msra.mxu0 0.0
        %4083 = vmatprep.subr.mxu0 0.0
        %4084 = vmatpush2.msra.mxu0 0.0
        %4085 = vmatprep.subr.mxu0 0.0
        %4086 = vmatpush2.msra.mxu0 0.0
        %4087 = vmatprep.mubr.f32.mxu0 0.0
        %4088 = vmatmul.mubr.f32.gmra.mxu0 %v4021
        %v4089 = vpop.f32.mrf.mxu0
        %v4090 = vadd.f32 0.0, %v4089
        %v4091 = vpop.f32.mrf.mxu0
        %4092 = vdwg.mxu0
        %v4093 = vadd.f32 %v4009, %v4090
        %v4094 = vld [vmem:[#allocation4 + $0x1c] sm:$0xf]
        %s4095 = scalar_lea.vmem %s5, 448
        %v4096 = vld [vmem:[%s4095] sm:$0xff]
        %v4097 = vld [vmem:[%s4095 + $0x8] sm:$0xff]
        %v4098 = vld [vmem:[%s4095 + $0x10] sm:$0xff]
        %v4099 = vld [vmem:[%s4095 + $0x18] sm:$0xff]
        %v4100 = vld [vmem:[%s4095 + $0x20] sm:$0xff]
        %v4101 = vld [vmem:[%s4095 + $0x28] sm:$0xff]
        %v4102 = vld [vmem:[%s4095 + $0x30] sm:$0xff]
        %v4103 = vld [vmem:[%s4095 + $0x38] sm:$0xff]
        %v4105 = vsel %vm3417, %v4094, 0
        %4107 = vmatprep.subr.mxu0 0.0
        %4108 = vmatpush1.msra.mxu0 0.0
        %4109 = vmatprep.subr.mxu0 0.0
        %4110 = vmatpush1.msra.mxu0 0.0
        %4111 = vmatprep.subr.mxu0 0.0
        %4112 = vmatpush1.msra.mxu0 0.0
        %4113 = vmatprep.subr.mxu0 0.0
        %4114 = vmatpush1.msra.mxu0 0.0
        %4115 = vmatprep.subr.mxu0 0.0
        %4116 = vmatpush1.msra.mxu0 0.0
        %4117 = vmatprep.subr.mxu0 0.0
        %4118 = vmatpush1.msra.mxu0 0.0
        %4119 = vmatprep.subr.mxu0 0.0
        %4120 = vmatpush1.msra.mxu0 0.0
        %4121 = vmatprep.subr.mxu0 0.0
        %4122 = vmatpush1.msra.mxu0 0.0
        %4123 = vmatprep.subr.mxu0 0.0
        %4124 = vmatpush1.msra.mxu0 %v4103
        %4125 = vmatprep.subr.mxu0 0.0
        %4126 = vmatpush1.msra.mxu0 %v4102
        %4127 = vmatprep.subr.mxu0 0.0
        %4128 = vmatpush1.msra.mxu0 %v4101
        %4129 = vmatprep.subr.mxu0 0.0
        %4130 = vmatpush1.msra.mxu0 %v4100
        %4131 = vmatprep.subr.mxu0 0.0
        %4132 = vmatpush1.msra.mxu0 %v4099
        %4133 = vmatprep.subr.mxu0 0.0
        %4134 = vmatpush1.msra.mxu0 %v4098
        %4135 = vmatprep.subr.mxu0 0.0
        %4136 = vmatpush1.msra.mxu0 %v4097
        %4137 = vmatprep.subr.mxu0 0.0
        %4138 = vmatpush1.msra.mxu0 %v4096
        %4139 = vmatprep.subr.mxu0 0.0
        %4140 = vmatpush2.msra.mxu0 0.0
        %4141 = vmatprep.subr.mxu0 0.0
        %4142 = vmatpush2.msra.mxu0 0.0
        %4143 = vmatprep.subr.mxu0 0.0
        %4144 = vmatpush2.msra.mxu0 0.0
        %4145 = vmatprep.subr.mxu0 0.0
        %4146 = vmatpush2.msra.mxu0 0.0
        %4147 = vmatprep.subr.mxu0 0.0
        %4148 = vmatpush2.msra.mxu0 0.0
        %4149 = vmatprep.subr.mxu0 0.0
        %4150 = vmatpush2.msra.mxu0 0.0
        %4151 = vmatprep.subr.mxu0 0.0
        %4152 = vmatpush2.msra.mxu0 0.0
        %4153 = vmatprep.subr.mxu0 0.0
        %4154 = vmatpush2.msra.mxu0 0.0
        %4155 = vmatprep.subr.mxu0 0.0
        %4156 = vmatpush2.msra.mxu0 0.0
        %4157 = vmatprep.subr.mxu0 0.0
        %4158 = vmatpush2.msra.mxu0 0.0
        %4159 = vmatprep.subr.mxu0 0.0
        %4160 = vmatpush2.msra.mxu0 0.0
        %4161 = vmatprep.subr.mxu0 0.0
        %4162 = vmatpush2.msra.mxu0 0.0
        %4163 = vmatprep.subr.mxu0 0.0
        %4164 = vmatpush2.msra.mxu0 0.0
        %4165 = vmatprep.subr.mxu0 0.0
        %4166 = vmatpush2.msra.mxu0 0.0
        %4167 = vmatprep.subr.mxu0 0.0
        %4168 = vmatpush2.msra.mxu0 0.0
        %4169 = vmatprep.subr.mxu0 0.0
        %4170 = vmatpush2.msra.mxu0 0.0
        %4171 = vmatprep.mubr.f32.mxu0 0.0
        %4172 = vmatmul.mubr.f32.gmra.mxu0 %v4105
        %v4173 = vpop.f32.mrf.mxu0
        %v4174 = vadd.f32 0.0, %v4173
        %v4175 = vpop.f32.mrf.mxu0
        %4176 = vdwg.mxu0
        %v4177 = vadd.f32 %v4093, %v4174
        %v4178 = vld [vmem:[#allocation4 + $0x20] sm:$0xf]
        %s4179 = scalar_lea.vmem %s5, 512
        %v4180 = vld [vmem:[%s4179] sm:$0xff]
        %v4181 = vld [vmem:[%s4179 + $0x8] sm:$0xff]
        %v4182 = vld [vmem:[%s4179 + $0x10] sm:$0xff]
        %v4183 = vld [vmem:[%s4179 + $0x18] sm:$0xff]
        %v4184 = vld [vmem:[%s4179 + $0x20] sm:$0xff]
        %v4185 = vld [vmem:[%s4179 + $0x28] sm:$0xff]
        %v4186 = vld [vmem:[%s4179 + $0x30] sm:$0xff]
        %v4187 = vld [vmem:[%s4179 + $0x38] sm:$0xff]
        %v4189 = vsel %vm3417, %v4178, 0
        %4191 = vmatprep.subr.mxu0 0.0
        %4192 = vmatpush1.msra.mxu0 0.0
        %4193 = vmatprep.subr.mxu0 0.0
        %4194 = vmatpush1.msra.mxu0 0.0
        %4195 = vmatprep.subr.mxu0 0.0
        %4196 = vmatpush1.msra.mxu0 0.0
        %4197 = vmatprep.subr.mxu0 0.0
        %4198 = vmatpush1.msra.mxu0 0.0
        %4199 = vmatprep.subr.mxu0 0.0
        %4200 = vmatpush1.msra.mxu0 0.0
        %4201 = vmatprep.subr.mxu0 0.0
        %4202 = vmatpush1.msra.mxu0 0.0
        %4203 = vmatprep.subr.mxu0 0.0
        %4204 = vmatpush1.msra.mxu0 0.0
        %4205 = vmatprep.subr.mxu0 0.0
        %4206 = vmatpush1.msra.mxu0 0.0
        %4207 = vmatprep.subr.mxu0 0.0
        %4208 = vmatpush1.msra.mxu0 %v4187
        %4209 = vmatprep.subr.mxu0 0.0
        %4210 = vmatpush1.msra.mxu0 %v4186
        %4211 = vmatprep.subr.mxu0 0.0
        %4212 = vmatpush1.msra.mxu0 %v4185
        %4213 = vmatprep.subr.mxu0 0.0
        %4214 = vmatpush1.msra.mxu0 %v4184
        %4215 = vmatprep.subr.mxu0 0.0
        %4216 = vmatpush1.msra.mxu0 %v4183
        %4217 = vmatprep.subr.mxu0 0.0
        %4218 = vmatpush1.msra.mxu0 %v4182
        %4219 = vmatprep.subr.mxu0 0.0
        %4220 = vmatpush1.msra.mxu0 %v4181
        %4221 = vmatprep.subr.mxu0 0.0
        %4222 = vmatpush1.msra.mxu0 %v4180
        %4223 = vmatprep.subr.mxu0 0.0
        %4224 = vmatpush2.msra.mxu0 0.0
        %4225 = vmatprep.subr.mxu0 0.0
        %4226 = vmatpush2.msra.mxu0 0.0
        %4227 = vmatprep.subr.mxu0 0.0
        %4228 = vmatpush2.msra.mxu0 0.0
        %4229 = vmatprep.subr.mxu0 0.0
        %4230 = vmatpush2.msra.mxu0 0.0
        %4231 = vmatprep.subr.mxu0 0.0
        %4232 = vmatpush2.msra.mxu0 0.0
        %4233 = vmatprep.subr.mxu0 0.0
        %4234 = vmatpush2.msra.mxu0 0.0
        %4235 = vmatprep.subr.mxu0 0.0
        %4236 = vmatpush2.msra.mxu0 0.0
        %4237 = vmatprep.subr.mxu0 0.0
        %4238 = vmatpush2.msra.mxu0 0.0
        %4239 = vmatprep.subr.mxu0 0.0
        %4240 = vmatpush2.msra.mxu0 0.0
        %4241 = vmatprep.subr.mxu0 0.0
        %4242 = vmatpush2.msra.mxu0 0.0
        %4243 = vmatprep.subr.mxu0 0.0
        %4244 = vmatpush2.msra.mxu0 0.0
        %4245 = vmatprep.subr.mxu0 0.0
        %4246 = vmatpush2.msra.mxu0 0.0
        %4247 = vmatprep.subr.mxu0 0.0
        %4248 = vmatpush2.msra.mxu0 0.0
        %4249 = vmatprep.subr.mxu0 0.0
        %4250 = vmatpush2.msra.mxu0 0.0
        %4251 = vmatprep.subr.mxu0 0.0
        %4252 = vmatpush2.msra.mxu0 0.0
        %4253 = vmatprep.subr.mxu0 0.0
        %4254 = vmatpush2.msra.mxu0 0.0
        %4255 = vmatprep.mubr.f32.mxu0 0.0
        %4256 = vmatmul.mubr.f32.gmra.mxu0 %v4189
        %v4257 = vpop.f32.mrf.mxu0
        %v4258 = vadd.f32 0.0, %v4257
        %v4259 = vpop.f32.mrf.mxu0
        %4260 = vdwg.mxu0
        %v4261 = vadd.f32 %v4177, %v4258
        %v4262 = vld [vmem:[%s6] sm:$0x1]
        %v4264 = vlaneseq
        %v4265 = vshrl.u32 %v4264, 7
        %v4266 = vsub.s32 0, %v4265
        %v4267 = vrot.slane %v4262, %v4266
        %v4269 = vadd.f32 %v4261, %v4267
        %v4270 = vmax.f32 %v4269, 0.0
        %v4271 = vld [vmem:[%s7] sm:$0xff]
        %v4272 = vld [vmem:[%s7 + $0x8] sm:$0xff]
        %v4273 = vld [vmem:[%s7 + $0x10] sm:$0xff]
        %v4274 = vld [vmem:[%s7 + $0x18] sm:$0xff]
        %v4275 = vld [vmem:[%s7 + $0x20] sm:$0xff]
        %v4276 = vld [vmem:[%s7 + $0x28] sm:$0xff]
        %v4277 = vld [vmem:[%s7 + $0x30] sm:$0xff]
        %v4278 = vld [vmem:[%s7 + $0x38] sm:$0xff]
        %v4279 = vld [vmem:[%s7 + $0x40] sm:$0xff]
        %v4280 = vld [vmem:[%s7 + $0x48] sm:$0xff]
        %v4281 = vld [vmem:[%s7 + $0x50] sm:$0xff]
        %v4282 = vld [vmem:[%s7 + $0x58] sm:$0xff]
        %v4283 = vld [vmem:[%s7 + $0x60] sm:$0xff]
        %v4284 = vld [vmem:[%s7 + $0x68] sm:$0xff]
        %v4285 = vld [vmem:[%s7 + $0x70] sm:$0xff]
        %v4286 = vld [vmem:[%s7 + $0x78] sm:$0xff]
        %v4287 = vld [vmem:[%s7 + $0x80] sm:$0xff]
        %v4288 = vld [vmem:[%s7 + $0x88] sm:$0xff]
        %v4289 = vld [vmem:[%s7 + $0x90] sm:$0xff]
        %v4290 = vld [vmem:[%s7 + $0x98] sm:$0xff]
        %v4291 = vld [vmem:[%s7 + $0xa0] sm:$0xff]
        %v4292 = vld [vmem:[%s7 + $0xa8] sm:$0xff]
        %v4293 = vld [vmem:[%s7 + $0xb0] sm:$0xff]
        %v4294 = vld [vmem:[%s7 + $0xb8] sm:$0xff]
        %v4295 = vld [vmem:[%s7 + $0xc0] sm:$0xff]
        %v4296 = vld [vmem:[%s7 + $0xc8] sm:$0xff]
        %v4297 = vld [vmem:[%s7 + $0xd0] sm:$0xff]
        %v4298 = vld [vmem:[%s7 + $0xd8] sm:$0xff]
        %v4299 = vld [vmem:[%s7 + $0xe0] sm:$0xff]
        %v4300 = vld [vmem:[%s7 + $0xe8] sm:$0xff]
        %v4301 = vld [vmem:[%s7 + $0xf0] sm:$0xff]
        %v4302 = vld [vmem:[%s7 + $0xf8] sm:$0xff]
        %v4304 = vrot.slane %v4270, 1
        %4306 = vmatprep.subr.mxu0 0.0
        %4307 = vmatpush1.msra.mxu0 %v4302
        %4308 = vmatprep.subr.mxu0 0.0
        %4309 = vmatpush1.msra.mxu0 %v4301
        %4310 = vmatprep.subr.mxu0 0.0
        %4311 = vmatpush1.msra.mxu0 %v4300
        %4312 = vmatprep.subr.mxu0 0.0
        %4313 = vmatpush1.msra.mxu0 %v4299
        %4314 = vmatprep.subr.mxu0 0.0
        %4315 = vmatpush1.msra.mxu0 %v4298
        %4316 = vmatprep.subr.mxu0 0.0
        %4317 = vmatpush1.msra.mxu0 %v4297
        %4318 = vmatprep.subr.mxu0 0.0
        %4319 = vmatpush1.msra.mxu0 %v4296
        %4320 = vmatprep.subr.mxu0 0.0
        %4321 = vmatpush1.msra.mxu0 %v4295
        %4322 = vmatprep.subr.mxu0 0.0
        %4323 = vmatpush1.msra.mxu0 %v4294
        %4324 = vmatprep.subr.mxu0 0.0
        %4325 = vmatpush1.msra.mxu0 %v4293
        %4326 = vmatprep.subr.mxu0 0.0
        %4327 = vmatpush1.msra.mxu0 %v4292
        %4328 = vmatprep.subr.mxu0 0.0
        %4329 = vmatpush1.msra.mxu0 %v4291
        %4330 = vmatprep.subr.mxu0 0.0
        %4331 = vmatpush1.msra.mxu0 %v4290
        %4332 = vmatprep.subr.mxu0 0.0
        %4333 = vmatpush1.msra.mxu0 %v4289
        %4334 = vmatprep.subr.mxu0 0.0
        %4335 = vmatpush1.msra.mxu0 %v4288
        %4336 = vmatprep.subr.mxu0 0.0
        %4337 = vmatpush1.msra.mxu0 %v4287
        %4338 = vmatprep.subr.mxu0 0.0
        %4339 = vmatpush2.msra.mxu0 0.0
        %4340 = vmatprep.subr.mxu0 0.0
        %4341 = vmatpush2.msra.mxu0 0.0
        %4342 = vmatprep.subr.mxu0 0.0
        %4343 = vmatpush2.msra.mxu0 0.0
        %4344 = vmatprep.subr.mxu0 0.0
        %4345 = vmatpush2.msra.mxu0 0.0
        %4346 = vmatprep.subr.mxu0 0.0
        %4347 = vmatpush2.msra.mxu0 0.0
        %4348 = vmatprep.subr.mxu0 0.0
        %4349 = vmatpush2.msra.mxu0 0.0
        %4350 = vmatprep.subr.mxu0 0.0
        %4351 = vmatpush2.msra.mxu0 0.0
        %4352 = vmatprep.subr.mxu0 0.0
        %4353 = vmatpush2.msra.mxu0 0.0
        %4354 = vmatprep.subr.mxu0 0.0
        %4355 = vmatpush2.msra.mxu0 0.0
        %4356 = vmatprep.subr.mxu0 0.0
        %4357 = vmatpush2.msra.mxu0 0.0
        %4358 = vmatprep.subr.mxu0 0.0
        %4359 = vmatpush2.msra.mxu0 0.0
        %4360 = vmatprep.subr.mxu0 0.0
        %4361 = vmatpush2.msra.mxu0 0.0
        %4362 = vmatprep.subr.mxu0 0.0
        %4363 = vmatpush2.msra.mxu0 0.0
        %4364 = vmatprep.subr.mxu0 0.0
        %4365 = vmatpush2.msra.mxu0 0.0
        %4366 = vmatprep.subr.mxu0 0.0
        %4367 = vmatpush2.msra.mxu0 0.0
        %4368 = vmatprep.subr.mxu0 0.0
        %4369 = vmatpush2.msra.mxu0 0.0
        %4370 = vmatprep.mubr.f32.mxu0 0.0
        %4371 = vmatmul.mubr.f32.gmra.mxu0 %v4304
        %v4372 = vpop.f32.mrf.mxu0
        %v4373 = vadd.f32 0.0, %v4372
        %v4374 = vpop.f32.mrf.mxu0
        %4375 = vdwg.mxu0
        %v4376 = vld [vmem:[%s7 + $0x100] sm:$0xff]
        %v4377 = vld [vmem:[%s7 + $0x108] sm:$0xff]
        %v4378 = vld [vmem:[%s7 + $0x110] sm:$0xff]
        %v4379 = vld [vmem:[%s7 + $0x118] sm:$0xff]
        %v4380 = vld [vmem:[%s7 + $0x120] sm:$0xff]
        %v4381 = vld [vmem:[%s7 + $0x128] sm:$0xff]
        %v4382 = vld [vmem:[%s7 + $0x130] sm:$0xff]
        %v4383 = vld [vmem:[%s7 + $0x138] sm:$0xff]
        %v4384 = vld [vmem:[%s7 + $0x140] sm:$0xff]
        %v4385 = vld [vmem:[%s7 + $0x148] sm:$0xff]
        %v4386 = vld [vmem:[%s7 + $0x150] sm:$0xff]
        %v4387 = vld [vmem:[%s7 + $0x158] sm:$0xff]
        %v4388 = vld [vmem:[%s7 + $0x160] sm:$0xff]
        %v4389 = vld [vmem:[%s7 + $0x168] sm:$0xff]
        %v4390 = vld [vmem:[%s7 + $0x170] sm:$0xff]
        %v4391 = vld [vmem:[%s7 + $0x178] sm:$0xff]
        %v4392 = vld [vmem:[%s7 + $0x180] sm:$0xff]
        %v4393 = vld [vmem:[%s7 + $0x188] sm:$0xff]
        %v4394 = vld [vmem:[%s7 + $0x190] sm:$0xff]
        %v4395 = vld [vmem:[%s7 + $0x198] sm:$0xff]
        %v4396 = vld [vmem:[%s7 + $0x1a0] sm:$0xff]
        %v4397 = vld [vmem:[%s7 + $0x1a8] sm:$0xff]
        %v4398 = vld [vmem:[%s7 + $0x1b0] sm:$0xff]
        %v4399 = vld [vmem:[%s7 + $0x1b8] sm:$0xff]
        %v4400 = vld [vmem:[%s7 + $0x1c0] sm:$0xff]
        %v4401 = vld [vmem:[%s7 + $0x1c8] sm:$0xff]
        %v4402 = vld [vmem:[%s7 + $0x1d0] sm:$0xff]
        %v4403 = vld [vmem:[%s7 + $0x1d8] sm:$0xff]
        %v4404 = vld [vmem:[%s7 + $0x1e0] sm:$0xff]
        %v4405 = vld [vmem:[%s7 + $0x1e8] sm:$0xff]
        %v4406 = vld [vmem:[%s7 + $0x1f0] sm:$0xff]
        %v4407 = vld [vmem:[%s7 + $0x1f8] sm:$0xff]
        %v4408 = vrot.slane %v4270, 3
        %4410 = vmatprep.subr.mxu0 0.0
        %4411 = vmatpush1.msra.mxu0 %v4407
        %4412 = vmatprep.subr.mxu0 0.0
        %4413 = vmatpush1.msra.mxu0 %v4406
        %4414 = vmatprep.subr.mxu0 0.0
        %4415 = vmatpush1.msra.mxu0 %v4405
        %4416 = vmatprep.subr.mxu0 0.0
        %4417 = vmatpush1.msra.mxu0 %v4404
        %4418 = vmatprep.subr.mxu0 0.0
        %4419 = vmatpush1.msra.mxu0 %v4403
        %4420 = vmatprep.subr.mxu0 0.0
        %4421 = vmatpush1.msra.mxu0 %v4402
        %4422 = vmatprep.subr.mxu0 0.0
        %4423 = vmatpush1.msra.mxu0 %v4401
        %4424 = vmatprep.subr.mxu0 0.0
        %4425 = vmatpush1.msra.mxu0 %v4400
        %4426 = vmatprep.subr.mxu0 0.0
        %4427 = vmatpush1.msra.mxu0 %v4399
        %4428 = vmatprep.subr.mxu0 0.0
        %4429 = vmatpush1.msra.mxu0 %v4398
        %4430 = vmatprep.subr.mxu0 0.0
        %4431 = vmatpush1.msra.mxu0 %v4397
        %4432 = vmatprep.subr.mxu0 0.0
        %4433 = vmatpush1.msra.mxu0 %v4396
        %4434 = vmatprep.subr.mxu0 0.0
        %4435 = vmatpush1.msra.mxu0 %v4395
        %4436 = vmatprep.subr.mxu0 0.0
        %4437 = vmatpush1.msra.mxu0 %v4394
        %4438 = vmatprep.subr.mxu0 0.0
        %4439 = vmatpush1.msra.mxu0 %v4393
        %4440 = vmatprep.subr.mxu0 0.0
        %4441 = vmatpush1.msra.mxu0 %v4392
        %4442 = vmatprep.subr.mxu0 0.0
        %4443 = vmatpush2.msra.mxu0 0.0
        %4444 = vmatprep.subr.mxu0 0.0
        %4445 = vmatpush2.msra.mxu0 0.0
        %4446 = vmatprep.subr.mxu0 0.0
        %4447 = vmatpush2.msra.mxu0 0.0
        %4448 = vmatprep.subr.mxu0 0.0
        %4449 = vmatpush2.msra.mxu0 0.0
        %4450 = vmatprep.subr.mxu0 0.0
        %4451 = vmatpush2.msra.mxu0 0.0
        %4452 = vmatprep.subr.mxu0 0.0
        %4453 = vmatpush2.msra.mxu0 0.0
        %4454 = vmatprep.subr.mxu0 0.0
        %4455 = vmatpush2.msra.mxu0 0.0
        %4456 = vmatprep.subr.mxu0 0.0
        %4457 = vmatpush2.msra.mxu0 0.0
        %4458 = vmatprep.subr.mxu0 0.0
        %4459 = vmatpush2.msra.mxu0 0.0
        %4460 = vmatprep.subr.mxu0 0.0
        %4461 = vmatpush2.msra.mxu0 0.0
        %4462 = vmatprep.subr.mxu0 0.0
        %4463 = vmatpush2.msra.mxu0 0.0
        %4464 = vmatprep.subr.mxu0 0.0
        %4465 = vmatpush2.msra.mxu0 0.0
        %4466 = vmatprep.subr.mxu0 0.0
        %4467 = vmatpush2.msra.mxu0 0.0
        %4468 = vmatprep.subr.mxu0 0.0
        %4469 = vmatpush2.msra.mxu0 0.0
        %4470 = vmatprep.subr.mxu0 0.0
        %4471 = vmatpush2.msra.mxu0 0.0
        %4472 = vmatprep.subr.mxu0 0.0
        %4473 = vmatpush2.msra.mxu0 0.0
        %4474 = vmatprep.mubr.f32.mxu0 0.0
        %4475 = vmatmul.mubr.f32.gmra.mxu0 %v4408
        %v4476 = vpop.f32.mrf.mxu0
        %v4477 = vadd.f32 0.0, %v4476
        %v4478 = vpop.f32.mrf.mxu0
        %4479 = vdwg.mxu0
        %v4480 = vld [vmem:[%s8] sm:$0x1]
        %4481 = vmatprep.subr.mxu0 0.0
        %4482 = vmatpush1.msra.mxu0 %v4286
        %4483 = vmatprep.subr.mxu0 0.0
        %4484 = vmatpush1.msra.mxu0 %v4285
        %4485 = vmatprep.subr.mxu0 0.0
        %4486 = vmatpush1.msra.mxu0 %v4284
        %4487 = vmatprep.subr.mxu0 0.0
        %4488 = vmatpush1.msra.mxu0 %v4283
        %4489 = vmatprep.subr.mxu0 0.0
        %4490 = vmatpush1.msra.mxu0 %v4282
        %4491 = vmatprep.subr.mxu0 0.0
        %4492 = vmatpush1.msra.mxu0 %v4281
        %4493 = vmatprep.subr.mxu0 0.0
        %4494 = vmatpush1.msra.mxu0 %v4280
        %4495 = vmatprep.subr.mxu0 0.0
        %4496 = vmatpush1.msra.mxu0 %v4279
        %4497 = vmatprep.subr.mxu0 0.0
        %4498 = vmatpush1.msra.mxu0 %v4278
        %4499 = vmatprep.subr.mxu0 0.0
        %4500 = vmatpush1.msra.mxu0 %v4277
        %4501 = vmatprep.subr.mxu0 0.0
        %4502 = vmatpush1.msra.mxu0 %v4276
        %4503 = vmatprep.subr.mxu0 0.0
        %4504 = vmatpush1.msra.mxu0 %v4275
        %4505 = vmatprep.subr.mxu0 0.0
        %4506 = vmatpush1.msra.mxu0 %v4274
        %4507 = vmatprep.subr.mxu0 0.0
        %4508 = vmatpush1.msra.mxu0 %v4273
        %4509 = vmatprep.subr.mxu0 0.0
        %4510 = vmatpush1.msra.mxu0 %v4272
        %4511 = vmatprep.subr.mxu0 0.0
        %4512 = vmatpush1.msra.mxu0 %v4271
        %4513 = vmatprep.subr.mxu0 0.0
        %4514 = vmatpush2.msra.mxu0 0.0
        %4515 = vmatprep.subr.mxu0 0.0
        %4516 = vmatpush2.msra.mxu0 0.0
        %4517 = vmatprep.subr.mxu0 0.0
        %4518 = vmatpush2.msra.mxu0 0.0
        %4519 = vmatprep.subr.mxu0 0.0
        %4520 = vmatpush2.msra.mxu0 0.0
        %4521 = vmatprep.subr.mxu0 0.0
        %4522 = vmatpush2.msra.mxu0 0.0
        %4523 = vmatprep.subr.mxu0 0.0
        %4524 = vmatpush2.msra.mxu0 0.0
        %4525 = vmatprep.subr.mxu0 0.0
        %4526 = vmatpush2.msra.mxu0 0.0
        %4527 = vmatprep.subr.mxu0 0.0
        %4528 = vmatpush2.msra.mxu0 0.0
        %4529 = vmatprep.subr.mxu0 0.0
        %4530 = vmatpush2.msra.mxu0 0.0
        %4531 = vmatprep.subr.mxu0 0.0
        %4532 = vmatpush2.msra.mxu0 0.0
        %4533 = vmatprep.subr.mxu0 0.0
        %4534 = vmatpush2.msra.mxu0 0.0
        %4535 = vmatprep.subr.mxu0 0.0
        %4536 = vmatpush2.msra.mxu0 0.0
        %4537 = vmatprep.subr.mxu0 0.0
        %4538 = vmatpush2.msra.mxu0 0.0
        %4539 = vmatprep.subr.mxu0 0.0
        %4540 = vmatpush2.msra.mxu0 0.0
        %4541 = vmatprep.subr.mxu0 0.0
        %4542 = vmatpush2.msra.mxu0 0.0
        %4543 = vmatprep.subr.mxu0 0.0
        %4544 = vmatpush2.msra.mxu0 0.0
        %4545 = vmatprep.mubr.f32.mxu0 0.0
        %4546 = vmatmul.mubr.f32.gmra.mxu0 %v4270
        %v4547 = vpop.f32.mrf.mxu0
        %v4548 = vadd.f32 %v4373, %v4547
        %v4549 = vpop.f32.mrf.mxu0
        %4550 = vdwg.mxu0
        %v4551 = vrot.slane %v4270, 2
        %4553 = vmatprep.subr.mxu0 0.0
        %4554 = vmatpush1.msra.mxu0 %v4391
        %4555 = vmatprep.subr.mxu0 0.0
        %4556 = vmatpush1.msra.mxu0 %v4390
        %4557 = vmatprep.subr.mxu0 0.0
        %4558 = vmatpush1.msra.mxu0 %v4389
        %4559 = vmatprep.subr.mxu0 0.0
        %4560 = vmatpush1.msra.mxu0 %v4388
        %4561 = vmatprep.subr.mxu0 0.0
        %4562 = vmatpush1.msra.mxu0 %v4387
        %4563 = vmatprep.subr.mxu0 0.0
        %4564 = vmatpush1.msra.mxu0 %v4386
        %4565 = vmatprep.subr.mxu0 0.0
        %4566 = vmatpush1.msra.mxu0 %v4385
        %4567 = vmatprep.subr.mxu0 0.0
        %4568 = vmatpush1.msra.mxu0 %v4384
        %4569 = vmatprep.subr.mxu0 0.0
        %4570 = vmatpush1.msra.mxu0 %v4383
        %4571 = vmatprep.subr.mxu0 0.0
        %4572 = vmatpush1.msra.mxu0 %v4382
        %4573 = vmatprep.subr.mxu0 0.0
        %4574 = vmatpush1.msra.mxu0 %v4381
        %4575 = vmatprep.subr.mxu0 0.0
        %4576 = vmatpush1.msra.mxu0 %v4380
        %4577 = vmatprep.subr.mxu0 0.0
        %4578 = vmatpush1.msra.mxu0 %v4379
        %4579 = vmatprep.subr.mxu0 0.0
        %4580 = vmatpush1.msra.mxu0 %v4378
        %4581 = vmatprep.subr.mxu0 0.0
        %4582 = vmatpush1.msra.mxu0 %v4377
        %4583 = vmatprep.subr.mxu0 0.0
        %4584 = vmatpush1.msra.mxu0 %v4376
        %4585 = vmatprep.subr.mxu0 0.0
        %4586 = vmatpush2.msra.mxu0 0.0
        %4587 = vmatprep.subr.mxu0 0.0
        %4588 = vmatpush2.msra.mxu0 0.0
        %4589 = vmatprep.subr.mxu0 0.0
        %4590 = vmatpush2.msra.mxu0 0.0
        %4591 = vmatprep.subr.mxu0 0.0
        %4592 = vmatpush2.msra.mxu0 0.0
        %4593 = vmatprep.subr.mxu0 0.0
        %4594 = vmatpush2.msra.mxu0 0.0
        %4595 = vmatprep.subr.mxu0 0.0
        %4596 = vmatpush2.msra.mxu0 0.0
        %4597 = vmatprep.subr.mxu0 0.0
        %4598 = vmatpush2.msra.mxu0 0.0
        %4599 = vmatprep.subr.mxu0 0.0
        %4600 = vmatpush2.msra.mxu0 0.0
        %4601 = vmatprep.subr.mxu0 0.0
        %4602 = vmatpush2.msra.mxu0 0.0
        %4603 = vmatprep.subr.mxu0 0.0
        %4604 = vmatpush2.msra.mxu0 0.0
        %4605 = vmatprep.subr.mxu0 0.0
        %4606 = vmatpush2.msra.mxu0 0.0
        %4607 = vmatprep.subr.mxu0 0.0
        %4608 = vmatpush2.msra.mxu0 0.0
        %4609 = vmatprep.subr.mxu0 0.0
        %4610 = vmatpush2.msra.mxu0 0.0
        %4611 = vmatprep.subr.mxu0 0.0
        %4612 = vmatpush2.msra.mxu0 0.0
        %4613 = vmatprep.subr.mxu0 0.0
        %4614 = vmatpush2.msra.mxu0 0.0
        %4615 = vmatprep.subr.mxu0 0.0
        %4616 = vmatpush2.msra.mxu0 0.0
        %4617 = vmatprep.mubr.f32.mxu0 0.0
        %4618 = vmatmul.mubr.f32.gmra.mxu0 %v4551
        %v4619 = vpop.f32.mrf.mxu0
        %v4620 = vadd.f32 %v4477, %v4619
        %v4621 = vpop.f32.mrf.mxu0
        %4622 = vdwg.mxu0
        %v4623 = vadd.f32 %v4548, %v4620
        %v4624 = vadd.f32 %v4480, %v4623
        %vm4625 = vcmask 73728
        %v4626 = vsel %vm4625, %v4624, -inf
        %4627 = vmax.xlane.f32.xlu0 %v4626
        %v4628 = vpop.xlane.xlu0 %4627
        %v4629 = vsub.f32 %v4624, %v4628
        %v4630 = vmul.f32 %v4629, 1.442695
        %v4631 = vpow.pop %v4630
        %v4632 = vsel %vm4625, %v4631, 0.0
        %4633 = vadd.xlane.f32.xlu0 %v4632
        %v4634 = vpop.xlane.xlu0 %4633
        %v4635 = vrcp.pop %v4634
        %v4636 = vmul.f32 %v4631, %v4635
        %4637 = vst.msk [vmem:[%s325] sm:$0x1] %vm4625, %v4636
        %s4638 = sand.u32 %s225, 1
        %s4639 = scalar_lea.sflag [#allocation6], %s4638
        %s4640 = sand.u32 %s225, 1
        %s4641 = scalar_lea.vmem [#allocation5], %s4640
        // Predicated region
        $region57: #{model1_forward.1} parent=55 // pred_check
          %p4642 = pneg %p235
        $region58: #{model1_forward.1} parent=55 // pred_check_branch
          %4644 = sbr.rel (%p4642) target = $region60
        $region59: #{model1_forward.1} parent=55 // pred_region
          %s4646 = ssub.s32 16, 16
          %4647 = vsyncadd %s4639, %s4646
          %s4648 = smul.addr %s23, 16
          %s4649 = scalar_lea.hbm %s9, %s4648
          %s4651 = sshll.u32 %s4641, 4
          %s4652 = int_to_ptr.vmem [resolvable:$true] %s4651
          %4654 = dma.vmem_to_hbm [thread:$0]  %s4652, 16, %s4649, %s4639
        $region60: #{model1_forward.1} parent=55 // pred_fallthru
          _
      $region56: #{model1_forward.1} parent=5 // pred_fallthru
        _
      %p4655 = scmp.le.s32.totalorder 2, %s18
      // Predicated region
      $region61: #{model1_forward.1} parent=5 // pred_check
        %p4656 = pneg %p4655
      $region62: #{model1_forward.1} parent=5 // pred_check_branch
        %4658 = sbr.rel (%p4656) target = $region64
      $region63: #{model1_forward.1} parent=5 // pred_region
        %s4659 = ssub.s32 %s18, 2
        // Predicated region
        $region65: #{model1_forward.1} parent=63 // pred_check
          %p4660 = pneg %p241
        $region66: #{model1_forward.1} parent=63 // pred_check_branch
          %4662 = sbr.rel (%p4660) target = $region68
        $region67: #{model1_forward.1} parent=63 // pred_region
          %s4663 = sand.u32 %s226, 1
          %s4664 = scalar_lea.sflag [#allocation6], %s4663
          %s4665 = sand.u32 %s226, 1
          %s4666 = scalar_lea.vmem [#allocation5], %s4665
          %4667 = dma.done %s4664, 16
        $region68: #{model1_forward.1} parent=63 // pred_fallthru
          _
      $region64: #{model1_forward.1} parent=5 // pred_fallthru
        _
    $region6: #{model1_forward.1} parent=1 // loop_footer
      %s22 = sadd.s32 1, %s18
    $region7: #{model1_forward.1} parent=1 // loop_footer_branch
      %17 = sbr.rel target = $region3
    $region8: #{model1_forward.1} parent=1 // loop_exit
      _
    %4668 = vsyncpa [#allocation6], 1
    %s4669 = scalar_lea.sflag [#allocation6], 1
    %4670 = vsyncpa %s4669, 1

</llo_original>
